<compile_context>
chip_gen: v7x
topology: tpu7x:2x2x1
jax: 0.10.0
libtpu: 0.0.40
codegen_flags: <defaults>
</compile_context>

<pallas_src>
import functools

import jax
import jax.numpy as jnp
from jax.experimental import pallas as pl
from jax.experimental.pallas import tpu as pltpu

BN_EPS = 1e-5          # PyTorch BatchNorm2d default
LANE = 128
VMEM_LIMIT = 32 * 1024 * 1024   # safe scoped-VMEM cap on v5e/v6e/v7x


def _round_up(x, m):
    return (x + m - 1) // m * m


def _pick_tile(m):
    # Largest tile (multiple of 16 for bf16 sublane packing, capped at 256)
    # that divides M while leaving >= 2 tiles, so every grid pipelines.
    for tm in (256, 128, 64, 32, 16):
        if m % tm == 0 and m // tm >= 2:
            return tm
    return m


# ----------------------------------------------------------------------------
# Fused Conv(im2col GEMM) + BatchNorm(train) + ReLU : one pallas_call per layer
# ----------------------------------------------------------------------------
def fused_conv_bn_relu_kernel(p_ref, w_ref, g_ref, b_ref, o_ref,
                              y_scr, stat_scr, aff_scr, *, inv_m):
    phase = pl.program_id(0)
    i = pl.program_id(1)

    @pl.when(phase == 0)
    def _():
        # bf16 MXU GEMM, f32 accumulation; keep the tile resident in VMEM.
        y = jnp.dot(p_ref[...], w_ref[...], preferred_element_type=jnp.float32)
        y_scr[i] = y

        @pl.when(i == 0)
        def _():
            stat_scr[...] = jnp.zeros_like(stat_scr)

        # Two separate row updates (no sublane concat in the MXU-fed loop).
        stat_scr[0:1, :] += jnp.sum(y, axis=0, keepdims=True)
        stat_scr[1:2, :] += jnp.sum(y * y, axis=0, keepdims=True)

    @pl.when(phase == 1)
    def _():
        @pl.when(i == 0)
        def _():
            # BN affine computed once per layer (biased variance, train mode).
            # NOTE: E[x^2] - mean^2 in f32; fine at these magnitudes.
            mean = stat_scr[0:1, :] * inv_m
            var = jnp.maximum(stat_scr[1:2, :] * inv_m - mean * mean, 0.0)
            scale = jax.lax.rsqrt(var + BN_EPS) * g_ref[...]
            aff_scr[0:1, :] = scale
            aff_scr[1:2, :] = b_ref[...] - mean * scale

        # Single FMA + ReLU per tile, lane-dense store.
        o_ref[...] = jnp.maximum(
            y_scr[i] * aff_scr[0:1, :] + aff_scr[1:2, :], 0.0).astype(o_ref.dtype)


def fused_conv_bn_relu(patches, wmat, gamma, beta, out_dtype=jnp.bfloat16):
    patches = patches.astype(jnp.bfloat16)
    m, kpad = patches.shape
    assert kpad == wmat.shape[0], (patches.shape, wmat.shape)
    cp = wmat.shape[1]
    tm = _pick_tile(m)
    nt = m // tm

    kern = functools.partial(fused_conv_bn_relu_kernel, inv_m=1.0 / float(m))
    cost = pl.CostEstimate(
        flops=int(2 * m * kpad * cp + 6 * m * cp),
        transcendentals=int(cp),
        bytes_accessed=int(m * kpad * 2 + kpad * cp * 2 + 2 * cp * 4
                           + m * cp * jnp.dtype(out_dtype).itemsize))

    return pl.pallas_call(
        kern,
        out_shape=jax.ShapeDtypeStruct((m, cp), out_dtype),
        grid_spec=pltpu.PrefetchScalarGridSpec(
            num_scalar_prefetch=0,
            grid=(2, nt),                           # (phase, M-tile)
            in_specs=[
                # Patches: tile i in phase 0; stay on the last block in phase 1
                # (same index as the previous step -> no extra DMA).
                pl.BlockSpec((tm, kpad),
                             lambda p, i: (i * (1 - p) + (nt - 1) * p, 0)),
                pl.BlockSpec((kpad, cp), lambda p, i: (0, 0)),   # resident W
                pl.BlockSpec((1, cp), lambda p, i: (0, 0)),      # gamma
                pl.BlockSpec((1, cp), lambda p, i: (0, 0)),      # beta
            ],
            # Output block stays at 0 through phase 0 (never flushed with
            # garbage), then walks the tiles in phase 1 -> one write per block.
            out_specs=pl.BlockSpec((tm, cp), lambda p, i: (i * p, 0)),
            scratch_shapes=[
                pltpu.VMEM((nt, tm, cp), jnp.float32),   # resident pre-BN y
                pltpu.VMEM((2, cp), jnp.float32),        # [sum, sum-sq]
                pltpu.VMEM((2, cp), jnp.float32),        # [scale, shift]
            ]),
        compiler_params=pltpu.CompilerParams(
            dimension_semantics=("arbitrary", "arbitrary"),
            vmem_limit_bytes=VMEM_LIMIT),
        cost_estimate=cost,
    )(patches, wmat, gamma, beta)


# ----------------------------------------------------------------------------
# im2col glue (XLA side)
# ----------------------------------------------------------------------------
def _im2col_bf16(x_nhwc, kh, kw, stride, padding, kpad):
    n, h, w, c = x_nhwc.shape
    ho = (h + 2 * padding - kh) // stride + 1
    wo = (w + 2 * padding - kw) // stride + 1
    x = x_nhwc.astype(jnp.bfloat16)
    if padding:
        x = jnp.pad(x, ((0, 0), (padding, padding), (padding, padding), (0, 0)))
    cols = [x[:, di:di + stride * ho:stride, dj:dj + stride * wo:stride, :]
            for di in range(kh) for dj in range(kw)]
    patches = jnp.stack(cols, axis=3).reshape(n * ho * wo, kh * kw * c)
    if kpad > kh * kw * c:
        patches = jnp.pad(patches, ((0, 0), (0, kpad - kh * kw * c)))
    return patches, ho, wo


# ----------------------------------------------------------------------------
# Parameters (PyTorch layout) and one-time fused / padded plan
# ----------------------------------------------------------------------------
def make_conv_params(key, cin, cout, k, bias=True):
    k1, k2, k3, k4 = jax.random.split(key, 4)
    w = 0.1 * jax.random.normal(k1, (cout, cin, k, k), jnp.float32)
    b = 0.1 * jax.random.normal(k2, (cout,), jnp.float32) if bias else None
    gamma = 1.0 + 0.1 * jax.random.normal(k3, (cout,), jnp.float32)
    beta = 0.1 * jax.random.normal(k4, (cout,), jnp.float32)
    return dict(w=w, b=b, gamma=gamma, beta=beta)


def init_csblock_params(key, in_channel, nf, nfp):
    keys = iter(jax.random.split(key, 16))
    p = {}
    p["img_e1_c1"] = make_conv_params(next(keys), in_channel[0], nf, 7)
    p["img_e1_c2"] = make_conv_params(next(keys), nf, nf * 2, 3)
    p["img_e2_c1"] = make_conv_params(next(keys), nf * 2, nf * 4, 3)
    for name, idx in (("bg", 1), ("seg", 2), ("mt", 3)):
        p[f"{name}_c1"] = make_conv_params(next(keys), in_channel[idx], nf, 7)
        p[f"{name}_c2"] = make_conv_params(next(keys), nf, nf * 4, 5)
    for name in ("comb_back", "comb_seg", "comb_mt"):
        p[name] = make_conv_params(next(keys), 2 * nf * 4, nfp, 1, bias=False)
    p["comb_all"] = make_conv_params(next(keys), nf * 4 + nfp * 3, nf * 4, 1, bias=False)
    return p


def _w_to_mat(w):
    # (Cout, Cin, kh, kw) -> (kh*kw*Cin, Cout), matching the im2col patch order.
    cout, cin, kh, kw = w.shape
    return jnp.transpose(w, (2, 3, 1, 0)).reshape(kh * kw * cin, cout)


def _block_diag_w(ws):
    kh, kw = ws[0].shape[2:]
    co = sum(w.shape[0] for w in ws)
    ci = sum(w.shape[1] for w in ws)
    out = jnp.zeros((co, ci, kh, kw), jnp.float32)
    r = c = 0
    for w in ws:
        out = out.at[r:r + w.shape[0], c:c + w.shape[1]].set(w)
        r += w.shape[0]
        c += w.shape[1]
    return out


def _combine3_w(ws, nf, nfp):
    # Each comb weight is (nfp, [img256(4nf) | X(4nf)], 1, 1); fuse into one
    # (3*nfp, 4*4nf) weight over the [img256|bg|seg|mt] 128-channel tensor.
    c4 = 4 * nf
    out = jnp.zeros((3 * nfp, 4 * c4), jnp.float32)
    for g, w in enumerate(ws):
        w2 = w[:, :, 0, 0]
        out = out.at[g * nfp:(g + 1) * nfp, :c4].set(w2[:, :c4])
        out = out.at[g * nfp:(g + 1) * nfp, (1 + g) * c4:(2 + g) * c4].set(w2[:, c4:])
    return out


def _pack_gemm(wmat, gamma, beta):
    k, cout = wmat.shape
    kpad, cpad = _round_up(k, LANE), _round_up(cout, LANE)
    return dict(
        wmat=jnp.pad(wmat, ((0, kpad - k), (0, cpad - cout))).astype(jnp.bfloat16),
        gamma=jnp.pad(gamma, (0, cpad - cout),
                      constant_values=1.0).reshape(1, cpad).astype(jnp.float32),
        beta=jnp.pad(beta, (0, cpad - cout)).reshape(1, cpad).astype(jnp.float32),
        kpad=kpad, cpad=cpad, cout=cout)


def build_csblock_plan(params, nf, nfp):
    # NOTE: conv biases are dropped — training-mode BN's batch-mean subtraction
    # cancels a per-channel bias exactly, so the forward output is identical.
    c4 = 4 * nf
    cat = lambda names, f: jnp.concatenate([params[n][f] for n in names])
    plan = {"nf": nf, "nfp": nfp}

    # Stem: block-diagonal fusion of the four 7x7 stride-1 first convs.
    stem = ("img_e1_c1", "bg_c1", "seg_c1", "mt_c1")
    plan["stem"] = _pack_gemm(_w_to_mat(_block_diag_w([params[n]["w"] for n in stem])),
                              cat(stem, "gamma"), cat(stem, "beta"))

    # img_encoder1 second conv (3x3 s2) -> img128 (returned).
    plan["img_e1_c2"] = _pack_gemm(_w_to_mat(params["img_e1_c2"]["w"]),
                                   params["img_e1_c2"]["gamma"],
                                   params["img_e1_c2"]["beta"])

    # enc2: img_encoder2 (3x3 s2) fused with bg/seg/mt second convs (5x5 s4).
    # Same output spatial grid -> block-structured GEMM whose output channels
    # are exactly [img256(32) | bg(32) | seg(32) | mt(32)] = 128 lanes.
    w_img = _w_to_mat(params["img_e2_c1"]["w"])                         # (144, 32)
    w_aux = _w_to_mat(_block_diag_w([params["bg_c2"]["w"],
                                     params["seg_c2"]["w"],
                                     params["mt_c2"]["w"]]))            # (600, 96)
    k_img, k_aux = _round_up(w_img.shape[0], LANE), _round_up(w_aux.shape[0], LANE)
    cpad = _round_up(w_img.shape[1] + w_aux.shape[1], LANE)             # 128
    wmat = jnp.zeros((k_img + k_aux, cpad), jnp.float32)
    wmat = wmat.at[:w_img.shape[0], :w_img.shape[1]].set(w_img)
    wmat = wmat.at[k_img:k_img + w_aux.shape[0],
                   w_img.shape[1]:w_img.shape[1] + w_aux.shape[1]].set(w_aux)
    enc2 = ("img_e2_c1", "bg_c2", "seg_c2", "mt_c2")
    g, b = cat(enc2, "gamma"), cat(enc2, "beta")
    plan["enc2"] = dict(
        wmat=wmat.astype(jnp.bfloat16),
        gamma=jnp.pad(g, (0, cpad - g.shape[0]),
                      constant_values=1.0).reshape(1, cpad).astype(jnp.float32),
        beta=jnp.pad(b, (0, cpad - b.shape[0])).reshape(1, cpad).astype(jnp.float32),
        k_img=k_img, k_aux=k_aux, cout=w_img.shape[1] + w_aux.shape[1])

    # comb3: comb_back/comb_seg/comb_mt (1x1) fused; reads the 128-lane feature
    # tensor directly (K = 128 exactly, no im2col, no cast).
    comb = ("comb_back", "comb_seg", "comb_mt")
    plan["comb3"] = _pack_gemm(_combine3_w([params[n]["w"] for n in comb], nf, nfp).T,
                               cat(comb, "gamma"), cat(comb, "beta"))

    # comb_all (1x1) over the lane-aligned concat [feat(128) | comb3(128 pad)].
    w = params["comb_all"]["w"][:, :, 0, 0]                             # (4nf, 4nf+3nfp)
    cout = w.shape[0]
    cpad_all = _round_up(cout, LANE)
    comb3_cpad = plan["comb3"]["cpad"]
    wmat = jnp.zeros((LANE + comb3_cpad, cpad_all), jnp.float32)
    wmat = wmat.at[:c4, :cout].set(w[:, :c4].T)                         # img256 slot
    for gi in range(3):                                                 # ibg/ise/imt slots
        wmat = wmat.at[LANE + gi * nfp:LANE + (gi + 1) * nfp, :cout].set(
            w[:, c4 + gi * nfp:c4 + (gi + 1) * nfp].T)
    plan["comb_all"] = dict(
        wmat=wmat.astype(jnp.bfloat16),
        gamma=jnp.pad(params["comb_all"]["gamma"], (0, cpad_all - cout),
                      constant_values=1.0).reshape(1, cpad_all).astype(jnp.float32),
        beta=jnp.pad(params["comb_all"]["beta"],
                     (0, cpad_all - cout)).reshape(1, cpad_all).astype(jnp.float32),
        cout=cout)
    return plan


# ----------------------------------------------------------------------------
# CSblock forward (5 fused Pallas calls)
# ----------------------------------------------------------------------------
def csblock_forward(plan, image, background, segmentation, motion):
    nf, nfp = plan["nf"], plan["nfp"]
    c4 = 4 * nf
    to_nhwc = lambda x: jnp.transpose(x, (0, 2, 3, 1))
    n = image.shape[0]

    # Stem: fused 7x7 s1 p3 first convs of all four branches (block-diagonal).
    x0 = jnp.concatenate([to_nhwc(image), to_nhwc(background),
                          to_nhwc(segmentation), to_nhwc(motion)], axis=-1)
    st = plan["stem"]
    p0, ho0, wo0 = _im2col_bf16(x0, 7, 7, 1, 3, st["kpad"])
    f1 = fused_conv_bn_relu(p0, st["wmat"], st["gamma"], st["beta"])    # (N*H*W,128) bf16
    f1 = f1.reshape(n, ho0, wo0, -1)
    img_f = f1[..., :nf]                                                # image features
    aux_f = f1[..., nf:c4]                                              # [bg|seg|mt]

    # img_encoder1 second conv (3x3 s2) -> img128 (returned in f32).
    l = plan["img_e1_c2"]
    p1, ho1, wo1 = _im2col_bf16(img_f, 3, 3, 2, 1, l["kpad"])
    img128 = fused_conv_bn_relu(p1, l["wmat"], l["gamma"], l["beta"],
                                out_dtype=jnp.float32)                  # (N*8*8,128) f32
    img128_nhwc = img128[:, :l["cout"]].reshape(n, ho1, wo1, l["cout"])

    # Fused img_encoder2 + bg/seg/mt second convs -> [img256|bg|seg|mt] (128 ch).
    e = plan["enc2"]
    p_img, ho2, wo2 = _im2col_bf16(img128_nhwc, 3, 3, 2, 1, e["k_img"])
    p_aux, _, _ = _im2col_bf16(aux_f, 5, 5, 4, 2, e["k_aux"])
    feat = fused_conv_bn_relu(jnp.concatenate([p_img, p_aux], axis=-1),
                              e["wmat"], e["gamma"], e["beta"])         # (N*4*4,128) bf16

    # Fused comb_back/comb_seg/comb_mt (1x1): consumes `feat` directly.
    c3 = plan["comb3"]
    comb3 = fused_conv_bn_relu(feat, c3["wmat"], c3["gamma"], c3["beta"])  # (N*4*4,128)

    # comb_all (1x1) over the lane-aligned [feat | comb3] concat.
    ca = plan["comb_all"]
    out = fused_conv_bn_relu(jnp.concatenate([feat, comb3], axis=-1),
                             ca["wmat"], ca["gamma"], ca["beta"],
                             out_dtype=jnp.float32)
    out_nhwc = out[:, :ca["cout"]].reshape(n, ho2, wo2, ca["cout"])

    return (jnp.transpose(img128_nhwc, (0, 3, 1, 2)),
            jnp.transpose(out_nhwc, (0, 3, 1, 2)))


# ----------------------------------------------------------------------------
# Driver
# ----------------------------------------------------------------------------
if __name__ == "__main__":
    key = jax.random.PRNGKey(0)
    k_params, k_img, k_bg, k_seg, k_mt = jax.random.split(key, 5)

    in_channel = [3, 3, 1, 2]
    nf, nfp = 8, 8
    N, H, W = 2, 16, 16

    params = init_csblock_params(k_params, in_channel, nf, nfp)
    plan = build_csblock_plan(params, nf, nfp)      # one-time layout / fusion prep

    image = jax.random.normal(k_img, (N, in_channel[0], H, W), jnp.float32)
    background = jax.random.normal(k_bg, (N, in_channel[1], H, W), jnp.float32)
    segmentation = jax.random.normal(k_seg, (N, in_channel[2], H, W), jnp.float32)
    motion = jax.random.normal(k_mt, (N, in_channel[3], H, W), jnp.float32)

    fwd = jax.jit(functools.partial(csblock_forward, plan))
    img128, out_feature = fwd(image, background, segmentation, motion)
    jax.block_until_ready((img128, out_feature))

    assert img128.shape == (N, nf * 2, H // 2, W // 2), img128.shape
    assert out_feature.shape == (N, nf * 4, H // 4, W // 4), out_feature.shape
    assert bool(jnp.all(jnp.isfinite(img128))) and bool(jnp.all(jnp.isfinite(out_feature)))

    print("KERNEL_OK")
</pallas_src>

<mosaic_0001>
module attributes {stable_mosaic.version = 11 : i64} {
  func.func @fused_conv_bn_relu_kernel(%arg0: i32, %arg1: i32, %arg2: memref<256x512xbf16, #tpu.memory_space<vmem>>, %arg3: memref<512x128xbf16, #tpu.memory_space<vmem>>, %arg4: memref<1x128xf32, #tpu.memory_space<vmem>>, %arg5: memref<1x128xf32, #tpu.memory_space<vmem>>, %arg6: memref<256x128xbf16, #tpu.memory_space<vmem>>, %arg7: memref<2x256x128xf32, #tpu.memory_space<vmem>>, %arg8: memref<2x128xf32, #tpu.memory_space<vmem>>, %arg9: memref<2x128xf32, #tpu.memory_space<vmem>>) attributes {dimension_semantics = [#tpu.dimension_semantics<arbitrary>, #tpu.dimension_semantics<arbitrary>], iteration_bounds = array<i64: 2, 2>, scalar_prefetch = 0 : i64, scratch_operands = 3 : i64, tpu.core_type = #tpu.core_type<tc>, window_params = [{transform_indices = @transform_0, window_bounds = array<i64: 256, 512>}, {pipeline_mode = #tpu.pipeline_mode<synchronous>, transform_indices = @transform_1, window_bounds = array<i64: 512, 128>}, {pipeline_mode = #tpu.pipeline_mode<synchronous>, transform_indices = @transform_2, window_bounds = array<i64: 1, 128>}, {pipeline_mode = #tpu.pipeline_mode<synchronous>, transform_indices = @transform_3, window_bounds = array<i64: 1, 128>}, {transform_indices = @transform_4, window_bounds = array<i64: 256, 128>}]} {
    %c0_i32 = arith.constant 0 : i32
    %0 = arith.cmpi eq, %arg0, %c0_i32 : i32
    %1 = arith.extui %0 : i1 to i32
    %c0_i32_0 = arith.constant 0 : i32
    %2 = arith.cmpi ne, %1, %c0_i32_0 : i32
    scf.if %2 {
      %c0 = arith.constant 0 : index
      %c0_2 = arith.constant 0 : index
      %6 = vector.load %arg2[%c0, %c0_2] : memref<256x512xbf16, #tpu.memory_space<vmem>>, vector<256x512xbf16>
      %c0_3 = arith.constant 0 : index
      %c0_4 = arith.constant 0 : index
      %7 = vector.load %arg3[%c0_3, %c0_4] : memref<512x128xbf16, #tpu.memory_space<vmem>>, vector<512x128xbf16>
      %cst = arith.constant dense<0.000000e+00> : vector<256x128xf32>
      %8 = tpu.matmul %6, %7, %cst {dimension_numbers = #tpu.dot_dimension_numbers<[1], [0], [0], [1], [0, 0, 1, 1], [], []>} : vector<256x512xbf16>, vector<512x128xbf16>, vector<256x128xf32> -> vector<256x128xf32>
      %9 = arith.index_cast %arg1 : i32 to index
      %c0_5 = arith.constant 0 : index
      %c0_6 = arith.constant 0 : index
      %10 = vector.load %arg7[%9, %c0_5, %c0_6] : memref<2x256x128xf32, #tpu.memory_space<vmem>>, vector<1x256x128xf32>
      %11 = vector.shape_cast %10 : vector<1x256x128xf32> to vector<256x128xf32>
      %12 = vector.shape_cast %8 : vector<256x128xf32> to vector<1x256x128xf32>
      tpu.vector_store %arg7[%9, %c0_5, %c0_6], %12 {strides = array<i32>} : memref<2x256x128xf32, #tpu.memory_space<vmem>>, vector<1x256x128xf32>,
      %c0_i32_7 = arith.constant 0 : i32
      %13 = arith.cmpi eq, %arg1, %c0_i32_7 : i32
      %14 = arith.extui %13 : i1 to i32
      %c0_i32_8 = arith.constant 0 : i32
      %15 = arith.cmpi ne, %14, %c0_i32_8 : i32
      scf.if %15 {
        %cst_18 = arith.constant 0.000000e+00 : f32
        %27 = vector.broadcast %cst_18 : f32 to vector<2x128xf32>
        %c0_19 = arith.constant 0 : index
        %c0_20 = arith.constant 0 : index
        %28 = vector.load %arg8[%c0_19, %c0_20] : memref<2x128xf32, #tpu.memory_space<vmem>>, vector<2x128xf32>
        tpu.vector_store %arg8[%c0_19, %c0_20], %27 {strides = array<i32>} : memref<2x128xf32, #tpu.memory_space<vmem>>, vector<2x128xf32>,
      } else {
      }
      %c0_9 = arith.constant 0 : index
      %c0_10 = arith.constant 0 : index
      %16 = vector.load %arg8[%c0_9, %c0_10] : memref<2x128xf32, #tpu.memory_space<vmem>>, vector<1x128xf32>
      %cst_11 = arith.constant dense<0.000000e+00> : vector<128xf32>
      %17 = vector.multi_reduction <add>, %8, %cst_11 [0] : vector<256x128xf32> to vector<128xf32>
      %18 = vector.shape_cast %17 : vector<128xf32> to vector<1x128xf32>
      %19 = arith.addf %16, %18 : vector<1x128xf32>
      %c0_12 = arith.constant 0 : index
      %c0_13 = arith.constant 0 : index
      %20 = vector.load %arg8[%c0_12, %c0_13] : memref<2x128xf32, #tpu.memory_space<vmem>>, vector<1x128xf32>
      tpu.vector_store %arg8[%c0_12, %c0_13], %19 {strides = array<i32>} : memref<2x128xf32, #tpu.memory_space<vmem>>, vector<1x128xf32>,
      %c1 = arith.constant 1 : index
      %c0_14 = arith.constant 0 : index
      %21 = vector.load %arg8[%c1, %c0_14] : memref<2x128xf32, #tpu.memory_space<vmem>>, vector<1x128xf32>
      %22 = arith.mulf %8, %8 : vector<256x128xf32>
      %cst_15 = arith.constant dense<0.000000e+00> : vector<128xf32>
      %23 = vector.multi_reduction <add>, %22, %cst_15 [0] : vector<256x128xf32> to vector<128xf32>
      %24 = vector.shape_cast %23 : vector<128xf32> to vector<1x128xf32>
      %25 = arith.addf %21, %24 : vector<1x128xf32>
      %c1_16 = arith.constant 1 : index
      %c0_17 = arith.constant 0 : index
      %26 = vector.load %arg8[%c1_16, %c0_17] : memref<2x128xf32, #tpu.memory_space<vmem>>, vector<1x128xf32>
      tpu.vector_store %arg8[%c1_16, %c0_17], %25 {strides = array<i32>} : memref<2x128xf32, #tpu.memory_space<vmem>>, vector<1x128xf32>,
    } else {
    }
    %c1_i32 = arith.constant 1 : i32
    %3 = arith.cmpi eq, %arg0, %c1_i32 : i32
    %4 = arith.extui %3 : i1 to i32
    %c0_i32_1 = arith.constant 0 : i32
    %5 = arith.cmpi ne, %4, %c0_i32_1 : i32
    scf.if %5 {
      %c0_i32_2 = arith.constant 0 : i32
      %6 = arith.cmpi eq, %arg1, %c0_i32_2 : i32
      %7 = arith.extui %6 : i1 to i32
      %c0_i32_3 = arith.constant 0 : i32
      %8 = arith.cmpi ne, %7, %c0_i32_3 : i32
      scf.if %8 {
        %c0_10 = arith.constant 0 : index
        %c0_11 = arith.constant 0 : index
        %22 = vector.load %arg8[%c0_10, %c0_11] : memref<2x128xf32, #tpu.memory_space<vmem>>, vector<1x128xf32>
        %cst_12 = arith.constant 0.001953125 : f32
        %23 = vector.broadcast %cst_12 : f32 to vector<1x128xf32>
        %24 = arith.mulf %22, %23 : vector<1x128xf32>
        %c1_13 = arith.constant 1 : index
        %c0_14 = arith.constant 0 : index
        %25 = vector.load %arg8[%c1_13, %c0_14] : memref<2x128xf32, #tpu.memory_space<vmem>>, vector<1x128xf32>
        %cst_15 = arith.constant 0.001953125 : f32
        %26 = vector.broadcast %cst_15 : f32 to vector<1x128xf32>
        %27 = arith.mulf %25, %26 : vector<1x128xf32>
        %28 = arith.mulf %24, %24 : vector<1x128xf32>
        %29 = arith.subf %27, %28 : vector<1x128xf32>
        %cst_16 = arith.constant 0.000000e+00 : f32
        %30 = vector.broadcast %cst_16 : f32 to vector<1x128xf32>
        %31 = arith.maximumf %29, %30 : vector<1x128xf32>
        %cst_17 = arith.constant 9.99999974E-6 : f32
        %32 = vector.broadcast %cst_17 : f32 to vector<1x128xf32>
        %33 = arith.addf %31, %32 : vector<1x128xf32>
        %34 = math.rsqrt %33 : vector<1x128xf32>
        %c0_18 = arith.constant 0 : index
        %c0_19 = arith.constant 0 : index
        %35 = vector.load %arg4[%c0_18, %c0_19] : memref<1x128xf32, #tpu.memory_space<vmem>>, vector<1x128xf32>
        %36 = arith.mulf %34, %35 : vector<1x128xf32>
        %c0_20 = arith.constant 0 : index
        %c0_21 = arith.constant 0 : index
        %37 = vector.load %arg9[%c0_20, %c0_21] : memref<2x128xf32, #tpu.memory_space<vmem>>, vector<1x128xf32>
        tpu.vector_store %arg9[%c0_20, %c0_21], %36 {strides = array<i32>} : memref<2x128xf32, #tpu.memory_space<vmem>>, vector<1x128xf32>,
        %c0_22 = arith.constant 0 : index
        %c0_23 = arith.constant 0 : index
        %38 = vector.load %arg5[%c0_22, %c0_23] : memref<1x128xf32, #tpu.memory_space<vmem>>, vector<1x128xf32>
        %39 = arith.mulf %24, %36 : vector<1x128xf32>
        %40 = arith.subf %38, %39 : vector<1x128xf32>
        %c1_24 = arith.constant 1 : index
        %c0_25 = arith.constant 0 : index
        %41 = vector.load %arg9[%c1_24, %c0_25] : memref<2x128xf32, #tpu.memory_space<vmem>>, vector<1x128xf32>
        tpu.vector_store %arg9[%c1_24, %c0_25], %40 {strides = array<i32>} : memref<2x128xf32, #tpu.memory_space<vmem>>, vector<1x128xf32>,
      } else {
      }
      %9 = arith.index_cast %arg1 : i32 to index
      %c0 = arith.constant 0 : index
      %c0_4 = arith.constant 0 : index
      %10 = vector.load %arg7[%9, %c0, %c0_4] : memref<2x256x128xf32, #tpu.memory_space<vmem>>, vector<1x256x128xf32>
      %11 = vector.shape_cast %10 : vector<1x256x128xf32> to vector<256x128xf32>
      %c0_5 = arith.constant 0 : index
      %c0_6 = arith.constant 0 : index
      %12 = vector.load %arg9[%c0_5, %c0_6] : memref<2x128xf32, #tpu.memory_space<vmem>>, vector<1x128xf32>
      %13 = vector.broadcast %12 : vector<1x128xf32> to vector<256x128xf32>
      %14 = arith.mulf %11, %13 : vector<256x128xf32>
      %c1 = arith.constant 1 : index
      %c0_7 = arith.constant 0 : index
      %15 = vector.load %arg9[%c1, %c0_7] : memref<2x128xf32, #tpu.memory_space<vmem>>, vector<1x128xf32>
      %16 = vector.broadcast %15 : vector<1x128xf32> to vector<256x128xf32>
      %17 = arith.addf %14, %16 : vector<256x128xf32>
      %cst = arith.constant 0.000000e+00 : f32
      %18 = vector.broadcast %cst : f32 to vector<256x128xf32>
      %19 = arith.maximumf %17, %18 : vector<256x128xf32>
      %20 = arith.truncf %19 : vector<256x128xf32> to vector<256x128xbf16>
      %c0_8 = arith.constant 0 : index
      %c0_9 = arith.constant 0 : index
      %21 = vector.load %arg6[%c0_8, %c0_9] : memref<256x128xbf16, #tpu.memory_space<vmem>>, vector<256x128xbf16>
      tpu.vector_store %arg6[%c0_8, %c0_9], %20 {strides = array<i32>} : memref<256x128xbf16, #tpu.memory_space<vmem>>, vector<256x128xbf16>,
    } else {
    }
    return
  }
  func.func @transform_0(%arg0: i32, %arg1: i32) -> (i32, i32) {
    %c1_i32 = arith.constant 1 : i32
    %0 = arith.subi %c1_i32, %arg0 : i32
    %1 = arith.muli %arg1, %0 : i32
    %c1_i32_0 = arith.constant 1 : i32
    %2 = arith.muli %c1_i32_0, %arg0 : i32
    %3 = arith.addi %1, %2 : i32
    %c0_i32 = arith.constant 0 : i32
    %c0_i32_1 = arith.constant 0 : i32
    return %3, %c0_i32 : i32, i32
  }
  func.func @transform_1(%arg0: i32, %arg1: i32) -> (i32, i32) {
    %c0_i32 = arith.constant 0 : i32
    %c0_i32_0 = arith.constant 0 : i32
    %c0_i32_1 = arith.constant 0 : i32
    return %c0_i32, %c0_i32_0 : i32, i32
  }
  func.func @transform_2(%arg0: i32, %arg1: i32) -> (i32, i32) {
    %c0_i32 = arith.constant 0 : i32
    %c0_i32_0 = arith.constant 0 : i32
    %c0_i32_1 = arith.constant 0 : i32
    return %c0_i32, %c0_i32_0 : i32, i32
  }
  func.func @transform_3(%arg0: i32, %arg1: i32) -> (i32, i32) {
    %c0_i32 = arith.constant 0 : i32
    %c0_i32_0 = arith.constant 0 : i32
    %c0_i32_1 = arith.constant 0 : i32
    return %c0_i32, %c0_i32_0 : i32, i32
  }
  func.func @transform_4(%arg0: i32, %arg1: i32) -> (i32, i32) {
    %0 = arith.muli %arg1, %arg0 : i32
    %c0_i32 = arith.constant 0 : i32
    %c0_i32_0 = arith.constant 0 : i32
    return %0, %c0_i32 : i32, i32
  }
}

module attributes {stable_mosaic.version = 11 : i64} {
  func.func @fused_conv_bn_relu_kernel(%arg0: i32, %arg1: i32, %arg2: memref<64x128xbf16, #tpu.memory_space<vmem>>, %arg3: memref<128x128xbf16, #tpu.memory_space<vmem>>, %arg4: memref<1x128xf32, #tpu.memory_space<vmem>>, %arg5: memref<1x128xf32, #tpu.memory_space<vmem>>, %arg6: memref<64x128xf32, #tpu.memory_space<vmem>>, %arg7: memref<2x64x128xf32, #tpu.memory_space<vmem>>, %arg8: memref<2x128xf32, #tpu.memory_space<vmem>>, %arg9: memref<2x128xf32, #tpu.memory_space<vmem>>) attributes {dimension_semantics = [#tpu.dimension_semantics<arbitrary>, #tpu.dimension_semantics<arbitrary>], iteration_bounds = array<i64: 2, 2>, scalar_prefetch = 0 : i64, scratch_operands = 3 : i64, tpu.core_type = #tpu.core_type<tc>, window_params = [{transform_indices = @transform_0, window_bounds = array<i64: 64, 128>}, {pipeline_mode = #tpu.pipeline_mode<synchronous>, transform_indices = @transform_1, window_bounds = array<i64: 128, 128>}, {pipeline_mode = #tpu.pipeline_mode<synchronous>, transform_indices = @transform_2, window_bounds = array<i64: 1, 128>}, {pipeline_mode = #tpu.pipeline_mode<synchronous>, transform_indices = @transform_3, window_bounds = array<i64: 1, 128>}, {transform_indices = @transform_4, window_bounds = array<i64: 64, 128>}]} {
    %c0_i32 = arith.constant 0 : i32
    %0 = arith.cmpi eq, %arg0, %c0_i32 : i32
    %1 = arith.extui %0 : i1 to i32
    %c0_i32_0 = arith.constant 0 : i32
    %2 = arith.cmpi ne, %1, %c0_i32_0 : i32
    scf.if %2 {
      %c0 = arith.constant 0 : index
      %c0_2 = arith.constant 0 : index
      %6 = vector.load %arg2[%c0, %c0_2] : memref<64x128xbf16, #tpu.memory_space<vmem>>, vector<64x128xbf16>
      %c0_3 = arith.constant 0 : index
      %c0_4 = arith.constant 0 : index
      %7 = vector.load %arg3[%c0_3, %c0_4] : memref<128x128xbf16, #tpu.memory_space<vmem>>, vector<128x128xbf16>
      %cst = arith.constant dense<0.000000e+00> : vector<64x128xf32>
      %8 = tpu.matmul %6, %7, %cst {dimension_numbers = #tpu.dot_dimension_numbers<[1], [0], [0], [1], [0, 0, 1, 1], [], []>} : vector<64x128xbf16>, vector<128x128xbf16>, vector<64x128xf32> -> vector<64x128xf32>
      %9 = arith.index_cast %arg1 : i32 to index
      %c0_5 = arith.constant 0 : index
      %c0_6 = arith.constant 0 : index
      %10 = vector.load %arg7[%9, %c0_5, %c0_6] : memref<2x64x128xf32, #tpu.memory_space<vmem>>, vector<1x64x128xf32>
      %11 = vector.shape_cast %10 : vector<1x64x128xf32> to vector<64x128xf32>
      %12 = vector.shape_cast %8 : vector<64x128xf32> to vector<1x64x128xf32>
      tpu.vector_store %arg7[%9, %c0_5, %c0_6], %12 {strides = array<i32>} : memref<2x64x128xf32, #tpu.memory_space<vmem>>, vector<1x64x128xf32>,
      %c0_i32_7 = arith.constant 0 : i32
      %13 = arith.cmpi eq, %arg1, %c0_i32_7 : i32
      %14 = arith.extui %13 : i1 to i32
      %c0_i32_8 = arith.constant 0 : i32
      %15 = arith.cmpi ne, %14, %c0_i32_8 : i32
      scf.if %15 {
        %cst_18 = arith.constant 0.000000e+00 : f32
        %27 = vector.broadcast %cst_18 : f32 to vector<2x128xf32>
        %c0_19 = arith.constant 0 : index
        %c0_20 = arith.constant 0 : index
        %28 = vector.load %arg8[%c0_19, %c0_20] : memref<2x128xf32, #tpu.memory_space<vmem>>, vector<2x128xf32>
        tpu.vector_store %arg8[%c0_19, %c0_20], %27 {strides = array<i32>} : memref<2x128xf32, #tpu.memory_space<vmem>>, vector<2x128xf32>,
      } else {
      }
      %c0_9 = arith.constant 0 : index
      %c0_10 = arith.constant 0 : index
      %16 = vector.load %arg8[%c0_9, %c0_10] : memref<2x128xf32, #tpu.memory_space<vmem>>, vector<1x128xf32>
      %cst_11 = arith.constant dense<0.000000e+00> : vector<128xf32>
      %17 = vector.multi_reduction <add>, %8, %cst_11 [0] : vector<64x128xf32> to vector<128xf32>
      %18 = vector.shape_cast %17 : vector<128xf32> to vector<1x128xf32>
      %19 = arith.addf %16, %18 : vector<1x128xf32>
      %c0_12 = arith.constant 0 : index
      %c0_13 = arith.constant 0 : index
      %20 = vector.load %arg8[%c0_12, %c0_13] : memref<2x128xf32, #tpu.memory_space<vmem>>, vector<1x128xf32>
      tpu.vector_store %arg8[%c0_12, %c0_13], %19 {strides = array<i32>} : memref<2x128xf32, #tpu.memory_space<vmem>>, vector<1x128xf32>,
      %c1 = arith.constant 1 : index
      %c0_14 = arith.constant 0 : index
      %21 = vector.load %arg8[%c1, %c0_14] : memref<2x128xf32, #tpu.memory_space<vmem>>, vector<1x128xf32>
      %22 = arith.mulf %8, %8 : vector<64x128xf32>
      %cst_15 = arith.constant dense<0.000000e+00> : vector<128xf32>
      %23 = vector.multi_reduction <add>, %22, %cst_15 [0] : vector<64x128xf32> to vector<128xf32>
      %24 = vector.shape_cast %23 : vector<128xf32> to vector<1x128xf32>
      %25 = arith.addf %21, %24 : vector<1x128xf32>
      %c1_16 = arith.constant 1 : index
      %c0_17 = arith.constant 0 : index
      %26 = vector.load %arg8[%c1_16, %c0_17] : memref<2x128xf32, #tpu.memory_space<vmem>>, vector<1x128xf32>
      tpu.vector_store %arg8[%c1_16, %c0_17], %25 {strides = array<i32>} : memref<2x128xf32, #tpu.memory_space<vmem>>, vector<1x128xf32>,
    } else {
    }
    %c1_i32 = arith.constant 1 : i32
    %3 = arith.cmpi eq, %arg0, %c1_i32 : i32
    %4 = arith.extui %3 : i1 to i32
    %c0_i32_1 = arith.constant 0 : i32
    %5 = arith.cmpi ne, %4, %c0_i32_1 : i32
    scf.if %5 {
      %c0_i32_2 = arith.constant 0 : i32
      %6 = arith.cmpi eq, %arg1, %c0_i32_2 : i32
      %7 = arith.extui %6 : i1 to i32
      %c0_i32_3 = arith.constant 0 : i32
      %8 = arith.cmpi ne, %7, %c0_i32_3 : i32
      scf.if %8 {
        %c0_10 = arith.constant 0 : index
        %c0_11 = arith.constant 0 : index
        %21 = vector.load %arg8[%c0_10, %c0_11] : memref<2x128xf32, #tpu.memory_space<vmem>>, vector<1x128xf32>
        %cst_12 = arith.constant 7.812500e-03 : f32
        %22 = vector.broadcast %cst_12 : f32 to vector<1x128xf32>
        %23 = arith.mulf %21, %22 : vector<1x128xf32>
        %c1_13 = arith.constant 1 : index
        %c0_14 = arith.constant 0 : index
        %24 = vector.load %arg8[%c1_13, %c0_14] : memref<2x128xf32, #tpu.memory_space<vmem>>, vector<1x128xf32>
        %cst_15 = arith.constant 7.812500e-03 : f32
        %25 = vector.broadcast %cst_15 : f32 to vector<1x128xf32>
        %26 = arith.mulf %24, %25 : vector<1x128xf32>
        %27 = arith.mulf %23, %23 : vector<1x128xf32>
        %28 = arith.subf %26, %27 : vector<1x128xf32>
        %cst_16 = arith.constant 0.000000e+00 : f32
        %29 = vector.broadcast %cst_16 : f32 to vector<1x128xf32>
        %30 = arith.maximumf %28, %29 : vector<1x128xf32>
        %cst_17 = arith.constant 9.99999974E-6 : f32
        %31 = vector.broadcast %cst_17 : f32 to vector<1x128xf32>
        %32 = arith.addf %30, %31 : vector<1x128xf32>
        %33 = math.rsqrt %32 : vector<1x128xf32>
        %c0_18 = arith.constant 0 : index
        %c0_19 = arith.constant 0 : index
        %34 = vector.load %arg4[%c0_18, %c0_19] : memref<1x128xf32, #tpu.memory_space<vmem>>, vector<1x128xf32>
        %35 = arith.mulf %33, %34 : vector<1x128xf32>
        %c0_20 = arith.constant 0 : index
        %c0_21 = arith.constant 0 : index
        %36 = vector.load %arg9[%c0_20, %c0_21] : memref<2x128xf32, #tpu.memory_space<vmem>>, vector<1x128xf32>
        tpu.vector_store %arg9[%c0_20, %c0_21], %35 {strides = array<i32>} : memref<2x128xf32, #tpu.memory_space<vmem>>, vector<1x128xf32>,
        %c0_22 = arith.constant 0 : index
        %c0_23 = arith.constant 0 : index
        %37 = vector.load %arg5[%c0_22, %c0_23] : memref<1x128xf32, #tpu.memory_space<vmem>>, vector<1x128xf32>
        %38 = arith.mulf %23, %35 : vector<1x128xf32>
        %39 = arith.subf %37, %38 : vector<1x128xf32>
        %c1_24 = arith.constant 1 : index
        %c0_25 = arith.constant 0 : index
        %40 = vector.load %arg9[%c1_24, %c0_25] : memref<2x128xf32, #tpu.memory_space<vmem>>, vector<1x128xf32>
        tpu.vector_store %arg9[%c1_24, %c0_25], %39 {strides = array<i32>} : memref<2x128xf32, #tpu.memory_space<vmem>>, vector<1x128xf32>,
      } else {
      }
      %9 = arith.index_cast %arg1 : i32 to index
      %c0 = arith.constant 0 : index
      %c0_4 = arith.constant 0 : index
      %10 = vector.load %arg7[%9, %c0, %c0_4] : memref<2x64x128xf32, #tpu.memory_space<vmem>>, vector<1x64x128xf32>
      %11 = vector.shape_cast %10 : vector<1x64x128xf32> to vector<64x128xf32>
      %c0_5 = arith.constant 0 : index
      %c0_6 = arith.constant 0 : index
      %12 = vector.load %arg9[%c0_5, %c0_6] : memref<2x128xf32, #tpu.memory_space<vmem>>, vector<1x128xf32>
      %13 = vector.broadcast %12 : vector<1x128xf32> to vector<64x128xf32>
      %14 = arith.mulf %11, %13 : vector<64x128xf32>
      %c1 = arith.constant 1 : index
      %c0_7 = arith.constant 0 : index
      %15 = vector.load %arg9[%c1, %c0_7] : memref<2x128xf32, #tpu.memory_space<vmem>>, vector<1x128xf32>
      %16 = vector.broadcast %15 : vector<1x128xf32> to vector<64x128xf32>
      %17 = arith.addf %14, %16 : vector<64x128xf32>
      %cst = arith.constant 0.000000e+00 : f32
      %18 = vector.broadcast %cst : f32 to vector<64x128xf32>
      %19 = arith.maximumf %17, %18 : vector<64x128xf32>
      %c0_8 = arith.constant 0 : index
      %c0_9 = arith.constant 0 : index
      %20 = vector.load %arg6[%c0_8, %c0_9] : memref<64x128xf32, #tpu.memory_space<vmem>>, vector<64x128xf32>
      tpu.vector_store %arg6[%c0_8, %c0_9], %19 {strides = array<i32>} : memref<64x128xf32, #tpu.memory_space<vmem>>, vector<64x128xf32>,
    } else {
    }
    return
  }
  func.func @transform_0(%arg0: i32, %arg1: i32) -> (i32, i32) {
    %c1_i32 = arith.constant 1 : i32
    %0 = arith.subi %c1_i32, %arg0 : i32
    %1 = arith.muli %arg1, %0 : i32
    %c1_i32_0 = arith.constant 1 : i32
    %2 = arith.muli %c1_i32_0, %arg0 : i32
    %3 = arith.addi %1, %2 : i32
    %c0_i32 = arith.constant 0 : i32
    %c0_i32_1 = arith.constant 0 : i32
    return %3, %c0_i32 : i32, i32
  }
  func.func @transform_1(%arg0: i32, %arg1: i32) -> (i32, i32) {
    %c0_i32 = arith.constant 0 : i32
    %c0_i32_0 = arith.constant 0 : i32
    %c0_i32_1 = arith.constant 0 : i32
    return %c0_i32, %c0_i32_0 : i32, i32
  }
  func.func @transform_2(%arg0: i32, %arg1: i32) -> (i32, i32) {
    %c0_i32 = arith.constant 0 : i32
    %c0_i32_0 = arith.constant 0 : i32
    %c0_i32_1 = arith.constant 0 : i32
    return %c0_i32, %c0_i32_0 : i32, i32
  }
  func.func @transform_3(%arg0: i32, %arg1: i32) -> (i32, i32) {
    %c0_i32 = arith.constant 0 : i32
    %c0_i32_0 = arith.constant 0 : i32
    %c0_i32_1 = arith.constant 0 : i32
    return %c0_i32, %c0_i32_0 : i32, i32
  }
  func.func @transform_4(%arg0: i32, %arg1: i32) -> (i32, i32) {
    %0 = arith.muli %arg1, %arg0 : i32
    %c0_i32 = arith.constant 0 : i32
    %c0_i32_0 = arith.constant 0 : i32
    return %0, %c0_i32 : i32, i32
  }
}

module attributes {stable_mosaic.version = 11 : i64} {
  func.func @fused_conv_bn_relu_kernel(%arg0: i32, %arg1: i32, %arg2: memref<16x896xbf16, #tpu.memory_space<vmem>>, %arg3: memref<896x128xbf16, #tpu.memory_space<vmem>>, %arg4: memref<1x128xf32, #tpu.memory_space<vmem>>, %arg5: memref<1x128xf32, #tpu.memory_space<vmem>>, %arg6: memref<16x128xbf16, #tpu.memory_space<vmem>>, %arg7: memref<2x16x128xf32, #tpu.memory_space<vmem>>, %arg8: memref<2x128xf32, #tpu.memory_space<vmem>>, %arg9: memref<2x128xf32, #tpu.memory_space<vmem>>) attributes {dimension_semantics = [#tpu.dimension_semantics<arbitrary>, #tpu.dimension_semantics<arbitrary>], iteration_bounds = array<i64: 2, 2>, scalar_prefetch = 0 : i64, scratch_operands = 3 : i64, tpu.core_type = #tpu.core_type<tc>, window_params = [{transform_indices = @transform_0, window_bounds = array<i64: 16, 896>}, {pipeline_mode = #tpu.pipeline_mode<synchronous>, transform_indices = @transform_1, window_bounds = array<i64: 896, 128>}, {pipeline_mode = #tpu.pipeline_mode<synchronous>, transform_indices = @transform_2, window_bounds = array<i64: 1, 128>}, {pipeline_mode = #tpu.pipeline_mode<synchronous>, transform_indices = @transform_3, window_bounds = array<i64: 1, 128>}, {transform_indices = @transform_4, window_bounds = array<i64: 16, 128>}]} {
    %c0_i32 = arith.constant 0 : i32
    %0 = arith.cmpi eq, %arg0, %c0_i32 : i32
    %1 = arith.extui %0 : i1 to i32
    %c0_i32_0 = arith.constant 0 : i32
    %2 = arith.cmpi ne, %1, %c0_i32_0 : i32
    scf.if %2 {
      %c0 = arith.constant 0 : index
      %c0_2 = arith.constant 0 : index
      %6 = vector.load %arg2[%c0, %c0_2] : memref<16x896xbf16, #tpu.memory_space<vmem>>, vector<16x896xbf16>
      %c0_3 = arith.constant 0 : index
      %c0_4 = arith.constant 0 : index
      %7 = vector.load %arg3[%c0_3, %c0_4] : memref<896x128xbf16, #tpu.memory_space<vmem>>, vector<896x128xbf16>
      %cst = arith.constant dense<0.000000e+00> : vector<16x128xf32>
      %8 = tpu.matmul %6, %7, %cst {dimension_numbers = #tpu.dot_dimension_numbers<[1], [0], [0], [1], [0, 0, 1, 1], [], []>} : vector<16x896xbf16>, vector<896x128xbf16>, vector<16x128xf32> -> vector<16x128xf32>
      %9 = arith.index_cast %arg1 : i32 to index
      %c0_5 = arith.constant 0 : index
      %c0_6 = arith.constant 0 : index
      %10 = vector.load %arg7[%9, %c0_5, %c0_6] : memref<2x16x128xf32, #tpu.memory_space<vmem>>, vector<1x16x128xf32>
      %11 = vector.shape_cast %10 : vector<1x16x128xf32> to vector<16x128xf32>
      %12 = vector.shape_cast %8 : vector<16x128xf32> to vector<1x16x128xf32>
      tpu.vector_store %arg7[%9, %c0_5, %c0_6], %12 {strides = array<i32>} : memref<2x16x128xf32, #tpu.memory_space<vmem>>, vector<1x16x128xf32>,
      %c0_i32_7 = arith.constant 0 : i32
      %13 = arith.cmpi eq, %arg1, %c0_i32_7 : i32
      %14 = arith.extui %13 : i1 to i32
      %c0_i32_8 = arith.constant 0 : i32
      %15 = arith.cmpi ne, %14, %c0_i32_8 : i32
      scf.if %15 {
        %cst_18 = arith.constant 0.000000e+00 : f32
        %27 = vector.broadcast %cst_18 : f32 to vector<2x128xf32>
        %c0_19 = arith.constant 0 : index
        %c0_20 = arith.constant 0 : index
        %28 = vector.load %arg8[%c0_19, %c0_20] : memref<2x128xf32, #tpu.memory_space<vmem>>, vector<2x128xf32>
        tpu.vector_store %arg8[%c0_19, %c0_20], %27 {strides = array<i32>} : memref<2x128xf32, #tpu.memory_space<vmem>>, vector<2x128xf32>,
      } else {
      }
      %c0_9 = arith.constant 0 : index
      %c0_10 = arith.constant 0 : index
      %16 = vector.load %arg8[%c0_9, %c0_10] : memref<2x128xf32, #tpu.memory_space<vmem>>, vector<1x128xf32>
      %cst_11 = arith.constant dense<0.000000e+00> : vector<128xf32>
      %17 = vector.multi_reduction <add>, %8, %cst_11 [0] : vector<16x128xf32> to vector<128xf32>
      %18 = vector.shape_cast %17 : vector<128xf32> to vector<1x128xf32>
      %19 = arith.addf %16, %18 : vector<1x128xf32>
      %c0_12 = arith.constant 0 : index
      %c0_13 = arith.constant 0 : index
      %20 = vector.load %arg8[%c0_12, %c0_13] : memref<2x128xf32, #tpu.memory_space<vmem>>, vector<1x128xf32>
      tpu.vector_store %arg8[%c0_12, %c0_13], %19 {strides = array<i32>} : memref<2x128xf32, #tpu.memory_space<vmem>>, vector<1x128xf32>,
      %c1 = arith.constant 1 : index
      %c0_14 = arith.constant 0 : index
      %21 = vector.load %arg8[%c1, %c0_14] : memref<2x128xf32, #tpu.memory_space<vmem>>, vector<1x128xf32>
      %22 = arith.mulf %8, %8 : vector<16x128xf32>
      %cst_15 = arith.constant dense<0.000000e+00> : vector<128xf32>
      %23 = vector.multi_reduction <add>, %22, %cst_15 [0] : vector<16x128xf32> to vector<128xf32>
      %24 = vector.shape_cast %23 : vector<128xf32> to vector<1x128xf32>
      %25 = arith.addf %21, %24 : vector<1x128xf32>
      %c1_16 = arith.constant 1 : index
      %c0_17 = arith.constant 0 : index
      %26 = vector.load %arg8[%c1_16, %c0_17] : memref<2x128xf32, #tpu.memory_space<vmem>>, vector<1x128xf32>
      tpu.vector_store %arg8[%c1_16, %c0_17], %25 {strides = array<i32>} : memref<2x128xf32, #tpu.memory_space<vmem>>, vector<1x128xf32>,
    } else {
    }
    %c1_i32 = arith.constant 1 : i32
    %3 = arith.cmpi eq, %arg0, %c1_i32 : i32
    %4 = arith.extui %3 : i1 to i32
    %c0_i32_1 = arith.constant 0 : i32
    %5 = arith.cmpi ne, %4, %c0_i32_1 : i32
    scf.if %5 {
      %c0_i32_2 = arith.constant 0 : i32
      %6 = arith.cmpi eq, %arg1, %c0_i32_2 : i32
      %7 = arith.extui %6 : i1 to i32
      %c0_i32_3 = arith.constant 0 : i32
      %8 = arith.cmpi ne, %7, %c0_i32_3 : i32
      scf.if %8 {
        %c0_10 = arith.constant 0 : index
        %c0_11 = arith.constant 0 : index
        %22 = vector.load %arg8[%c0_10, %c0_11] : memref<2x128xf32, #tpu.memory_space<vmem>>, vector<1x128xf32>
        %cst_12 = arith.constant 3.125000e-02 : f32
        %23 = vector.broadcast %cst_12 : f32 to vector<1x128xf32>
        %24 = arith.mulf %22, %23 : vector<1x128xf32>
        %c1_13 = arith.constant 1 : index
        %c0_14 = arith.constant 0 : index
        %25 = vector.load %arg8[%c1_13, %c0_14] : memref<2x128xf32, #tpu.memory_space<vmem>>, vector<1x128xf32>
        %cst_15 = arith.constant 3.125000e-02 : f32
        %26 = vector.broadcast %cst_15 : f32 to vector<1x128xf32>
        %27 = arith.mulf %25, %26 : vector<1x128xf32>
        %28 = arith.mulf %24, %24 : vector<1x128xf32>
        %29 = arith.subf %27, %28 : vector<1x128xf32>
        %cst_16 = arith.constant 0.000000e+00 : f32
        %30 = vector.broadcast %cst_16 : f32 to vector<1x128xf32>
        %31 = arith.maximumf %29, %30 : vector<1x128xf32>
        %cst_17 = arith.constant 9.99999974E-6 : f32
        %32 = vector.broadcast %cst_17 : f32 to vector<1x128xf32>
        %33 = arith.addf %31, %32 : vector<1x128xf32>
        %34 = math.rsqrt %33 : vector<1x128xf32>
        %c0_18 = arith.constant 0 : index
        %c0_19 = arith.constant 0 : index
        %35 = vector.load %arg4[%c0_18, %c0_19] : memref<1x128xf32, #tpu.memory_space<vmem>>, vector<1x128xf32>
        %36 = arith.mulf %34, %35 : vector<1x128xf32>
        %c0_20 = arith.constant 0 : index
        %c0_21 = arith.constant 0 : index
        %37 = vector.load %arg9[%c0_20, %c0_21] : memref<2x128xf32, #tpu.memory_space<vmem>>, vector<1x128xf32>
        tpu.vector_store %arg9[%c0_20, %c0_21], %36 {strides = array<i32>} : memref<2x128xf32, #tpu.memory_space<vmem>>, vector<1x128xf32>,
        %c0_22 = arith.constant 0 : index
        %c0_23 = arith.constant 0 : index
        %38 = vector.load %arg5[%c0_22, %c0_23] : memref<1x128xf32, #tpu.memory_space<vmem>>, vector<1x128xf32>
        %39 = arith.mulf %24, %36 : vector<1x128xf32>
        %40 = arith.subf %38, %39 : vector<1x128xf32>
        %c1_24 = arith.constant 1 : index
        %c0_25 = arith.constant 0 : index
        %41 = vector.load %arg9[%c1_24, %c0_25] : memref<2x128xf32, #tpu.memory_space<vmem>>, vector<1x128xf32>
        tpu.vector_store %arg9[%c1_24, %c0_25], %40 {strides = array<i32>} : memref<2x128xf32, #tpu.memory_space<vmem>>, vector<1x128xf32>,
      } else {
      }
      %9 = arith.index_cast %arg1 : i32 to index
      %c0 = arith.constant 0 : index
      %c0_4 = arith.constant 0 : index
      %10 = vector.load %arg7[%9, %c0, %c0_4] : memref<2x16x128xf32, #tpu.memory_space<vmem>>, vector<1x16x128xf32>
      %11 = vector.shape_cast %10 : vector<1x16x128xf32> to vector<16x128xf32>
      %c0_5 = arith.constant 0 : index
      %c0_6 = arith.constant 0 : index
      %12 = vector.load %arg9[%c0_5, %c0_6] : memref<2x128xf32, #tpu.memory_space<vmem>>, vector<1x128xf32>
      %13 = vector.broadcast %12 : vector<1x128xf32> to vector<16x128xf32>
      %14 = arith.mulf %11, %13 : vector<16x128xf32>
      %c1 = arith.constant 1 : index
      %c0_7 = arith.constant 0 : index
      %15 = vector.load %arg9[%c1, %c0_7] : memref<2x128xf32, #tpu.memory_space<vmem>>, vector<1x128xf32>
      %16 = vector.broadcast %15 : vector<1x128xf32> to vector<16x128xf32>
      %17 = arith.addf %14, %16 : vector<16x128xf32>
      %cst = arith.constant 0.000000e+00 : f32
      %18 = vector.broadcast %cst : f32 to vector<16x128xf32>
      %19 = arith.maximumf %17, %18 : vector<16x128xf32>
      %20 = arith.truncf %19 : vector<16x128xf32> to vector<16x128xbf16>
      %c0_8 = arith.constant 0 : index
      %c0_9 = arith.constant 0 : index
      %21 = vector.load %arg6[%c0_8, %c0_9] : memref<16x128xbf16, #tpu.memory_space<vmem>>, vector<16x128xbf16>
      tpu.vector_store %arg6[%c0_8, %c0_9], %20 {strides = array<i32>} : memref<16x128xbf16, #tpu.memory_space<vmem>>, vector<16x128xbf16>,
    } else {
    }
    return
  }
  func.func @transform_0(%arg0: i32, %arg1: i32) -> (i32, i32) {
    %c1_i32 = arith.constant 1 : i32
    %0 = arith.subi %c1_i32, %arg0 : i32
    %1 = arith.muli %arg1, %0 : i32
    %c1_i32_0 = arith.constant 1 : i32
    %2 = arith.muli %c1_i32_0, %arg0 : i32
    %3 = arith.addi %1, %2 : i32
    %c0_i32 = arith.constant 0 : i32
    %c0_i32_1 = arith.constant 0 : i32
    return %3, %c0_i32 : i32, i32
  }
  func.func @transform_1(%arg0: i32, %arg1: i32) -> (i32, i32) {
    %c0_i32 = arith.constant 0 : i32
    %c0_i32_0 = arith.constant 0 : i32
    %c0_i32_1 = arith.constant 0 : i32
    return %c0_i32, %c0_i32_0 : i32, i32
  }
  func.func @transform_2(%arg0: i32, %arg1: i32) -> (i32, i32) {
    %c0_i32 = arith.constant 0 : i32
    %c0_i32_0 = arith.constant 0 : i32
    %c0_i32_1 = arith.constant 0 : i32
    return %c0_i32, %c0_i32_0 : i32, i32
  }
  func.func @transform_3(%arg0: i32, %arg1: i32) -> (i32, i32) {
    %c0_i32 = arith.constant 0 : i32
    %c0_i32_0 = arith.constant 0 : i32
    %c0_i32_1 = arith.constant 0 : i32
    return %c0_i32, %c0_i32_0 : i32, i32
  }
  func.func @transform_4(%arg0: i32, %arg1: i32) -> (i32, i32) {
    %0 = arith.muli %arg1, %arg0 : i32
    %c0_i32 = arith.constant 0 : i32
    %c0_i32_0 = arith.constant 0 : i32
    return %0, %c0_i32 : i32, i32
  }
}

module attributes {stable_mosaic.version = 11 : i64} {
  func.func @fused_conv_bn_relu_kernel(%arg0: i32, %arg1: i32, %arg2: memref<16x128xbf16, #tpu.memory_space<vmem>>, %arg3: memref<128x128xbf16, #tpu.memory_space<vmem>>, %arg4: memref<1x128xf32, #tpu.memory_space<vmem>>, %arg5: memref<1x128xf32, #tpu.memory_space<vmem>>, %arg6: memref<16x128xbf16, #tpu.memory_space<vmem>>, %arg7: memref<2x16x128xf32, #tpu.memory_space<vmem>>, %arg8: memref<2x128xf32, #tpu.memory_space<vmem>>, %arg9: memref<2x128xf32, #tpu.memory_space<vmem>>) attributes {dimension_semantics = [#tpu.dimension_semantics<arbitrary>, #tpu.dimension_semantics<arbitrary>], iteration_bounds = array<i64: 2, 2>, scalar_prefetch = 0 : i64, scratch_operands = 3 : i64, tpu.core_type = #tpu.core_type<tc>, window_params = [{transform_indices = @transform_0, window_bounds = array<i64: 16, 128>}, {pipeline_mode = #tpu.pipeline_mode<synchronous>, transform_indices = @transform_1, window_bounds = array<i64: 128, 128>}, {pipeline_mode = #tpu.pipeline_mode<synchronous>, transform_indices = @transform_2, window_bounds = array<i64: 1, 128>}, {pipeline_mode = #tpu.pipeline_mode<synchronous>, transform_indices = @transform_3, window_bounds = array<i64: 1, 128>}, {transform_indices = @transform_4, window_bounds = array<i64: 16, 128>}]} {
    %c0_i32 = arith.constant 0 : i32
    %0 = arith.cmpi eq, %arg0, %c0_i32 : i32
    %1 = arith.extui %0 : i1 to i32
    %c0_i32_0 = arith.constant 0 : i32
    %2 = arith.cmpi ne, %1, %c0_i32_0 : i32
    scf.if %2 {
      %c0 = arith.constant 0 : index
      %c0_2 = arith.constant 0 : index
      %6 = vector.load %arg2[%c0, %c0_2] : memref<16x128xbf16, #tpu.memory_space<vmem>>, vector<16x128xbf16>
      %c0_3 = arith.constant 0 : index
      %c0_4 = arith.constant 0 : index
      %7 = vector.load %arg3[%c0_3, %c0_4] : memref<128x128xbf16, #tpu.memory_space<vmem>>, vector<128x128xbf16>
      %cst = arith.constant dense<0.000000e+00> : vector<16x128xf32>
      %8 = tpu.matmul %6, %7, %cst {dimension_numbers = #tpu.dot_dimension_numbers<[1], [0], [0], [1], [0, 0, 1, 1], [], []>} : vector<16x128xbf16>, vector<128x128xbf16>, vector<16x128xf32> -> vector<16x128xf32>
      %9 = arith.index_cast %arg1 : i32 to index
      %c0_5 = arith.constant 0 : index
      %c0_6 = arith.constant 0 : index
      %10 = vector.load %arg7[%9, %c0_5, %c0_6] : memref<2x16x128xf32, #tpu.memory_space<vmem>>, vector<1x16x128xf32>
      %11 = vector.shape_cast %10 : vector<1x16x128xf32> to vector<16x128xf32>
      %12 = vector.shape_cast %8 : vector<16x128xf32> to vector<1x16x128xf32>
      tpu.vector_store %arg7[%9, %c0_5, %c0_6], %12 {strides = array<i32>} : memref<2x16x128xf32, #tpu.memory_space<vmem>>, vector<1x16x128xf32>,
      %c0_i32_7 = arith.constant 0 : i32
      %13 = arith.cmpi eq, %arg1, %c0_i32_7 : i32
      %14 = arith.extui %13 : i1 to i32
      %c0_i32_8 = arith.constant 0 : i32
      %15 = arith.cmpi ne, %14, %c0_i32_8 : i32
      scf.if %15 {
        %cst_18 = arith.constant 0.000000e+00 : f32
        %27 = vector.broadcast %cst_18 : f32 to vector<2x128xf32>
        %c0_19 = arith.constant 0 : index
        %c0_20 = arith.constant 0 : index
        %28 = vector.load %arg8[%c0_19, %c0_20] : memref<2x128xf32, #tpu.memory_space<vmem>>, vector<2x128xf32>
        tpu.vector_store %arg8[%c0_19, %c0_20], %27 {strides = array<i32>} : memref<2x128xf32, #tpu.memory_space<vmem>>, vector<2x128xf32>,
      } else {
      }
      %c0_9 = arith.constant 0 : index
      %c0_10 = arith.constant 0 : index
      %16 = vector.load %arg8[%c0_9, %c0_10] : memref<2x128xf32, #tpu.memory_space<vmem>>, vector<1x128xf32>
      %cst_11 = arith.constant dense<0.000000e+00> : vector<128xf32>
      %17 = vector.multi_reduction <add>, %8, %cst_11 [0] : vector<16x128xf32> to vector<128xf32>
      %18 = vector.shape_cast %17 : vector<128xf32> to vector<1x128xf32>
      %19 = arith.addf %16, %18 : vector<1x128xf32>
      %c0_12 = arith.constant 0 : index
      %c0_13 = arith.constant 0 : index
      %20 = vector.load %arg8[%c0_12, %c0_13] : memref<2x128xf32, #tpu.memory_space<vmem>>, vector<1x128xf32>
      tpu.vector_store %arg8[%c0_12, %c0_13], %19 {strides = array<i32>} : memref<2x128xf32, #tpu.memory_space<vmem>>, vector<1x128xf32>,
      %c1 = arith.constant 1 : index
      %c0_14 = arith.constant 0 : index
      %21 = vector.load %arg8[%c1, %c0_14] : memref<2x128xf32, #tpu.memory_space<vmem>>, vector<1x128xf32>
      %22 = arith.mulf %8, %8 : vector<16x128xf32>
      %cst_15 = arith.constant dense<0.000000e+00> : vector<128xf32>
      %23 = vector.multi_reduction <add>, %22, %cst_15 [0] : vector<16x128xf32> to vector<128xf32>
      %24 = vector.shape_cast %23 : vector<128xf32> to vector<1x128xf32>
      %25 = arith.addf %21, %24 : vector<1x128xf32>
      %c1_16 = arith.constant 1 : index
      %c0_17 = arith.constant 0 : index
      %26 = vector.load %arg8[%c1_16, %c0_17] : memref<2x128xf32, #tpu.memory_space<vmem>>, vector<1x128xf32>
      tpu.vector_store %arg8[%c1_16, %c0_17], %25 {strides = array<i32>} : memref<2x128xf32, #tpu.memory_space<vmem>>, vector<1x128xf32>,
    } else {
    }
    %c1_i32 = arith.constant 1 : i32
    %3 = arith.cmpi eq, %arg0, %c1_i32 : i32
    %4 = arith.extui %3 : i1 to i32
    %c0_i32_1 = arith.constant 0 : i32
    %5 = arith.cmpi ne, %4, %c0_i32_1 : i32
    scf.if %5 {
      %c0_i32_2 = arith.constant 0 : i32
      %6 = arith.cmpi eq, %arg1, %c0_i32_2 : i32
      %7 = arith.extui %6 : i1 to i32
      %c0_i32_3 = arith.constant 0 : i32
      %8 = arith.cmpi ne, %7, %c0_i32_3 : i32
      scf.if %8 {
        %c0_10 = arith.constant 0 : index
        %c0_11 = arith.constant 0 : index
        %22 = vector.load %arg8[%c0_10, %c0_11] : memref<2x128xf32, #tpu.memory_space<vmem>>, vector<1x128xf32>
        %cst_12 = arith.constant 3.125000e-02 : f32
        %23 = vector.broadcast %cst_12 : f32 to vector<1x128xf32>
        %24 = arith.mulf %22, %23 : vector<1x128xf32>
        %c1_13 = arith.constant 1 : index
        %c0_14 = arith.constant 0 : index
        %25 = vector.load %arg8[%c1_13, %c0_14] : memref<2x128xf32, #tpu.memory_space<vmem>>, vector<1x128xf32>
        %cst_15 = arith.constant 3.125000e-02 : f32
        %26 = vector.broadcast %cst_15 : f32 to vector<1x128xf32>
        %27 = arith.mulf %25, %26 : vector<1x128xf32>
        %28 = arith.mulf %24, %24 : vector<1x128xf32>
        %29 = arith.subf %27, %28 : vector<1x128xf32>
        %cst_16 = arith.constant 0.000000e+00 : f32
        %30 = vector.broadcast %cst_16 : f32 to vector<1x128xf32>
        %31 = arith.maximumf %29, %30 : vector<1x128xf32>
        %cst_17 = arith.constant 9.99999974E-6 : f32
        %32 = vector.broadcast %cst_17 : f32 to vector<1x128xf32>
        %33 = arith.addf %31, %32 : vector<1x128xf32>
        %34 = math.rsqrt %33 : vector<1x128xf32>
        %c0_18 = arith.constant 0 : index
        %c0_19 = arith.constant 0 : index
        %35 = vector.load %arg4[%c0_18, %c0_19] : memref<1x128xf32, #tpu.memory_space<vmem>>, vector<1x128xf32>
        %36 = arith.mulf %34, %35 : vector<1x128xf32>
        %c0_20 = arith.constant 0 : index
        %c0_21 = arith.constant 0 : index
        %37 = vector.load %arg9[%c0_20, %c0_21] : memref<2x128xf32, #tpu.memory_space<vmem>>, vector<1x128xf32>
        tpu.vector_store %arg9[%c0_20, %c0_21], %36 {strides = array<i32>} : memref<2x128xf32, #tpu.memory_space<vmem>>, vector<1x128xf32>,
        %c0_22 = arith.constant 0 : index
        %c0_23 = arith.constant 0 : index
        %38 = vector.load %arg5[%c0_22, %c0_23] : memref<1x128xf32, #tpu.memory_space<vmem>>, vector<1x128xf32>
        %39 = arith.mulf %24, %36 : vector<1x128xf32>
        %40 = arith.subf %38, %39 : vector<1x128xf32>
        %c1_24 = arith.constant 1 : index
        %c0_25 = arith.constant 0 : index
        %41 = vector.load %arg9[%c1_24, %c0_25] : memref<2x128xf32, #tpu.memory_space<vmem>>, vector<1x128xf32>
        tpu.vector_store %arg9[%c1_24, %c0_25], %40 {strides = array<i32>} : memref<2x128xf32, #tpu.memory_space<vmem>>, vector<1x128xf32>,
      } else {
      }
      %9 = arith.index_cast %arg1 : i32 to index
      %c0 = arith.constant 0 : index
      %c0_4 = arith.constant 0 : index
      %10 = vector.load %arg7[%9, %c0, %c0_4] : memref<2x16x128xf32, #tpu.memory_space<vmem>>, vector<1x16x128xf32>
      %11 = vector.shape_cast %10 : vector<1x16x128xf32> to vector<16x128xf32>
      %c0_5 = arith.constant 0 : index
      %c0_6 = arith.constant 0 : index
      %12 = vector.load %arg9[%c0_5, %c0_6] : memref<2x128xf32, #tpu.memory_space<vmem>>, vector<1x128xf32>
      %13 = vector.broadcast %12 : vector<1x128xf32> to vector<16x128xf32>
      %14 = arith.mulf %11, %13 : vector<16x128xf32>
      %c1 = arith.constant 1 : index
      %c0_7 = arith.constant 0 : index
      %15 = vector.load %arg9[%c1, %c0_7] : memref<2x128xf32, #tpu.memory_space<vmem>>, vector<1x128xf32>
      %16 = vector.broadcast %15 : vector<1x128xf32> to vector<16x128xf32>
      %17 = arith.addf %14, %16 : vector<16x128xf32>
      %cst = arith.constant 0.000000e+00 : f32
      %18 = vector.broadcast %cst : f32 to vector<16x128xf32>
      %19 = arith.maximumf %17, %18 : vector<16x128xf32>
      %20 = arith.truncf %19 : vector<16x128xf32> to vector<16x128xbf16>
      %c0_8 = arith.constant 0 : index
      %c0_9 = arith.constant 0 : index
      %21 = vector.load %arg6[%c0_8, %c0_9] : memref<16x128xbf16, #tpu.memory_space<vmem>>, vector<16x128xbf16>
      tpu.vector_store %arg6[%c0_8, %c0_9], %20 {strides = array<i32>} : memref<16x128xbf16, #tpu.memory_space<vmem>>, vector<16x128xbf16>,
    } else {
    }
    return
  }
  func.func @transform_0(%arg0: i32, %arg1: i32) -> (i32, i32) {
    %c1_i32 = arith.constant 1 : i32
    %0 = arith.subi %c1_i32, %arg0 : i32
    %1 = arith.muli %arg1, %0 : i32
    %c1_i32_0 = arith.constant 1 : i32
    %2 = arith.muli %c1_i32_0, %arg0 : i32
    %3 = arith.addi %1, %2 : i32
    %c0_i32 = arith.constant 0 : i32
    %c0_i32_1 = arith.constant 0 : i32
    return %3, %c0_i32 : i32, i32
  }
  func.func @transform_1(%arg0: i32, %arg1: i32) -> (i32, i32) {
    %c0_i32 = arith.constant 0 : i32
    %c0_i32_0 = arith.constant 0 : i32
    %c0_i32_1 = arith.constant 0 : i32
    return %c0_i32, %c0_i32_0 : i32, i32
  }
  func.func @transform_2(%arg0: i32, %arg1: i32) -> (i32, i32) {
    %c0_i32 = arith.constant 0 : i32
    %c0_i32_0 = arith.constant 0 : i32
    %c0_i32_1 = arith.constant 0 : i32
    return %c0_i32, %c0_i32_0 : i32, i32
  }
  func.func @transform_3(%arg0: i32, %arg1: i32) -> (i32, i32) {
    %c0_i32 = arith.constant 0 : i32
    %c0_i32_0 = arith.constant 0 : i32
    %c0_i32_1 = arith.constant 0 : i32
    return %c0_i32, %c0_i32_0 : i32, i32
  }
  func.func @transform_4(%arg0: i32, %arg1: i32) -> (i32, i32) {
    %0 = arith.muli %arg1, %arg0 : i32
    %c0_i32 = arith.constant 0 : i32
    %c0_i32_0 = arith.constant 0 : i32
    return %0, %c0_i32 : i32, i32
  }
}

module attributes {stable_mosaic.version = 11 : i64} {
  func.func @fused_conv_bn_relu_kernel(%arg0: i32, %arg1: i32, %arg2: memref<16x256xbf16, #tpu.memory_space<vmem>>, %arg3: memref<256x128xbf16, #tpu.memory_space<vmem>>, %arg4: memref<1x128xf32, #tpu.memory_space<vmem>>, %arg5: memref<1x128xf32, #tpu.memory_space<vmem>>, %arg6: memref<16x128xf32, #tpu.memory_space<vmem>>, %arg7: memref<2x16x128xf32, #tpu.memory_space<vmem>>, %arg8: memref<2x128xf32, #tpu.memory_space<vmem>>, %arg9: memref<2x128xf32, #tpu.memory_space<vmem>>) attributes {dimension_semantics = [#tpu.dimension_semantics<arbitrary>, #tpu.dimension_semantics<arbitrary>], iteration_bounds = array<i64: 2, 2>, scalar_prefetch = 0 : i64, scratch_operands = 3 : i64, tpu.core_type = #tpu.core_type<tc>, window_params = [{transform_indices = @transform_0, window_bounds = array<i64: 16, 256>}, {pipeline_mode = #tpu.pipeline_mode<synchronous>, transform_indices = @transform_1, window_bounds = array<i64: 256, 128>}, {pipeline_mode = #tpu.pipeline_mode<synchronous>, transform_indices = @transform_2, window_bounds = array<i64: 1, 128>}, {pipeline_mode = #tpu.pipeline_mode<synchronous>, transform_indices = @transform_3, window_bounds = array<i64: 1, 128>}, {transform_indices = @transform_4, window_bounds = array<i64: 16, 128>}]} {
    %c0_i32 = arith.constant 0 : i32
    %0 = arith.cmpi eq, %arg0, %c0_i32 : i32
    %1 = arith.extui %0 : i1 to i32
    %c0_i32_0 = arith.constant 0 : i32
    %2 = arith.cmpi ne, %1, %c0_i32_0 : i32
    scf.if %2 {
      %c0 = arith.constant 0 : index
      %c0_2 = arith.constant 0 : index
      %6 = vector.load %arg2[%c0, %c0_2] : memref<16x256xbf16, #tpu.memory_space<vmem>>, vector<16x256xbf16>
      %c0_3 = arith.constant 0 : index
      %c0_4 = arith.constant 0 : index
      %7 = vector.load %arg3[%c0_3, %c0_4] : memref<256x128xbf16, #tpu.memory_space<vmem>>, vector<256x128xbf16>
      %cst = arith.constant dense<0.000000e+00> : vector<16x128xf32>
      %8 = tpu.matmul %6, %7, %cst {dimension_numbers = #tpu.dot_dimension_numbers<[1], [0], [0], [1], [0, 0, 1, 1], [], []>} : vector<16x256xbf16>, vector<256x128xbf16>, vector<16x128xf32> -> vector<16x128xf32>
      %9 = arith.index_cast %arg1 : i32 to index
      %c0_5 = arith.constant 0 : index
      %c0_6 = arith.constant 0 : index
      %10 = vector.load %arg7[%9, %c0_5, %c0_6] : memref<2x16x128xf32, #tpu.memory_space<vmem>>, vector<1x16x128xf32>
      %11 = vector.shape_cast %10 : vector<1x16x128xf32> to vector<16x128xf32>
      %12 = vector.shape_cast %8 : vector<16x128xf32> to vector<1x16x128xf32>
      tpu.vector_store %arg7[%9, %c0_5, %c0_6], %12 {strides = array<i32>} : memref<2x16x128xf32, #tpu.memory_space<vmem>>, vector<1x16x128xf32>,
      %c0_i32_7 = arith.constant 0 : i32
      %13 = arith.cmpi eq, %arg1, %c0_i32_7 : i32
      %14 = arith.extui %13 : i1 to i32
      %c0_i32_8 = arith.constant 0 : i32
      %15 = arith.cmpi ne, %14, %c0_i32_8 : i32
      scf.if %15 {
        %cst_18 = arith.constant 0.000000e+00 : f32
        %27 = vector.broadcast %cst_18 : f32 to vector<2x128xf32>
        %c0_19 = arith.constant 0 : index
        %c0_20 = arith.constant 0 : index
        %28 = vector.load %arg8[%c0_19, %c0_20] : memref<2x128xf32, #tpu.memory_space<vmem>>, vector<2x128xf32>
        tpu.vector_store %arg8[%c0_19, %c0_20], %27 {strides = array<i32>} : memref<2x128xf32, #tpu.memory_space<vmem>>, vector<2x128xf32>,
      } else {
      }
      %c0_9 = arith.constant 0 : index
      %c0_10 = arith.constant 0 : index
      %16 = vector.load %arg8[%c0_9, %c0_10] : memref<2x128xf32, #tpu.memory_space<vmem>>, vector<1x128xf32>
      %cst_11 = arith.constant dense<0.000000e+00> : vector<128xf32>
      %17 = vector.multi_reduction <add>, %8, %cst_11 [0] : vector<16x128xf32> to vector<128xf32>
      %18 = vector.shape_cast %17 : vector<128xf32> to vector<1x128xf32>
      %19 = arith.addf %16, %18 : vector<1x128xf32>
      %c0_12 = arith.constant 0 : index
      %c0_13 = arith.constant 0 : index
      %20 = vector.load %arg8[%c0_12, %c0_13] : memref<2x128xf32, #tpu.memory_space<vmem>>, vector<1x128xf32>
      tpu.vector_store %arg8[%c0_12, %c0_13], %19 {strides = array<i32>} : memref<2x128xf32, #tpu.memory_space<vmem>>, vector<1x128xf32>,
      %c1 = arith.constant 1 : index
      %c0_14 = arith.constant 0 : index
      %21 = vector.load %arg8[%c1, %c0_14] : memref<2x128xf32, #tpu.memory_space<vmem>>, vector<1x128xf32>
      %22 = arith.mulf %8, %8 : vector<16x128xf32>
      %cst_15 = arith.constant dense<0.000000e+00> : vector<128xf32>
      %23 = vector.multi_reduction <add>, %22, %cst_15 [0] : vector<16x128xf32> to vector<128xf32>
      %24 = vector.shape_cast %23 : vector<128xf32> to vector<1x128xf32>
      %25 = arith.addf %21, %24 : vector<1x128xf32>
      %c1_16 = arith.constant 1 : index
      %c0_17 = arith.constant 0 : index
      %26 = vector.load %arg8[%c1_16, %c0_17] : memref<2x128xf32, #tpu.memory_space<vmem>>, vector<1x128xf32>
      tpu.vector_store %arg8[%c1_16, %c0_17], %25 {strides = array<i32>} : memref<2x128xf32, #tpu.memory_space<vmem>>, vector<1x128xf32>,
    } else {
    }
    %c1_i32 = arith.constant 1 : i32
    %3 = arith.cmpi eq, %arg0, %c1_i32 : i32
    %4 = arith.extui %3 : i1 to i32
    %c0_i32_1 = arith.constant 0 : i32
    %5 = arith.cmpi ne, %4, %c0_i32_1 : i32
    scf.if %5 {
      %c0_i32_2 = arith.constant 0 : i32
      %6 = arith.cmpi eq, %arg1, %c0_i32_2 : i32
      %7 = arith.extui %6 : i1 to i32
      %c0_i32_3 = arith.constant 0 : i32
      %8 = arith.cmpi ne, %7, %c0_i32_3 : i32
      scf.if %8 {
        %c0_10 = arith.constant 0 : index
        %c0_11 = arith.constant 0 : index
        %21 = vector.load %arg8[%c0_10, %c0_11] : memref<2x128xf32, #tpu.memory_space<vmem>>, vector<1x128xf32>
        %cst_12 = arith.constant 3.125000e-02 : f32
        %22 = vector.broadcast %cst_12 : f32 to vector<1x128xf32>
        %23 = arith.mulf %21, %22 : vector<1x128xf32>
        %c1_13 = arith.constant 1 : index
        %c0_14 = arith.constant 0 : index
        %24 = vector.load %arg8[%c1_13, %c0_14] : memref<2x128xf32, #tpu.memory_space<vmem>>, vector<1x128xf32>
        %cst_15 = arith.constant 3.125000e-02 : f32
        %25 = vector.broadcast %cst_15 : f32 to vector<1x128xf32>
        %26 = arith.mulf %24, %25 : vector<1x128xf32>
        %27 = arith.mulf %23, %23 : vector<1x128xf32>
        %28 = arith.subf %26, %27 : vector<1x128xf32>
        %cst_16 = arith.constant 0.000000e+00 : f32
        %29 = vector.broadcast %cst_16 : f32 to vector<1x128xf32>
        %30 = arith.maximumf %28, %29 : vector<1x128xf32>
        %cst_17 = arith.constant 9.99999974E-6 : f32
        %31 = vector.broadcast %cst_17 : f32 to vector<1x128xf32>
        %32 = arith.addf %30, %31 : vector<1x128xf32>
        %33 = math.rsqrt %32 : vector<1x128xf32>
        %c0_18 = arith.constant 0 : index
        %c0_19 = arith.constant 0 : index
        %34 = vector.load %arg4[%c0_18, %c0_19] : memref<1x128xf32, #tpu.memory_space<vmem>>, vector<1x128xf32>
        %35 = arith.mulf %33, %34 : vector<1x128xf32>
        %c0_20 = arith.constant 0 : index
        %c0_21 = arith.constant 0 : index
        %36 = vector.load %arg9[%c0_20, %c0_21] : memref<2x128xf32, #tpu.memory_space<vmem>>, vector<1x128xf32>
        tpu.vector_store %arg9[%c0_20, %c0_21], %35 {strides = array<i32>} : memref<2x128xf32, #tpu.memory_space<vmem>>, vector<1x128xf32>,
        %c0_22 = arith.constant 0 : index
        %c0_23 = arith.constant 0 : index
        %37 = vector.load %arg5[%c0_22, %c0_23] : memref<1x128xf32, #tpu.memory_space<vmem>>, vector<1x128xf32>
        %38 = arith.mulf %23, %35 : vector<1x128xf32>
        %39 = arith.subf %37, %38 : vector<1x128xf32>
        %c1_24 = arith.constant 1 : index
        %c0_25 = arith.constant 0 : index
        %40 = vector.load %arg9[%c1_24, %c0_25] : memref<2x128xf32, #tpu.memory_space<vmem>>, vector<1x128xf32>
        tpu.vector_store %arg9[%c1_24, %c0_25], %39 {strides = array<i32>} : memref<2x128xf32, #tpu.memory_space<vmem>>, vector<1x128xf32>,
      } else {
      }
      %9 = arith.index_cast %arg1 : i32 to index
      %c0 = arith.constant 0 : index
      %c0_4 = arith.constant 0 : index
      %10 = vector.load %arg7[%9, %c0, %c0_4] : memref<2x16x128xf32, #tpu.memory_space<vmem>>, vector<1x16x128xf32>
      %11 = vector.shape_cast %10 : vector<1x16x128xf32> to vector<16x128xf32>
      %c0_5 = arith.constant 0 : index
      %c0_6 = arith.constant 0 : index
      %12 = vector.load %arg9[%c0_5, %c0_6] : memref<2x128xf32, #tpu.memory_space<vmem>>, vector<1x128xf32>
      %13 = vector.broadcast %12 : vector<1x128xf32> to vector<16x128xf32>
      %14 = arith.mulf %11, %13 : vector<16x128xf32>
      %c1 = arith.constant 1 : index
      %c0_7 = arith.constant 0 : index
      %15 = vector.load %arg9[%c1, %c0_7] : memref<2x128xf32, #tpu.memory_space<vmem>>, vector<1x128xf32>
      %16 = vector.broadcast %15 : vector<1x128xf32> to vector<16x128xf32>
      %17 = arith.addf %14, %16 : vector<16x128xf32>
      %cst = arith.constant 0.000000e+00 : f32
      %18 = vector.broadcast %cst : f32 to vector<16x128xf32>
      %19 = arith.maximumf %17, %18 : vector<16x128xf32>
      %c0_8 = arith.constant 0 : index
      %c0_9 = arith.constant 0 : index
      %20 = vector.load %arg6[%c0_8, %c0_9] : memref<16x128xf32, #tpu.memory_space<vmem>>, vector<16x128xf32>
      tpu.vector_store %arg6[%c0_8, %c0_9], %19 {strides = array<i32>} : memref<16x128xf32, #tpu.memory_space<vmem>>, vector<16x128xf32>,
    } else {
    }
    return
  }
  func.func @transform_0(%arg0: i32, %arg1: i32) -> (i32, i32) {
    %c1_i32 = arith.constant 1 : i32
    %0 = arith.subi %c1_i32, %arg0 : i32
    %1 = arith.muli %arg1, %0 : i32
    %c1_i32_0 = arith.constant 1 : i32
    %2 = arith.muli %c1_i32_0, %arg0 : i32
    %3 = arith.addi %1, %2 : i32
    %c0_i32 = arith.constant 0 : i32
    %c0_i32_1 = arith.constant 0 : i32
    return %3, %c0_i32 : i32, i32
  }
  func.func @transform_1(%arg0: i32, %arg1: i32) -> (i32, i32) {
    %c0_i32 = arith.constant 0 : i32
    %c0_i32_0 = arith.constant 0 : i32
    %c0_i32_1 = arith.constant 0 : i32
    return %c0_i32, %c0_i32_0 : i32, i32
  }
  func.func @transform_2(%arg0: i32, %arg1: i32) -> (i32, i32) {
    %c0_i32 = arith.constant 0 : i32
    %c0_i32_0 = arith.constant 0 : i32
    %c0_i32_1 = arith.constant 0 : i32
    return %c0_i32, %c0_i32_0 : i32, i32
  }
  func.func @transform_3(%arg0: i32, %arg1: i32) -> (i32, i32) {
    %c0_i32 = arith.constant 0 : i32
    %c0_i32_0 = arith.constant 0 : i32
    %c0_i32_1 = arith.constant 0 : i32
    return %c0_i32, %c0_i32_0 : i32, i32
  }
  func.func @transform_4(%arg0: i32, %arg1: i32) -> (i32, i32) {
    %0 = arith.muli %arg1, %arg0 : i32
    %c0_i32 = arith.constant 0 : i32
    %c0_i32_0 = arith.constant 0 : i32
    return %0, %c0_i32 : i32, i32
  }
}

</mosaic_0001>

<llo_original>
// kernel: csblock_forward.5
$region0: #{csblock_forward.5}
  #allocation0 [shape = 'u32[]', space=smem, size = 0x4, offset = 0x4, fixed_abs, tag = 'smem constant byte address 0x4 - core index']
  #allocation1 [shape = 'u32[144,128]{1,0:T(1,128)}', space=vmem, size = 0x12000, scoped, tag = 'internal scratch']
  #allocation2 [shape = 'f32[2,256,128]{2,1,0:T(8,128)}', space=vmem, size = 0x40000, scoped, tag = 'scratch operand']
  #allocation3 [shape = 'f32[2,128]{1,0:T(2,128)}', space=vmem, size = 0x400, scoped, tag = 'scratch operand']
  #allocation4 [shape = 'f32[2,128]{1,0:T(2,128)}', space=vmem, size = 0x400, scoped, tag = 'scratch operand']
  %s0 = inlined_call_operand.vmem [shape: bf16[512,512], index: 0, kind: input, shape index: {}]
  %s1 = inlined_call_operand.vmem [shape: bf16[512,128], index: 1, kind: input, shape index: {}]
  %s2 = inlined_call_operand.vmem [shape: f32[1,128], index: 2, kind: input, shape index: {}]
  %s3 = inlined_call_operand.vmem [shape: f32[1,128], index: 3, kind: input, shape index: {}]
  %s4 = inlined_call_operand.vmem [shape: bf16[512,128], index: 4, kind: output, shape index: {}]
  %s5 = sld [smem:[#allocation0]]
  $region65: #{csblock_forward.5} parent=0
    _
  %s7 = ssub.s32 1, %s5
  %s8 = scalar_select 0, %s7, %s5
  loop: start=0, step=1, limit=6
  $region2: #{csblock_forward.5} parent=0 // loop_pre_header
    _
  $region3: #{csblock_forward.5} parent=0 // loop_header
    %s10 = sphi 0, %s14
    %p11 = scmp.ge.s32.totalorder %s10, 6
    %s17 = sphi 0, %s29
    %s18 = sphi 0, %s25
    %s19 = sphi 0, %s17
    %s20 = sphi 0, %s18
    %s21 = sphi 0, %s19
    %s22 = sphi 0, %s20
    %s38 = sphi 0, %s40
    %s41 = sphi 0, %s38
    %s42 = sphi 0, %s41
    %s58 = sphi 0, %s42
    %s62 = sphi 0, %s62
    %s64 = sphi 0, %s62
    %s65 = sphi 0, %s64
    %s79 = sphi 0, %s65
    %s83 = sphi 0, %s83
    %s85 = sphi 0, %s83
    %s86 = sphi 0, %s85
    %s100 = sphi 0, %s86
    %s104 = sphi 0, %s104
    %s106 = sphi 0, %s104
    %s107 = sphi 0, %s106
    %s121 = sphi 0, %s107
    %s129 = sphi 0, %s131
    %s132 = sphi 0, %s129
    %s133 = sphi 0, %s132
    %s149 = sphi 0, %s133
  $region4: #{csblock_forward.5} parent=0 // loop_header_branch
    %13 = sbr.rel (%p11) target = $region8
  $region5: #{csblock_forward.5} parent=0 // loop_body
    %s15 = ssub.s32 %s10, 1
    %s16 = ssub.s32 %s10, 2
    %s23 = sadd.s32 1, %s18
    %p24 = scmp.ge.s32.totalorder %s23, 2
    %s25 = scalar_select %p24, 0, %s23
    %s26 = sadd.s32 1, %s17
    %s27 = scalar_select %p24, %s26, %s17
    %p28 = scmp.ge.s32.totalorder %s27, 2
    %s29 = scalar_select %p28, 0, %s27
    %s30 = ssub.s32 1, %s17
    %s31 = smul.u32 %s18, %s30
    %s32 = sadd.s32 %s31, %s17
    %s33 = ssub.s32 1, %s29
    %s34 = smul.u32 %s25, %s33
    %s35 = sadd.s32 %s34, %s29
    %s36 = ssub.s32 %s32, %s35
    %p37 = scmp.eq.s32.totalorder %s36, 0
    %s39 = sadd.s32 %s38, 1
    %s40 = scalar_select %p37, %s38, %s39
    %p43 = pneg %p37
    %p44 = scmp.eq.s32.totalorder %s10, 3
    %p45 = por %p43, %p44
    %p46 = scmp.ne.s32.totalorder %s38, %s41
    %p47 = scmp.eq.s32.totalorder %s10, 0
    %p48 = por %p46, %p47
    %p49 = scmp.ne.s32.totalorder %s38, %s41
    %p50 = scmp.eq.s32.totalorder %s15, 3
    %p51 = por %p49, %p50
    %p52 = scmp.ne.s32.totalorder %s41, %s42
    %p53 = scmp.eq.s32.totalorder %s15, 0
    %p54 = por %p52, %p53
    %p55 = scmp.ne.s32.totalorder %s41, %s42
    %p56 = scmp.eq.s32.totalorder %s16, 3
    %p57 = por %p55, %p56
    %p59 = scmp.ne.s32.totalorder %s42, %s58
    %p60 = scmp.eq.s32.totalorder %s16, 0
    %p61 = por %p59, %p60
    %s63 = sadd.s32 %s62, 1
    %p66 = scmp.eq.s32.totalorder %s10, 3
    %p67 = scmp.ne.s32.totalorder %s62, %s64
    %p68 = scmp.eq.s32.totalorder %s10, 0
    %p69 = por %p67, %p68
    %p70 = scmp.ne.s32.totalorder %s62, %s64
    %p71 = scmp.eq.s32.totalorder %s15, 3
    %p72 = por %p70, %p71
    %p73 = scmp.ne.s32.totalorder %s64, %s65
    %p74 = scmp.eq.s32.totalorder %s15, 0
    %p75 = por %p73, %p74
    %p76 = scmp.ne.s32.totalorder %s64, %s65
    %p77 = scmp.eq.s32.totalorder %s16, 3
    %p78 = por %p76, %p77
    %p80 = scmp.ne.s32.totalorder %s65, %s79
    %p81 = scmp.eq.s32.totalorder %s16, 0
    %p82 = por %p80, %p81
    %s84 = sadd.s32 %s83, 1
    %p87 = scmp.eq.s32.totalorder %s10, 3
    %p88 = scmp.ne.s32.totalorder %s83, %s85
    %p89 = scmp.eq.s32.totalorder %s10, 0
    %p90 = por %p88, %p89
    %p91 = scmp.ne.s32.totalorder %s83, %s85
    %p92 = scmp.eq.s32.totalorder %s15, 3
    %p93 = por %p91, %p92
    %p94 = scmp.ne.s32.totalorder %s85, %s86
    %p95 = scmp.eq.s32.totalorder %s15, 0
    %p96 = por %p94, %p95
    %p97 = scmp.ne.s32.totalorder %s85, %s86
    %p98 = scmp.eq.s32.totalorder %s16, 3
    %p99 = por %p97, %p98
    %p101 = scmp.ne.s32.totalorder %s86, %s100
    %p102 = scmp.eq.s32.totalorder %s16, 0
    %p103 = por %p101, %p102
    %s105 = sadd.s32 %s104, 1
    %p108 = scmp.eq.s32.totalorder %s10, 3
    %p109 = scmp.ne.s32.totalorder %s104, %s106
    %p110 = scmp.eq.s32.totalorder %s10, 0
    %p111 = por %p109, %p110
    %p112 = scmp.ne.s32.totalorder %s104, %s106
    %p113 = scmp.eq.s32.totalorder %s15, 3
    %p114 = por %p112, %p113
    %p115 = scmp.ne.s32.totalorder %s106, %s107
    %p116 = scmp.eq.s32.totalorder %s15, 0
    %p117 = por %p115, %p116
    %p118 = scmp.ne.s32.totalorder %s106, %s107
    %p119 = scmp.eq.s32.totalorder %s16, 3
    %p120 = por %p118, %p119
    %p122 = scmp.ne.s32.totalorder %s107, %s121
    %p123 = scmp.eq.s32.totalorder %s16, 0
    %p124 = por %p122, %p123
    %s125 = smul.u32 %s18, %s17
    %s126 = smul.u32 %s25, %s29
    %s127 = ssub.s32 %s125, %s126
    %p128 = scmp.eq.s32.totalorder %s127, 0
    %s130 = sadd.s32 %s129, 1
    %s131 = scalar_select %p128, %s129, %s130
    %p134 = pneg %p128
    %p135 = scmp.eq.s32.totalorder %s10, 3
    %p136 = por %p134, %p135
    %p137 = scmp.ne.s32.totalorder %s129, %s132
    %p138 = scmp.eq.s32.totalorder %s10, 0
    %p139 = por %p137, %p138
    %p140 = scmp.ne.s32.totalorder %s129, %s132
    %p141 = scmp.eq.s32.totalorder %s15, 3
    %p142 = por %p140, %p141
    %p143 = scmp.ne.s32.totalorder %s132, %s133
    %p144 = scmp.eq.s32.totalorder %s15, 0
    %p145 = por %p143, %p144
    %p146 = scmp.ne.s32.totalorder %s132, %s133
    %p147 = scmp.eq.s32.totalorder %s16, 3
    %p148 = por %p146, %p147
    %p150 = scmp.ne.s32.totalorder %s133, %s149
    %p151 = scmp.eq.s32.totalorder %s16, 0
    %p152 = por %p150, %p151
    %p153 = scmp.le.s32.totalorder 1, %s10
    %p154 = scmp.lt.s32.totalorder %s10, 5
    %p155 = pnand %p153, %p154
    %p156 = pneg %p155
    // Predicated region
    $region9: #{csblock_forward.5} parent=5 // pred_check
      _
    $region10: #{csblock_forward.5} parent=5 // pred_check_branch
      %158 = sbr.rel (%p155) target = $region12
    $region11: #{csblock_forward.5} parent=5 // pred_region
      %s159 = ssub.s32 %s10, 1
      // Predicated region
      $region13: #{csblock_forward.5} parent=11 // pred_check
        %p160 = pneg %p75
      $region14: #{csblock_forward.5} parent=11 // pred_check_branch
        %162 = sbr.rel (%p160) target = $region16
      $region15: #{csblock_forward.5} parent=11 // pred_region
        _
      $region16: #{csblock_forward.5} parent=11 // pred_fallthru
        _
      // Predicated region
      $region17: #{csblock_forward.5} parent=11 // pred_check
        %p163 = pneg %p96
      $region18: #{csblock_forward.5} parent=11 // pred_check_branch
        %165 = sbr.rel (%p163) target = $region20
      $region19: #{csblock_forward.5} parent=11 // pred_region
        _
      $region20: #{csblock_forward.5} parent=11 // pred_fallthru
        _
      // Predicated region
      $region21: #{csblock_forward.5} parent=11 // pred_check
        %p166 = pneg %p117
      $region22: #{csblock_forward.5} parent=11 // pred_check_branch
        %168 = sbr.rel (%p166) target = $region24
      $region23: #{csblock_forward.5} parent=11 // pred_region
        _
      $region24: #{csblock_forward.5} parent=11 // pred_fallthru
        _
    $region12: #{csblock_forward.5} parent=5 // pred_fallthru
      _
    %p169 = scmp.lt.s32.totalorder %s10, 4
    // Predicated region
    $region25: #{csblock_forward.5} parent=5 // pred_check
      %p170 = pneg %p169
    $region26: #{csblock_forward.5} parent=5 // pred_check_branch
      %172 = sbr.rel (%p170) target = $region28
    $region27: #{csblock_forward.5} parent=5 // pred_region
      // Predicated region
      $region29: #{csblock_forward.5} parent=27 // pred_check
        %p173 = pneg %p48
      $region30: #{csblock_forward.5} parent=27 // pred_check_branch
        %175 = sbr.rel (%p173) target = $region32
      $region31: #{csblock_forward.5} parent=27 // pred_region
        %s176 = ssub.s32 1, %s17
        %s177 = smul.u32 %s18, %s176
        %s178 = sadd.s32 %s177, %s17
        %s179 = smul.u32 32, %s178
        %p180 = scmp.lt.s32.totalorder %s179, 63
        %s181 = scalar_select %p180, %s179, 63
        %s182 = smul.addr %s181, 4
        %s183 = smul.addr %s182, 4
        %s184 = scalar_lea.vmem %s0, %s183
        %s185 = ssub.s32 1, %s17
        %s186 = smul.u32 %s18, %s185
        %s187 = sadd.s32 %s186, %s17
        %s188 = smul.u32 32, %s187
      $region32: #{csblock_forward.5} parent=27 // pred_fallthru
        _
    $region28: #{csblock_forward.5} parent=5 // pred_fallthru
      _
    %p189 = scmp.le.s32.totalorder 1, %s10
    %p190 = scmp.lt.s32.totalorder %s10, 5
    %p191 = pnand %p189, %p190
    %p192 = pneg %p191
    // Predicated region
    $region33: #{csblock_forward.5} parent=5 // pred_check
      _
    $region34: #{csblock_forward.5} parent=5 // pred_check_branch
      %194 = sbr.rel (%p191) target = $region36
    $region35: #{csblock_forward.5} parent=5 // pred_region
      %s195 = ssub.s32 %s10, 1
      %s196 = ssub.s32 1, %s19
      %s197 = smul.u32 %s20, %s196
      %s198 = sadd.s32 %s197, %s19
      %s199 = smul.u32 32, %s198
      %p200 = scmp.lt.s32.totalorder %s199, 63
      %s201 = scalar_select %p200, %s199, 63
      %s202 = smul.addr %s201, 4
      %s203 = smul.addr %s202, 4
      %s204 = scalar_lea.vmem %s0, %s203
      %p205 = pneg %p54
      %p206 = pneg %p51
      %p207 = pneg %p75
      %p208 = pneg %p72
      %p209 = pneg %p96
      %p210 = pneg %p93
      %p211 = pneg %p117
      %p212 = pneg %p114
      %p213 = pneg %p145
      %p214 = pneg %p142
      %s215 = smul.u32 %s20, %s19
      %s216 = smul.u32 32, %s215
      %p217 = scmp.lt.s32.totalorder %s216, 63
      %s218 = scalar_select %p217, %s216, 63
      %s219 = smul.addr %s218, 4
      %s220 = scalar_lea.vmem %s4, %s219
      %s221 = ssub.s32 1, %s19
      %s222 = smul.u32 %s20, %s221
      %s223 = sadd.s32 %s222, %s19
      %s224 = smul.u32 32, %s223
      %p225 = scmp.lt.s32.totalorder %s224, 63
      %s226 = scalar_select %p225, %s224, 63
      %s227 = smul.addr %s226, 4
      %s228 = smul.addr %s227, 4
      %s229 = scalar_lea.vmem %s0, %s228
      %s230 = ssub.s32 1, %s19
      %s231 = smul.u32 %s20, %s230
      %s232 = sadd.s32 %s231, %s19
      %s233 = smul.u32 32, %s232
      %s234 = smul.u32 %s20, %s19
      %s235 = smul.u32 32, %s234
      %p236 = scmp.lt.s32.totalorder %s235, 63
      %s237 = scalar_select %p236, %s235, 63
      %s238 = smul.addr %s237, 4
      %s239 = scalar_lea.vmem %s4, %s238
      %s240 = smul.u32 %s20, %s19
      %s241 = smul.u32 32, %s240
      %p243 = scmp.eq.s32.totalorder %s19, 0
      // Predicated region
      $region37: #{csblock_forward.5} parent=35 // pred_check
        %p244 = pneg %p243
      $region38: #{csblock_forward.5} parent=35 // pred_check_branch
        %246 = sbr.rel (%p244) target = $region40
      $region39: #{csblock_forward.5} parent=35 // pred_region
        %v247 = vld [vmem:[%s229] sm:$0xff]
        %v248 = vld [vmem:[%s229 + $0x8] sm:$0xff]
        %v249 = vld [vmem:[%s229 + $0x10] sm:$0xff]
        %v250 = vld [vmem:[%s229 + $0x18] sm:$0xff]
        %v251 = vld [vmem:[%s229 + $0x20] sm:$0xff]
        %v252 = vld [vmem:[%s229 + $0x28] sm:$0xff]
        %v253 = vld [vmem:[%s229 + $0x30] sm:$0xff]
        %v254 = vld [vmem:[%s229 + $0x38] sm:$0xff]
        %v255 = vld [vmem:[%s229 + $0x40] sm:$0xff]
        %v256 = vld [vmem:[%s229 + $0x48] sm:$0xff]
        %v257 = vld [vmem:[%s229 + $0x50] sm:$0xff]
        %v258 = vld [vmem:[%s229 + $0x58] sm:$0xff]
        %v259 = vld [vmem:[%s229 + $0x60] sm:$0xff]
        %v260 = vld [vmem:[%s229 + $0x68] sm:$0xff]
        %v261 = vld [vmem:[%s229 + $0x70] sm:$0xff]
        %v262 = vld [vmem:[%s229 + $0x78] sm:$0xff]
        %v263 = vld [vmem:[%s229 + $0x80] sm:$0xff]
        %v264 = vld [vmem:[%s229 + $0x88] sm:$0xff]
        %v265 = vld [vmem:[%s229 + $0x90] sm:$0xff]
        %v266 = vld [vmem:[%s229 + $0x98] sm:$0xff]
        %v267 = vld [vmem:[%s229 + $0xa0] sm:$0xff]
        %v268 = vld [vmem:[%s229 + $0xa8] sm:$0xff]
        %v269 = vld [vmem:[%s229 + $0xb0] sm:$0xff]
        %v270 = vld [vmem:[%s229 + $0xb8] sm:$0xff]
        %v271 = vld [vmem:[%s229 + $0xc0] sm:$0xff]
        %v272 = vld [vmem:[%s229 + $0xc8] sm:$0xff]
        %v273 = vld [vmem:[%s229 + $0xd0] sm:$0xff]
        %v274 = vld [vmem:[%s229 + $0xd8] sm:$0xff]
        %v275 = vld [vmem:[%s229 + $0xe0] sm:$0xff]
        %v276 = vld [vmem:[%s229 + $0xe8] sm:$0xff]
        %v277 = vld [vmem:[%s229 + $0xf0] sm:$0xff]
        %v278 = vld [vmem:[%s229 + $0xf8] sm:$0xff]
        %v279 = vld [vmem:[%s229 + $0x100] sm:$0xff]
        %v280 = vld [vmem:[%s229 + $0x108] sm:$0xff]
        %v281 = vld [vmem:[%s229 + $0x110] sm:$0xff]
        %v282 = vld [vmem:[%s229 + $0x118] sm:$0xff]
        %v283 = vld [vmem:[%s229 + $0x120] sm:$0xff]
        %v284 = vld [vmem:[%s229 + $0x128] sm:$0xff]
        %v285 = vld [vmem:[%s229 + $0x130] sm:$0xff]
        %v286 = vld [vmem:[%s229 + $0x138] sm:$0xff]
        %v287 = vld [vmem:[%s229 + $0x140] sm:$0xff]
        %v288 = vld [vmem:[%s229 + $0x148] sm:$0xff]
        %v289 = vld [vmem:[%s229 + $0x150] sm:$0xff]
        %v290 = vld [vmem:[%s229 + $0x158] sm:$0xff]
        %v291 = vld [vmem:[%s229 + $0x160] sm:$0xff]
        %v292 = vld [vmem:[%s229 + $0x168] sm:$0xff]
        %v293 = vld [vmem:[%s229 + $0x170] sm:$0xff]
        %v294 = vld [vmem:[%s229 + $0x178] sm:$0xff]
        %v295 = vld [vmem:[%s229 + $0x180] sm:$0xff]
        %v296 = vld [vmem:[%s229 + $0x188] sm:$0xff]
        %v297 = vld [vmem:[%s229 + $0x190] sm:$0xff]
        %v298 = vld [vmem:[%s229 + $0x198] sm:$0xff]
        %v299 = vld [vmem:[%s229 + $0x1a0] sm:$0xff]
        %v300 = vld [vmem:[%s229 + $0x1a8] sm:$0xff]
        %v301 = vld [vmem:[%s229 + $0x1b0] sm:$0xff]
        %v302 = vld [vmem:[%s229 + $0x1b8] sm:$0xff]
        %v303 = vld [vmem:[%s229 + $0x1c0] sm:$0xff]
        %v304 = vld [vmem:[%s229 + $0x1c8] sm:$0xff]
        %v305 = vld [vmem:[%s229 + $0x1d0] sm:$0xff]
        %v306 = vld [vmem:[%s229 + $0x1d8] sm:$0xff]
        %v307 = vld [vmem:[%s229 + $0x1e0] sm:$0xff]
        %v308 = vld [vmem:[%s229 + $0x1e8] sm:$0xff]
        %v309 = vld [vmem:[%s229 + $0x1f0] sm:$0xff]
        %v310 = vld [vmem:[%s229 + $0x1f8] sm:$0xff]
        %v311 = vld [vmem:[%s1] sm:$0xf]
        %v312 = vld [vmem:[%s1 + $0x4] sm:$0xf]
        %v313 = vld [vmem:[%s1 + $0x8] sm:$0xf]
        %v314 = vld [vmem:[%s1 + $0xc] sm:$0xf]
        %v315 = vld [vmem:[%s1 + $0x10] sm:$0xf]
        %v316 = vld [vmem:[%s1 + $0x14] sm:$0xf]
        %v317 = vld [vmem:[%s1 + $0x18] sm:$0xf]
        %v318 = vld [vmem:[%s1 + $0x1c] sm:$0xf]
        %v319 = vld [vmem:[%s1 + $0x20] sm:$0xf]
        %v320 = vld [vmem:[%s1 + $0x24] sm:$0xf]
        %v321 = vld [vmem:[%s1 + $0x28] sm:$0xf]
        %v322 = vld [vmem:[%s1 + $0x2c] sm:$0xf]
        %v323 = vld [vmem:[%s1 + $0x30] sm:$0xf]
        %v324 = vld [vmem:[%s1 + $0x34] sm:$0xf]
        %v325 = vld [vmem:[%s1 + $0x38] sm:$0xf]
        %v326 = vld [vmem:[%s1 + $0x3c] sm:$0xf]
        %v327 = vld [vmem:[%s1 + $0x40] sm:$0xf]
        %v328 = vld [vmem:[%s1 + $0x44] sm:$0xf]
        %v329 = vld [vmem:[%s1 + $0x48] sm:$0xf]
        %v330 = vld [vmem:[%s1 + $0x4c] sm:$0xf]
        %v331 = vld [vmem:[%s1 + $0x50] sm:$0xf]
        %v332 = vld [vmem:[%s1 + $0x54] sm:$0xf]
        %v333 = vld [vmem:[%s1 + $0x58] sm:$0xf]
        %v334 = vld [vmem:[%s1 + $0x5c] sm:$0xf]
        %v335 = vld [vmem:[%s1 + $0x60] sm:$0xf]
        %v336 = vld [vmem:[%s1 + $0x64] sm:$0xf]
        %v337 = vld [vmem:[%s1 + $0x68] sm:$0xf]
        %v338 = vld [vmem:[%s1 + $0x6c] sm:$0xf]
        %v339 = vld [vmem:[%s1 + $0x70] sm:$0xf]
        %v340 = vld [vmem:[%s1 + $0x74] sm:$0xf]
        %v341 = vld [vmem:[%s1 + $0x78] sm:$0xf]
        %v342 = vld [vmem:[%s1 + $0x7c] sm:$0xf]
        %v343 = vld [vmem:[%s1 + $0x80] sm:$0xf]
        %v344 = vld [vmem:[%s1 + $0x84] sm:$0xf]
        %v345 = vld [vmem:[%s1 + $0x88] sm:$0xf]
        %v346 = vld [vmem:[%s1 + $0x8c] sm:$0xf]
        %v347 = vld [vmem:[%s1 + $0x90] sm:$0xf]
        %v348 = vld [vmem:[%s1 + $0x94] sm:$0xf]
        %v349 = vld [vmem:[%s1 + $0x98] sm:$0xf]
        %v350 = vld [vmem:[%s1 + $0x9c] sm:$0xf]
        %v351 = vld [vmem:[%s1 + $0xa0] sm:$0xf]
        %v352 = vld [vmem:[%s1 + $0xa4] sm:$0xf]
        %v353 = vld [vmem:[%s1 + $0xa8] sm:$0xf]
        %v354 = vld [vmem:[%s1 + $0xac] sm:$0xf]
        %v355 = vld [vmem:[%s1 + $0xb0] sm:$0xf]
        %v356 = vld [vmem:[%s1 + $0xb4] sm:$0xf]
        %v357 = vld [vmem:[%s1 + $0xb8] sm:$0xf]
        %v358 = vld [vmem:[%s1 + $0xbc] sm:$0xf]
        %v359 = vld [vmem:[%s1 + $0xc0] sm:$0xf]
        %v360 = vld [vmem:[%s1 + $0xc4] sm:$0xf]
        %v361 = vld [vmem:[%s1 + $0xc8] sm:$0xf]
        %v362 = vld [vmem:[%s1 + $0xcc] sm:$0xf]
        %v363 = vld [vmem:[%s1 + $0xd0] sm:$0xf]
        %v364 = vld [vmem:[%s1 + $0xd4] sm:$0xf]
        %v365 = vld [vmem:[%s1 + $0xd8] sm:$0xf]
        %v366 = vld [vmem:[%s1 + $0xdc] sm:$0xf]
        %v367 = vld [vmem:[%s1 + $0xe0] sm:$0xf]
        %v368 = vld [vmem:[%s1 + $0xe4] sm:$0xf]
        %v369 = vld [vmem:[%s1 + $0xe8] sm:$0xf]
        %v370 = vld [vmem:[%s1 + $0xec] sm:$0xf]
        %v371 = vld [vmem:[%s1 + $0xf0] sm:$0xf]
        %v372 = vld [vmem:[%s1 + $0xf4] sm:$0xf]
        %v373 = vld [vmem:[%s1 + $0xf8] sm:$0xf]
        %v374 = vld [vmem:[%s1 + $0xfc] sm:$0xf]
        %v439 = vunpack.c.l.b16 %v247
        %v440 = vunpack.c.h.b16 %v247
        %v441 = vunpack.c.l.b16 %v248
        %v442 = vunpack.c.h.b16 %v248
        %v443 = vunpack.c.l.b16 %v249
        %v444 = vunpack.c.h.b16 %v249
        %v445 = vunpack.c.l.b16 %v250
        %v446 = vunpack.c.h.b16 %v250
        %v447 = vunpack.c.l.b16 %v251
        %v448 = vunpack.c.h.b16 %v251
        %v449 = vunpack.c.l.b16 %v252
        %v450 = vunpack.c.h.b16 %v252
        %v451 = vunpack.c.l.b16 %v253
        %v452 = vunpack.c.h.b16 %v253
        %v453 = vunpack.c.l.b16 %v254
        %v454 = vunpack.c.h.b16 %v254
        %v455 = vunpack.c.l.b16 %v255
        %v456 = vunpack.c.h.b16 %v255
        %v457 = vunpack.c.l.b16 %v256
        %v458 = vunpack.c.h.b16 %v256
        %v459 = vunpack.c.l.b16 %v257
        %v460 = vunpack.c.h.b16 %v257
        %v461 = vunpack.c.l.b16 %v258
        %v462 = vunpack.c.h.b16 %v258
        %v463 = vunpack.c.l.b16 %v259
        %v464 = vunpack.c.h.b16 %v259
        %v465 = vunpack.c.l.b16 %v260
        %v466 = vunpack.c.h.b16 %v260
        %v467 = vunpack.c.l.b16 %v261
        %v468 = vunpack.c.h.b16 %v261
        %v469 = vunpack.c.l.b16 %v262
        %v470 = vunpack.c.h.b16 %v262
        %v471 = vunpack.c.l.b16 %v263
        %v472 = vunpack.c.h.b16 %v263
        %v473 = vunpack.c.l.b16 %v264
        %v474 = vunpack.c.h.b16 %v264
        %v475 = vunpack.c.l.b16 %v265
        %v476 = vunpack.c.h.b16 %v265
        %v477 = vunpack.c.l.b16 %v266
        %v478 = vunpack.c.h.b16 %v266
        %v479 = vunpack.c.l.b16 %v267
        %v480 = vunpack.c.h.b16 %v267
        %v481 = vunpack.c.l.b16 %v268
        %v482 = vunpack.c.h.b16 %v268
        %v483 = vunpack.c.l.b16 %v269
        %v484 = vunpack.c.h.b16 %v269
        %v485 = vunpack.c.l.b16 %v270
        %v486 = vunpack.c.h.b16 %v270
        %v487 = vunpack.c.l.b16 %v271
        %v488 = vunpack.c.h.b16 %v271
        %v489 = vunpack.c.l.b16 %v272
        %v490 = vunpack.c.h.b16 %v272
        %v491 = vunpack.c.l.b16 %v273
        %v492 = vunpack.c.h.b16 %v273
        %v493 = vunpack.c.l.b16 %v274
        %v494 = vunpack.c.h.b16 %v274
        %v495 = vunpack.c.l.b16 %v275
        %v496 = vunpack.c.h.b16 %v275
        %v497 = vunpack.c.l.b16 %v276
        %v498 = vunpack.c.h.b16 %v276
        %v499 = vunpack.c.l.b16 %v277
        %v500 = vunpack.c.h.b16 %v277
        %v501 = vunpack.c.l.b16 %v278
        %v502 = vunpack.c.h.b16 %v278
        %v503 = vunpack.c.l.b16 %v279
        %v504 = vunpack.c.h.b16 %v279
        %v505 = vunpack.c.l.b16 %v280
        %v506 = vunpack.c.h.b16 %v280
        %v507 = vunpack.c.l.b16 %v281
        %v508 = vunpack.c.h.b16 %v281
        %v509 = vunpack.c.l.b16 %v282
        %v510 = vunpack.c.h.b16 %v282
        %v511 = vunpack.c.l.b16 %v283
        %v512 = vunpack.c.h.b16 %v283
        %v513 = vunpack.c.l.b16 %v284
        %v514 = vunpack.c.h.b16 %v284
        %v515 = vunpack.c.l.b16 %v285
        %v516 = vunpack.c.h.b16 %v285
        %v517 = vunpack.c.l.b16 %v286
        %v518 = vunpack.c.h.b16 %v286
        %v519 = vunpack.c.l.b16 %v287
        %v520 = vunpack.c.h.b16 %v287
        %v521 = vunpack.c.l.b16 %v288
        %v522 = vunpack.c.h.b16 %v288
        %v523 = vunpack.c.l.b16 %v289
        %v524 = vunpack.c.h.b16 %v289
        %v525 = vunpack.c.l.b16 %v290
        %v526 = vunpack.c.h.b16 %v290
        %v527 = vunpack.c.l.b16 %v291
        %v528 = vunpack.c.h.b16 %v291
        %v529 = vunpack.c.l.b16 %v292
        %v530 = vunpack.c.h.b16 %v292
        %v531 = vunpack.c.l.b16 %v293
        %v532 = vunpack.c.h.b16 %v293
        %v533 = vunpack.c.l.b16 %v294
        %v534 = vunpack.c.h.b16 %v294
        %v535 = vunpack.c.l.b16 %v295
        %v536 = vunpack.c.h.b16 %v295
        %v537 = vunpack.c.l.b16 %v296
        %v538 = vunpack.c.h.b16 %v296
        %v539 = vunpack.c.l.b16 %v297
        %v540 = vunpack.c.h.b16 %v297
        %v541 = vunpack.c.l.b16 %v298
        %v542 = vunpack.c.h.b16 %v298
        %v543 = vunpack.c.l.b16 %v299
        %v544 = vunpack.c.h.b16 %v299
        %v545 = vunpack.c.l.b16 %v300
        %v546 = vunpack.c.h.b16 %v300
        %v547 = vunpack.c.l.b16 %v301
        %v548 = vunpack.c.h.b16 %v301
        %v549 = vunpack.c.l.b16 %v302
        %v550 = vunpack.c.h.b16 %v302
        %v551 = vunpack.c.l.b16 %v303
        %v552 = vunpack.c.h.b16 %v303
        %v553 = vunpack.c.l.b16 %v304
        %v554 = vunpack.c.h.b16 %v304
        %v555 = vunpack.c.l.b16 %v305
        %v556 = vunpack.c.h.b16 %v305
        %v557 = vunpack.c.l.b16 %v306
        %v558 = vunpack.c.h.b16 %v306
        %v559 = vunpack.c.l.b16 %v307
        %v560 = vunpack.c.h.b16 %v307
        %v561 = vunpack.c.l.b16 %v308
        %v562 = vunpack.c.h.b16 %v308
        %v563 = vunpack.c.l.b16 %v309
        %v564 = vunpack.c.h.b16 %v309
        %v565 = vunpack.c.l.b16 %v310
        %v566 = vunpack.c.h.b16 %v310
        %v567 = vpack.c.b16 %v443, %v439
        %v568 = vpack.c.b16 %v444, %v440
        %v569 = vpack.c.b16 %v445, %v441
        %v570 = vpack.c.b16 %v446, %v442
        %v571 = vpack.c.b16 %v451, %v447
        %v572 = vpack.c.b16 %v452, %v448
        %v573 = vpack.c.b16 %v453, %v449
        %v574 = vpack.c.b16 %v454, %v450
        %v575 = vpack.c.b16 %v459, %v455
        %v576 = vpack.c.b16 %v460, %v456
        %v577 = vpack.c.b16 %v461, %v457
        %v578 = vpack.c.b16 %v462, %v458
        %v579 = vpack.c.b16 %v467, %v463
        %v580 = vpack.c.b16 %v468, %v464
        %v581 = vpack.c.b16 %v469, %v465
        %v582 = vpack.c.b16 %v470, %v466
        %v583 = vpack.c.b16 %v475, %v471
        %v584 = vpack.c.b16 %v476, %v472
        %v585 = vpack.c.b16 %v477, %v473
        %v586 = vpack.c.b16 %v478, %v474
        %v587 = vpack.c.b16 %v483, %v479
        %v588 = vpack.c.b16 %v484, %v480
        %v589 = vpack.c.b16 %v485, %v481
        %v590 = vpack.c.b16 %v486, %v482
        %v591 = vpack.c.b16 %v491, %v487
        %v592 = vpack.c.b16 %v492, %v488
        %v593 = vpack.c.b16 %v493, %v489
        %v594 = vpack.c.b16 %v494, %v490
        %v595 = vpack.c.b16 %v499, %v495
        %v596 = vpack.c.b16 %v500, %v496
        %v597 = vpack.c.b16 %v501, %v497
        %v598 = vpack.c.b16 %v502, %v498
        %v599 = vpack.c.b16 %v507, %v503
        %v600 = vpack.c.b16 %v508, %v504
        %v601 = vpack.c.b16 %v509, %v505
        %v602 = vpack.c.b16 %v510, %v506
        %v603 = vpack.c.b16 %v515, %v511
        %v604 = vpack.c.b16 %v516, %v512
        %v605 = vpack.c.b16 %v517, %v513
        %v606 = vpack.c.b16 %v518, %v514
        %v607 = vpack.c.b16 %v523, %v519
        %v608 = vpack.c.b16 %v524, %v520
        %v609 = vpack.c.b16 %v525, %v521
        %v610 = vpack.c.b16 %v526, %v522
        %v611 = vpack.c.b16 %v531, %v527
        %v612 = vpack.c.b16 %v532, %v528
        %v613 = vpack.c.b16 %v533, %v529
        %v614 = vpack.c.b16 %v534, %v530
        %v615 = vpack.c.b16 %v539, %v535
        %v616 = vpack.c.b16 %v540, %v536
        %v617 = vpack.c.b16 %v541, %v537
        %v618 = vpack.c.b16 %v542, %v538
        %v619 = vpack.c.b16 %v547, %v543
        %v620 = vpack.c.b16 %v548, %v544
        %v621 = vpack.c.b16 %v549, %v545
        %v622 = vpack.c.b16 %v550, %v546
        %v623 = vpack.c.b16 %v555, %v551
        %v624 = vpack.c.b16 %v556, %v552
        %v625 = vpack.c.b16 %v557, %v553
        %v626 = vpack.c.b16 %v558, %v554
        %v627 = vpack.c.b16 %v563, %v559
        %v628 = vpack.c.b16 %v564, %v560
        %v629 = vpack.c.b16 %v565, %v561
        %v630 = vpack.c.b16 %v566, %v562
        %v759 = vunpack.c.l.b16 %v311
        %v760 = vunpack.c.l.b16 %v312
        %v761 = vunpack.c.l.b16 %v313
        %v762 = vunpack.c.l.b16 %v314
        %v763 = vunpack.c.l.b16 %v315
        %v764 = vunpack.c.l.b16 %v316
        %v765 = vunpack.c.l.b16 %v317
        %v766 = vunpack.c.l.b16 %v318
        %v767 = vunpack.c.l.b16 %v319
        %v768 = vunpack.c.l.b16 %v320
        %v769 = vunpack.c.l.b16 %v321
        %v770 = vunpack.c.l.b16 %v322
        %v771 = vunpack.c.l.b16 %v323
        %v772 = vunpack.c.l.b16 %v324
        %v773 = vunpack.c.l.b16 %v325
        %v774 = vunpack.c.l.b16 %v326
        %v775 = vunpack.c.l.b16 %v327
        %v776 = vunpack.c.l.b16 %v328
        %v777 = vunpack.c.l.b16 %v329
        %v778 = vunpack.c.l.b16 %v330
        %v779 = vunpack.c.l.b16 %v331
        %v780 = vunpack.c.l.b16 %v332
        %v781 = vunpack.c.l.b16 %v333
        %v782 = vunpack.c.l.b16 %v334
        %v783 = vunpack.c.l.b16 %v335
        %v784 = vunpack.c.l.b16 %v336
        %v785 = vunpack.c.l.b16 %v337
        %v786 = vunpack.c.l.b16 %v338
        %v787 = vunpack.c.l.b16 %v339
        %v788 = vunpack.c.l.b16 %v340
        %v789 = vunpack.c.l.b16 %v341
        %v790 = vunpack.c.l.b16 %v342
        %v791 = vunpack.c.l.b16 %v343
        %v792 = vunpack.c.l.b16 %v344
        %v793 = vunpack.c.l.b16 %v345
        %v794 = vunpack.c.l.b16 %v346
        %v795 = vunpack.c.l.b16 %v347
        %v796 = vunpack.c.l.b16 %v348
        %v797 = vunpack.c.l.b16 %v349
        %v798 = vunpack.c.l.b16 %v350
        %v799 = vunpack.c.l.b16 %v351
        %v800 = vunpack.c.l.b16 %v352
        %v801 = vunpack.c.l.b16 %v353
        %v802 = vunpack.c.l.b16 %v354
        %v803 = vunpack.c.l.b16 %v355
        %v804 = vunpack.c.l.b16 %v356
        %v805 = vunpack.c.l.b16 %v357
        %v806 = vunpack.c.l.b16 %v358
        %v807 = vunpack.c.l.b16 %v359
        %v808 = vunpack.c.l.b16 %v360
        %v809 = vunpack.c.l.b16 %v361
        %v810 = vunpack.c.l.b16 %v362
        %v811 = vunpack.c.l.b16 %v363
        %v812 = vunpack.c.l.b16 %v364
        %v813 = vunpack.c.l.b16 %v365
        %v814 = vunpack.c.l.b16 %v366
        %v815 = vunpack.c.l.b16 %v367
        %v816 = vunpack.c.l.b16 %v368
        %v817 = vunpack.c.l.b16 %v369
        %v818 = vunpack.c.l.b16 %v370
        %v819 = vunpack.c.l.b16 %v371
        %v820 = vunpack.c.l.b16 %v372
        %v821 = vunpack.c.l.b16 %v373
        %v822 = vunpack.c.l.b16 %v374
        %v823 = vpack.c.b16 %v760, %v759
        %v824 = vpack.c.b16 %v762, %v761
        %v825 = vpack.c.b16 %v764, %v763
        %v826 = vpack.c.b16 %v766, %v765
        %v827 = vpack.c.b16 %v768, %v767
        %v828 = vpack.c.b16 %v770, %v769
        %v829 = vpack.c.b16 %v772, %v771
        %v830 = vpack.c.b16 %v774, %v773
        %v831 = vpack.c.b16 %v776, %v775
        %v832 = vpack.c.b16 %v778, %v777
        %v833 = vpack.c.b16 %v780, %v779
        %v834 = vpack.c.b16 %v782, %v781
        %v835 = vpack.c.b16 %v784, %v783
        %v836 = vpack.c.b16 %v786, %v785
        %v837 = vpack.c.b16 %v788, %v787
        %v838 = vpack.c.b16 %v790, %v789
        %v839 = vpack.c.b16 %v792, %v791
        %v840 = vpack.c.b16 %v794, %v793
        %v841 = vpack.c.b16 %v796, %v795
        %v842 = vpack.c.b16 %v798, %v797
        %v843 = vpack.c.b16 %v800, %v799
        %v844 = vpack.c.b16 %v802, %v801
        %v845 = vpack.c.b16 %v804, %v803
        %v846 = vpack.c.b16 %v806, %v805
        %v847 = vpack.c.b16 %v808, %v807
        %v848 = vpack.c.b16 %v810, %v809
        %v849 = vpack.c.b16 %v812, %v811
        %v850 = vpack.c.b16 %v814, %v813
        %v851 = vpack.c.b16 %v816, %v815
        %v852 = vpack.c.b16 %v818, %v817
        %v853 = vpack.c.b16 %v820, %v819
        %v854 = vpack.c.b16 %v822, %v821
        %887 = vmatprep.subr.bf16.mxu0 0
        %888 = vmatpush1.bf16.msra.mxu0 %v823
        %889 = vmatprep.subr.bf16.mxu0 0
        %890 = vmatpush1.bf16.msra.mxu0 %v824
        %891 = vmatprep.subr.bf16.mxu0 0
        %892 = vmatpush1.bf16.msra.mxu0 %v825
        %893 = vmatprep.subr.bf16.mxu0 0
        %894 = vmatpush1.bf16.msra.mxu0 %v826
        %895 = vmatprep.subr.bf16.mxu0 0
        %896 = vmatpush1.bf16.msra.mxu0 %v827
        %897 = vmatprep.subr.bf16.mxu0 0
        %898 = vmatpush1.bf16.msra.mxu0 %v828
        %899 = vmatprep.subr.bf16.mxu0 0
        %900 = vmatpush1.bf16.msra.mxu0 %v829
        %901 = vmatprep.subr.bf16.mxu0 0
        %902 = vmatpush1.bf16.msra.mxu0 %v830
        %903 = vmatprep.subr.bf16.mxu0 0
        %904 = vmatpush1.bf16.msra.mxu0 %v831
        %905 = vmatprep.subr.bf16.mxu0 0
        %906 = vmatpush1.bf16.msra.mxu0 %v832
        %907 = vmatprep.subr.bf16.mxu0 0
        %908 = vmatpush1.bf16.msra.mxu0 %v833
        %909 = vmatprep.subr.bf16.mxu0 0
        %910 = vmatpush1.bf16.msra.mxu0 %v834
        %911 = vmatprep.subr.bf16.mxu0 0
        %912 = vmatpush1.bf16.msra.mxu0 %v835
        %913 = vmatprep.subr.bf16.mxu0 0
        %914 = vmatpush1.bf16.msra.mxu0 %v836
        %915 = vmatprep.subr.bf16.mxu0 0
        %916 = vmatpush1.bf16.msra.mxu0 %v837
        %917 = vmatprep.subr.bf16.mxu0 0
        %918 = vmatpush1.bf16.msra.mxu0 %v838
        %919 = vmatprep.mubr.bf16.mxu0 %v568
        %920 = vmatmul.mubr.bf16.gmra.mrb[0].mxu0 %v567
        %v921 = vpop.f32.mrb[0].mxu0
        %v922 = vadd.f32 0.0, %v921
        %v923 = vpop.f32.mrb[0].mxu0
        %v924 = vpop.f32.mrb[0].mxu0
        %v925 = vadd.f32 0.0, %v924
        %v926 = vpop.f32.mrb[0].mxu0
        %927 = vmatprep.mubr.bf16.mxu0 %v572
        %928 = vmatmul.mubr.bf16.gmra.mrb[0].mxu0 %v571
        %v929 = vpop.f32.mrb[0].mxu0
        %v930 = vadd.f32 0.0, %v929
        %v931 = vpop.f32.mrb[0].mxu0
        %v932 = vpop.f32.mrb[0].mxu0
        %v933 = vadd.f32 0.0, %v932
        %v934 = vpop.f32.mrb[0].mxu0
        %935 = vmatprep.mubr.bf16.mxu0 %v576
        %936 = vmatmul.mubr.bf16.gmra.mrb[0].mxu0 %v575
        %v937 = vpop.f32.mrb[0].mxu0
        %v938 = vadd.f32 0.0, %v937
        %v939 = vpop.f32.mrb[0].mxu0
        %v940 = vpop.f32.mrb[0].mxu0
        %v941 = vadd.f32 0.0, %v940
        %v942 = vpop.f32.mrb[0].mxu0
        %943 = vmatprep.mubr.bf16.mxu0 %v580
        %944 = vmatmul.mubr.bf16.gmra.mrb[0].mxu0 %v579
        %v945 = vpop.f32.mrb[0].mxu0
        %v946 = vadd.f32 0.0, %v945
        %v947 = vpop.f32.mrb[0].mxu0
        %v948 = vpop.f32.mrb[0].mxu0
        %v949 = vadd.f32 0.0, %v948
        %v950 = vpop.f32.mrb[0].mxu0
        %951 = vmatprep.mubr.bf16.mxu0 %v584
        %952 = vmatmul.mubr.bf16.gmra.mrb[0].mxu0 %v583
        %v953 = vpop.f32.mrb[0].mxu0
        %v954 = vadd.f32 0.0, %v953
        %v955 = vpop.f32.mrb[0].mxu0
        %v956 = vpop.f32.mrb[0].mxu0
        %v957 = vadd.f32 0.0, %v956
        %v958 = vpop.f32.mrb[0].mxu0
        %959 = vmatprep.mubr.bf16.mxu0 %v588
        %960 = vmatmul.mubr.bf16.gmra.mrb[0].mxu0 %v587
        %v961 = vpop.f32.mrb[0].mxu0
        %v962 = vadd.f32 0.0, %v961
        %v963 = vpop.f32.mrb[0].mxu0
        %v964 = vpop.f32.mrb[0].mxu0
        %v965 = vadd.f32 0.0, %v964
        %v966 = vpop.f32.mrb[0].mxu0
        %967 = vmatprep.mubr.bf16.mxu0 %v592
        %968 = vmatmul.mubr.bf16.gmra.mrb[0].mxu0 %v591
        %v969 = vpop.f32.mrb[0].mxu0
        %v970 = vadd.f32 0.0, %v969
        %v971 = vpop.f32.mrb[0].mxu0
        %v972 = vpop.f32.mrb[0].mxu0
        %v973 = vadd.f32 0.0, %v972
        %v974 = vpop.f32.mrb[0].mxu0
        %975 = vmatprep.mubr.bf16.mxu0 %v596
        %976 = vmatmul.mubr.bf16.gmra.mrb[0].mxu0 %v595
        %v977 = vpop.f32.mrb[0].mxu0
        %v978 = vadd.f32 0.0, %v977
        %v979 = vpop.f32.mrb[0].mxu0
        %v980 = vpop.f32.mrb[0].mxu0
        %v981 = vadd.f32 0.0, %v980
        %v982 = vpop.f32.mrb[0].mxu0
        %983 = vmatprep.mubr.bf16.mxu0 %v600
        %984 = vmatmul.mubr.bf16.gmra.mrb[0].mxu0 %v599
        %v985 = vpop.f32.mrb[0].mxu0
        %v986 = vadd.f32 0.0, %v985
        %v987 = vpop.f32.mrb[0].mxu0
        %v988 = vpop.f32.mrb[0].mxu0
        %v989 = vadd.f32 0.0, %v988
        %v990 = vpop.f32.mrb[0].mxu0
        %991 = vmatprep.mubr.bf16.mxu0 %v604
        %992 = vmatmul.mubr.bf16.gmra.mrb[0].mxu0 %v603
        %v993 = vpop.f32.mrb[0].mxu0
        %v994 = vadd.f32 0.0, %v993
        %v995 = vpop.f32.mrb[0].mxu0
        %v996 = vpop.f32.mrb[0].mxu0
        %v997 = vadd.f32 0.0, %v996
        %v998 = vpop.f32.mrb[0].mxu0
        %999 = vmatprep.mubr.bf16.mxu0 %v608
        %1000 = vmatmul.mubr.bf16.gmra.mrb[0].mxu0 %v607
        %v1001 = vpop.f32.mrb[0].mxu0
        %v1002 = vadd.f32 0.0, %v1001
        %v1003 = vpop.f32.mrb[0].mxu0
        %v1004 = vpop.f32.mrb[0].mxu0
        %v1005 = vadd.f32 0.0, %v1004
        %v1006 = vpop.f32.mrb[0].mxu0
        %1007 = vmatprep.mubr.bf16.mxu0 %v612
        %1008 = vmatmul.mubr.bf16.gmra.mrb[0].mxu0 %v611
        %v1009 = vpop.f32.mrb[0].mxu0
        %v1010 = vadd.f32 0.0, %v1009
        %v1011 = vpop.f32.mrb[0].mxu0
        %v1012 = vpop.f32.mrb[0].mxu0
        %v1013 = vadd.f32 0.0, %v1012
        %v1014 = vpop.f32.mrb[0].mxu0
        %1015 = vmatprep.mubr.bf16.mxu0 %v616
        %1016 = vmatmul.mubr.bf16.gmra.mrb[0].mxu0 %v615
        %v1017 = vpop.f32.mrb[0].mxu0
        %v1018 = vadd.f32 0.0, %v1017
        %v1019 = vpop.f32.mrb[0].mxu0
        %v1020 = vpop.f32.mrb[0].mxu0
        %v1021 = vadd.f32 0.0, %v1020
        %v1022 = vpop.f32.mrb[0].mxu0
        %1023 = vmatprep.mubr.bf16.mxu0 %v620
        %1024 = vmatmul.mubr.bf16.gmra.mrb[0].mxu0 %v619
        %v1025 = vpop.f32.mrb[0].mxu0
        %v1026 = vadd.f32 0.0, %v1025
        %v1027 = vpop.f32.mrb[0].mxu0
        %v1028 = vpop.f32.mrb[0].mxu0
        %v1029 = vadd.f32 0.0, %v1028
        %v1030 = vpop.f32.mrb[0].mxu0
        %1031 = vmatprep.mubr.bf16.mxu0 %v624
        %1032 = vmatmul.mubr.bf16.gmra.mrb[0].mxu0 %v623
        %v1033 = vpop.f32.mrb[0].mxu0
        %v1034 = vadd.f32 0.0, %v1033
        %v1035 = vpop.f32.mrb[0].mxu0
        %v1036 = vpop.f32.mrb[0].mxu0
        %v1037 = vadd.f32 0.0, %v1036
        %v1038 = vpop.f32.mrb[0].mxu0
        %1039 = vmatprep.mubr.bf16.mxu0 %v628
        %1040 = vmatmul.mubr.bf16.gmra.mrb[0].mxu0 %v627
        %v1041 = vpop.f32.mrb[0].mxu0
        %v1042 = vadd.f32 0.0, %v1041
        %v1043 = vpop.f32.mrb[0].mxu0
        %v1044 = vpop.f32.mrb[0].mxu0
        %v1045 = vadd.f32 0.0, %v1044
        %v1046 = vpop.f32.mrb[0].mxu0
        %1047 = vdwg.mxu0
        %1048 = vmatprep.subr.bf16.mxu0 0
        %1049 = vmatpush1.bf16.msra.mxu0 %v839
        %1050 = vmatprep.subr.bf16.mxu0 0
        %1051 = vmatpush1.bf16.msra.mxu0 %v840
        %1052 = vmatprep.subr.bf16.mxu0 0
        %1053 = vmatpush1.bf16.msra.mxu0 %v841
        %1054 = vmatprep.subr.bf16.mxu0 0
        %1055 = vmatpush1.bf16.msra.mxu0 %v842
        %1056 = vmatprep.subr.bf16.mxu0 0
        %1057 = vmatpush1.bf16.msra.mxu0 %v843
        %1058 = vmatprep.subr.bf16.mxu0 0
        %1059 = vmatpush1.bf16.msra.mxu0 %v844
        %1060 = vmatprep.subr.bf16.mxu0 0
        %1061 = vmatpush1.bf16.msra.mxu0 %v845
        %1062 = vmatprep.subr.bf16.mxu0 0
        %1063 = vmatpush1.bf16.msra.mxu0 %v846
        %1064 = vmatprep.subr.bf16.mxu0 0
        %1065 = vmatpush1.bf16.msra.mxu0 %v847
        %1066 = vmatprep.subr.bf16.mxu0 0
        %1067 = vmatpush1.bf16.msra.mxu0 %v848
        %1068 = vmatprep.subr.bf16.mxu0 0
        %1069 = vmatpush1.bf16.msra.mxu0 %v849
        %1070 = vmatprep.subr.bf16.mxu0 0
        %1071 = vmatpush1.bf16.msra.mxu0 %v850
        %1072 = vmatprep.subr.bf16.mxu0 0
        %1073 = vmatpush1.bf16.msra.mxu0 %v851
        %1074 = vmatprep.subr.bf16.mxu0 0
        %1075 = vmatpush1.bf16.msra.mxu0 %v852
        %1076 = vmatprep.subr.bf16.mxu0 0
        %1077 = vmatpush1.bf16.msra.mxu0 %v853
        %1078 = vmatprep.subr.bf16.mxu0 0
        %1079 = vmatpush1.bf16.msra.mxu0 %v854
        %1080 = vmatprep.mubr.bf16.mxu0 %v570
        %1081 = vmatmul.mubr.bf16.gmra.mrb[0].mxu0 %v569
        %v1082 = vpop.f32.mrb[0].mxu0
        %v1083 = vadd.f32 %v922, %v1082
        %v1084 = vpop.f32.mrb[0].mxu0
        %v1085 = vpop.f32.mrb[0].mxu0
        %v1086 = vadd.f32 %v925, %v1085
        %v1087 = vpop.f32.mrb[0].mxu0
        %1088 = vmatprep.mubr.bf16.mxu0 %v574
        %1089 = vmatmul.mubr.bf16.gmra.mrb[0].mxu0 %v573
        %v1090 = vpop.f32.mrb[0].mxu0
        %v1091 = vadd.f32 %v930, %v1090
        %v1092 = vpop.f32.mrb[0].mxu0
        %v1093 = vpop.f32.mrb[0].mxu0
        %v1094 = vadd.f32 %v933, %v1093
        %v1095 = vpop.f32.mrb[0].mxu0
        %1096 = vmatprep.mubr.bf16.mxu0 %v578
        %1097 = vmatmul.mubr.bf16.gmra.mrb[0].mxu0 %v577
        %v1098 = vpop.f32.mrb[0].mxu0
        %v1099 = vadd.f32 %v938, %v1098
        %v1100 = vpop.f32.mrb[0].mxu0
        %v1101 = vpop.f32.mrb[0].mxu0
        %v1102 = vadd.f32 %v941, %v1101
        %v1103 = vpop.f32.mrb[0].mxu0
        %1104 = vmatprep.mubr.bf16.mxu0 %v582
        %1105 = vmatmul.mubr.bf16.gmra.mrb[0].mxu0 %v581
        %v1106 = vpop.f32.mrb[0].mxu0
        %v1107 = vadd.f32 %v946, %v1106
        %v1108 = vpop.f32.mrb[0].mxu0
        %v1109 = vpop.f32.mrb[0].mxu0
        %v1110 = vadd.f32 %v949, %v1109
        %v1111 = vpop.f32.mrb[0].mxu0
        %1112 = vmatprep.mubr.bf16.mxu0 %v586
        %1113 = vmatmul.mubr.bf16.gmra.mrb[0].mxu0 %v585
        %v1114 = vpop.f32.mrb[0].mxu0
        %v1115 = vadd.f32 %v954, %v1114
        %v1116 = vpop.f32.mrb[0].mxu0
        %v1117 = vpop.f32.mrb[0].mxu0
        %v1118 = vadd.f32 %v957, %v1117
        %v1119 = vpop.f32.mrb[0].mxu0
        %1120 = vmatprep.mubr.bf16.mxu0 %v590
        %1121 = vmatmul.mubr.bf16.gmra.mrb[0].mxu0 %v589
        %v1122 = vpop.f32.mrb[0].mxu0
        %v1123 = vadd.f32 %v962, %v1122
        %v1124 = vpop.f32.mrb[0].mxu0
        %v1125 = vpop.f32.mrb[0].mxu0
        %v1126 = vadd.f32 %v965, %v1125
        %v1127 = vpop.f32.mrb[0].mxu0
        %1128 = vmatprep.mubr.bf16.mxu0 %v594
        %1129 = vmatmul.mubr.bf16.gmra.mrb[0].mxu0 %v593
        %v1130 = vpop.f32.mrb[0].mxu0
        %v1131 = vadd.f32 %v970, %v1130
        %v1132 = vpop.f32.mrb[0].mxu0
        %v1133 = vpop.f32.mrb[0].mxu0
        %v1134 = vadd.f32 %v973, %v1133
        %v1135 = vpop.f32.mrb[0].mxu0
        %1136 = vmatprep.mubr.bf16.mxu0 %v598
        %1137 = vmatmul.mubr.bf16.gmra.mrb[0].mxu0 %v597
        %v1138 = vpop.f32.mrb[0].mxu0
        %v1139 = vadd.f32 %v978, %v1138
        %v1140 = vpop.f32.mrb[0].mxu0
        %v1141 = vpop.f32.mrb[0].mxu0
        %v1142 = vadd.f32 %v981, %v1141
        %v1143 = vpop.f32.mrb[0].mxu0
        %1144 = vmatprep.mubr.bf16.mxu0 %v602
        %1145 = vmatmul.mubr.bf16.gmra.mrb[0].mxu0 %v601
        %v1146 = vpop.f32.mrb[0].mxu0
        %v1147 = vadd.f32 %v986, %v1146
        %v1148 = vpop.f32.mrb[0].mxu0
        %v1149 = vpop.f32.mrb[0].mxu0
        %v1150 = vadd.f32 %v989, %v1149
        %v1151 = vpop.f32.mrb[0].mxu0
        %1152 = vmatprep.mubr.bf16.mxu0 %v606
        %1153 = vmatmul.mubr.bf16.gmra.mrb[0].mxu0 %v605
        %v1154 = vpop.f32.mrb[0].mxu0
        %v1155 = vadd.f32 %v994, %v1154
        %v1156 = vpop.f32.mrb[0].mxu0
        %v1157 = vpop.f32.mrb[0].mxu0
        %v1158 = vadd.f32 %v997, %v1157
        %v1159 = vpop.f32.mrb[0].mxu0
        %1160 = vmatprep.mubr.bf16.mxu0 %v610
        %1161 = vmatmul.mubr.bf16.gmra.mrb[0].mxu0 %v609
        %v1162 = vpop.f32.mrb[0].mxu0
        %v1163 = vadd.f32 %v1002, %v1162
        %v1164 = vpop.f32.mrb[0].mxu0
        %v1165 = vpop.f32.mrb[0].mxu0
        %v1166 = vadd.f32 %v1005, %v1165
        %v1167 = vpop.f32.mrb[0].mxu0
        %1168 = vmatprep.mubr.bf16.mxu0 %v614
        %1169 = vmatmul.mubr.bf16.gmra.mrb[0].mxu0 %v613
        %v1170 = vpop.f32.mrb[0].mxu0
        %v1171 = vadd.f32 %v1010, %v1170
        %v1172 = vpop.f32.mrb[0].mxu0
        %v1173 = vpop.f32.mrb[0].mxu0
        %v1174 = vadd.f32 %v1013, %v1173
        %v1175 = vpop.f32.mrb[0].mxu0
        %1176 = vmatprep.mubr.bf16.mxu0 %v618
        %1177 = vmatmul.mubr.bf16.gmra.mrb[0].mxu0 %v617
        %v1178 = vpop.f32.mrb[0].mxu0
        %v1179 = vadd.f32 %v1018, %v1178
        %v1180 = vpop.f32.mrb[0].mxu0
        %v1181 = vpop.f32.mrb[0].mxu0
        %v1182 = vadd.f32 %v1021, %v1181
        %v1183 = vpop.f32.mrb[0].mxu0
        %1184 = vmatprep.mubr.bf16.mxu0 %v622
        %1185 = vmatmul.mubr.bf16.gmra.mrb[0].mxu0 %v621
        %v1186 = vpop.f32.mrb[0].mxu0
        %v1187 = vadd.f32 %v1026, %v1186
        %v1188 = vpop.f32.mrb[0].mxu0
        %v1189 = vpop.f32.mrb[0].mxu0
        %v1190 = vadd.f32 %v1029, %v1189
        %v1191 = vpop.f32.mrb[0].mxu0
        %1192 = vmatprep.mubr.bf16.mxu0 %v626
        %1193 = vmatmul.mubr.bf16.gmra.mrb[0].mxu0 %v625
        %v1194 = vpop.f32.mrb[0].mxu0
        %v1195 = vadd.f32 %v1034, %v1194
        %v1196 = vpop.f32.mrb[0].mxu0
        %v1197 = vpop.f32.mrb[0].mxu0
        %v1198 = vadd.f32 %v1037, %v1197
        %v1199 = vpop.f32.mrb[0].mxu0
        %1200 = vmatprep.mubr.bf16.mxu0 %v630
        %1201 = vmatmul.mubr.bf16.gmra.mrb[0].mxu0 %v629
        %v1202 = vpop.f32.mrb[0].mxu0
        %v1203 = vadd.f32 %v1042, %v1202
        %v1204 = vpop.f32.mrb[0].mxu0
        %v1205 = vpop.f32.mrb[0].mxu0
        %v1206 = vadd.f32 %v1045, %v1205
        %v1207 = vpop.f32.mrb[0].mxu0
        %1208 = vdwg.mxu0
        %s1209 = smul.u32 %s20, 256
        %s1210 = scalar_lea.vmem [#allocation2], %s1209
        %1211 = vst [vmem:[%s1210] sm:$0xff] %v1083
        %1212 = vst [vmem:[%s1210 + $0x8] sm:$0xff] %v1086
        %1213 = vst [vmem:[%s1210 + $0x10] sm:$0xff] %v1091
        %1214 = vst [vmem:[%s1210 + $0x18] sm:$0xff] %v1094
        %1215 = vst [vmem:[%s1210 + $0x20] sm:$0xff] %v1099
        %1216 = vst [vmem:[%s1210 + $0x28] sm:$0xff] %v1102
        %1217 = vst [vmem:[%s1210 + $0x30] sm:$0xff] %v1107
        %1218 = vst [vmem:[%s1210 + $0x38] sm:$0xff] %v1110
        %1219 = vst [vmem:[%s1210 + $0x40] sm:$0xff] %v1115
        %1220 = vst [vmem:[%s1210 + $0x48] sm:$0xff] %v1118
        %1221 = vst [vmem:[%s1210 + $0x50] sm:$0xff] %v1123
        %1222 = vst [vmem:[%s1210 + $0x58] sm:$0xff] %v1126
        %1223 = vst [vmem:[%s1210 + $0x60] sm:$0xff] %v1131
        %1224 = vst [vmem:[%s1210 + $0x68] sm:$0xff] %v1134
        %1225 = vst [vmem:[%s1210 + $0x70] sm:$0xff] %v1139
        %1226 = vst [vmem:[%s1210 + $0x78] sm:$0xff] %v1142
        %1227 = vst [vmem:[%s1210 + $0x80] sm:$0xff] %v1147
        %1228 = vst [vmem:[%s1210 + $0x88] sm:$0xff] %v1150
        %1229 = vst [vmem:[%s1210 + $0x90] sm:$0xff] %v1155
        %1230 = vst [vmem:[%s1210 + $0x98] sm:$0xff] %v1158
        %1231 = vst [vmem:[%s1210 + $0xa0] sm:$0xff] %v1163
        %1232 = vst [vmem:[%s1210 + $0xa8] sm:$0xff] %v1166
        %1233 = vst [vmem:[%s1210 + $0xb0] sm:$0xff] %v1171
        %1234 = vst [vmem:[%s1210 + $0xb8] sm:$0xff] %v1174
        %1235 = vst [vmem:[%s1210 + $0xc0] sm:$0xff] %v1179
        %1236 = vst [vmem:[%s1210 + $0xc8] sm:$0xff] %v1182
        %1237 = vst [vmem:[%s1210 + $0xd0] sm:$0xff] %v1187
        %1238 = vst [vmem:[%s1210 + $0xd8] sm:$0xff] %v1190
        %1239 = vst [vmem:[%s1210 + $0xe0] sm:$0xff] %v1195
        %1240 = vst [vmem:[%s1210 + $0xe8] sm:$0xff] %v1198
        %1241 = vst [vmem:[%s1210 + $0xf0] sm:$0xff] %v1203
        %1242 = vst [vmem:[%s1210 + $0xf8] sm:$0xff] %v1206
        %p1243 = scmp.eq.s32.totalorder %s20, 0
        // Predicated region
        $region41: #{csblock_forward.5} parent=39 // pred_check
          %p1244 = pneg %p1243
        $region42: #{csblock_forward.5} parent=39 // pred_check_branch
          %1246 = sbr.rel (%p1244) target = $region44
        $region43: #{csblock_forward.5} parent=39 // pred_region
          %1247 = vst [vmem:[#allocation3] sm:$0x3] 0.0
        $region44: #{csblock_forward.5} parent=39 // pred_fallthru
          _
        %v1248 = vld [vmem:[#allocation3] sm:$0x1]
        %v1249 = vadd.f32 %v1083, %v1086
        %v1250 = vadd.f32 %v1249, %v1091
        %v1251 = vadd.f32 %v1250, %v1094
        %v1252 = vadd.f32 %v1251, %v1099
        %v1253 = vadd.f32 %v1252, %v1102
        %v1254 = vadd.f32 %v1253, %v1107
        %v1255 = vadd.f32 %v1254, %v1110
        %v1256 = vadd.f32 %v1255, %v1115
        %v1257 = vadd.f32 %v1256, %v1118
        %v1258 = vadd.f32 %v1257, %v1123
        %v1259 = vadd.f32 %v1258, %v1126
        %v1260 = vadd.f32 %v1259, %v1131
        %v1261 = vadd.f32 %v1260, %v1134
        %v1262 = vadd.f32 %v1261, %v1139
        %v1263 = vadd.f32 %v1262, %v1142
        %v1264 = vadd.f32 %v1263, %v1147
        %v1265 = vadd.f32 %v1264, %v1150
        %v1266 = vadd.f32 %v1265, %v1155
        %v1267 = vadd.f32 %v1266, %v1158
        %v1268 = vadd.f32 %v1267, %v1163
        %v1269 = vadd.f32 %v1268, %v1166
        %v1270 = vadd.f32 %v1269, %v1171
        %v1271 = vadd.f32 %v1270, %v1174
        %v1272 = vadd.f32 %v1271, %v1179
        %v1273 = vadd.f32 %v1272, %v1182
        %v1274 = vadd.f32 %v1273, %v1187
        %v1275 = vadd.f32 %v1274, %v1190
        %v1276 = vadd.f32 %v1275, %v1195
        %v1277 = vadd.f32 %v1276, %v1198
        %v1278 = vadd.f32 %v1277, %v1203
        %v1279 = vadd.f32 %v1278, %v1206
        %v1280 = vrot.slane %v1279, 4
        %v1281 = vadd.f32 %v1279, %v1280
        %v1282 = vrot.slane %v1281, 2
        %v1283 = vadd.f32 %v1281, %v1282
        %v1284 = vrot.slane %v1283, 1
        %v1285 = vadd.f32 %v1283, %v1284
        %v1286 = vadd.f32 %v1248, %v1285
        %1287 = vst [vmem:[#allocation3] sm:$0x1] %v1286
        %v1288 = vld [vmem:[#allocation3 + $0x1] sm:$0x1]
        %v1289 = vmul.f32 %v1083, %v1083
        %v1290 = vmul.f32 %v1086, %v1086
        %v1291 = vmul.f32 %v1091, %v1091
        %v1292 = vmul.f32 %v1094, %v1094
        %v1293 = vmul.f32 %v1099, %v1099
        %v1294 = vmul.f32 %v1102, %v1102
        %v1295 = vmul.f32 %v1107, %v1107
        %v1296 = vmul.f32 %v1110, %v1110
        %v1297 = vmul.f32 %v1115, %v1115
        %v1298 = vmul.f32 %v1118, %v1118
        %v1299 = vmul.f32 %v1123, %v1123
        %v1300 = vmul.f32 %v1126, %v1126
        %v1301 = vmul.f32 %v1131, %v1131
        %v1302 = vmul.f32 %v1134, %v1134
        %v1303 = vmul.f32 %v1139, %v1139
        %v1304 = vmul.f32 %v1142, %v1142
        %v1305 = vmul.f32 %v1147, %v1147
        %v1306 = vmul.f32 %v1150, %v1150
        %v1307 = vmul.f32 %v1155, %v1155
        %v1308 = vmul.f32 %v1158, %v1158
        %v1309 = vmul.f32 %v1163, %v1163
        %v1310 = vmul.f32 %v1166, %v1166
        %v1311 = vmul.f32 %v1171, %v1171
        %v1312 = vmul.f32 %v1174, %v1174
        %v1313 = vmul.f32 %v1179, %v1179
        %v1314 = vmul.f32 %v1182, %v1182
        %v1315 = vmul.f32 %v1187, %v1187
        %v1316 = vmul.f32 %v1190, %v1190
        %v1317 = vmul.f32 %v1195, %v1195
        %v1318 = vmul.f32 %v1198, %v1198
        %v1319 = vmul.f32 %v1203, %v1203
        %v1320 = vmul.f32 %v1206, %v1206
        %v1321 = vadd.f32 %v1289, %v1290
        %v1322 = vadd.f32 %v1321, %v1291
        %v1323 = vadd.f32 %v1322, %v1292
        %v1324 = vadd.f32 %v1323, %v1293
        %v1325 = vadd.f32 %v1324, %v1294
        %v1326 = vadd.f32 %v1325, %v1295
        %v1327 = vadd.f32 %v1326, %v1296
        %v1328 = vadd.f32 %v1327, %v1297
        %v1329 = vadd.f32 %v1328, %v1298
        %v1330 = vadd.f32 %v1329, %v1299
        %v1331 = vadd.f32 %v1330, %v1300
        %v1332 = vadd.f32 %v1331, %v1301
        %v1333 = vadd.f32 %v1332, %v1302
        %v1334 = vadd.f32 %v1333, %v1303
        %v1335 = vadd.f32 %v1334, %v1304
        %v1336 = vadd.f32 %v1335, %v1305
        %v1337 = vadd.f32 %v1336, %v1306
        %v1338 = vadd.f32 %v1337, %v1307
        %v1339 = vadd.f32 %v1338, %v1308
        %v1340 = vadd.f32 %v1339, %v1309
        %v1341 = vadd.f32 %v1340, %v1310
        %v1342 = vadd.f32 %v1341, %v1311
        %v1343 = vadd.f32 %v1342, %v1312
        %v1344 = vadd.f32 %v1343, %v1313
        %v1345 = vadd.f32 %v1344, %v1314
        %v1346 = vadd.f32 %v1345, %v1315
        %v1347 = vadd.f32 %v1346, %v1316
        %v1348 = vadd.f32 %v1347, %v1317
        %v1349 = vadd.f32 %v1348, %v1318
        %v1350 = vadd.f32 %v1349, %v1319
        %v1351 = vadd.f32 %v1350, %v1320
        %v1352 = vrot.slane %v1351, 4
        %v1353 = vadd.f32 %v1351, %v1352
        %v1354 = vrot.slane %v1353, 2
        %v1355 = vadd.f32 %v1353, %v1354
        %v1356 = vrot.slane %v1355, 1
        %v1357 = vadd.f32 %v1355, %v1356
        %v1358 = vadd.f32 %v1288, %v1357
        %1359 = vst [vmem:[#allocation3 + $0x1] sm:$0x1] %v1358
      $region40: #{csblock_forward.5} parent=35 // pred_fallthru
        _
      %p1360 = scmp.eq.s32.totalorder %s19, 1
      // Predicated region
      $region45: #{csblock_forward.5} parent=35 // pred_check
        %p1361 = pneg %p1360
      $region46: #{csblock_forward.5} parent=35 // pred_check_branch
        %1363 = sbr.rel (%p1361) target = $region48
      $region47: #{csblock_forward.5} parent=35 // pred_region
        %p1364 = scmp.eq.s32.totalorder %s20, 0
        // Predicated region
        $region49: #{csblock_forward.5} parent=47 // pred_check
          %p1365 = pneg %p1364
        $region50: #{csblock_forward.5} parent=47 // pred_check_branch
          %1367 = sbr.rel (%p1365) target = $region52
        $region51: #{csblock_forward.5} parent=47 // pred_region
          %v1368 = vld [vmem:[#allocation3] sm:$0x1]
          %v1369 = vmul.f32 %v1368, 0.001953125
          %v1370 = vld [vmem:[#allocation3 + $0x1] sm:$0x1]
          %v1371 = vmul.f32 %v1370, 0.001953125
          %v1372 = vmul.f32 %v1369, %v1369
          %v1373 = vsub.f32 %v1371, %v1372
          %v1374 = vmax.f32 %v1373, 0.0
          %v1375 = vadd.f32 %v1374, 1e-05
          %v1376 = vrsqrt.pop %v1375
          %v1377 = vld [vmem:[%s2] sm:$0x1]
          %v1378 = vmul.f32 %v1376, %v1377
          %1379 = vst [vmem:[#allocation4] sm:$0x1] %v1378
          %v1380 = vld [vmem:[%s3] sm:$0x1]
          %v1381 = vmul.f32 %v1369, %v1378
          %v1382 = vsub.f32 %v1380, %v1381
          %1383 = vst [vmem:[#allocation4 + $0x1] sm:$0x1] %v1382
        $region52: #{csblock_forward.5} parent=47 // pred_fallthru
          _
        %s1384 = smul.u32 %s20, 256
        %s1385 = scalar_lea.vmem [#allocation2], %s1384
        %v1386 = vld [vmem:[%s1385] sm:$0xff]
        %v1387 = vld [vmem:[%s1385 + $0x8] sm:$0xff]
        %v1388 = vld [vmem:[%s1385 + $0x10] sm:$0xff]
        %v1389 = vld [vmem:[%s1385 + $0x18] sm:$0xff]
        %v1390 = vld [vmem:[%s1385 + $0x20] sm:$0xff]
        %v1391 = vld [vmem:[%s1385 + $0x28] sm:$0xff]
        %v1392 = vld [vmem:[%s1385 + $0x30] sm:$0xff]
        %v1393 = vld [vmem:[%s1385 + $0x38] sm:$0xff]
        %v1394 = vld [vmem:[%s1385 + $0x40] sm:$0xff]
        %v1395 = vld [vmem:[%s1385 + $0x48] sm:$0xff]
        %v1396 = vld [vmem:[%s1385 + $0x50] sm:$0xff]
        %v1397 = vld [vmem:[%s1385 + $0x58] sm:$0xff]
        %v1398 = vld [vmem:[%s1385 + $0x60] sm:$0xff]
        %v1399 = vld [vmem:[%s1385 + $0x68] sm:$0xff]
        %v1400 = vld [vmem:[%s1385 + $0x70] sm:$0xff]
        %v1401 = vld [vmem:[%s1385 + $0x78] sm:$0xff]
        %v1402 = vld [vmem:[%s1385 + $0x80] sm:$0xff]
        %v1403 = vld [vmem:[%s1385 + $0x88] sm:$0xff]
        %v1404 = vld [vmem:[%s1385 + $0x90] sm:$0xff]
        %v1405 = vld [vmem:[%s1385 + $0x98] sm:$0xff]
        %v1406 = vld [vmem:[%s1385 + $0xa0] sm:$0xff]
        %v1407 = vld [vmem:[%s1385 + $0xa8] sm:$0xff]
        %v1408 = vld [vmem:[%s1385 + $0xb0] sm:$0xff]
        %v1409 = vld [vmem:[%s1385 + $0xb8] sm:$0xff]
        %v1410 = vld [vmem:[%s1385 + $0xc0] sm:$0xff]
        %v1411 = vld [vmem:[%s1385 + $0xc8] sm:$0xff]
        %v1412 = vld [vmem:[%s1385 + $0xd0] sm:$0xff]
        %v1413 = vld [vmem:[%s1385 + $0xd8] sm:$0xff]
        %v1414 = vld [vmem:[%s1385 + $0xe0] sm:$0xff]
        %v1415 = vld [vmem:[%s1385 + $0xe8] sm:$0xff]
        %v1416 = vld [vmem:[%s1385 + $0xf0] sm:$0xff]
        %v1417 = vld [vmem:[%s1385 + $0xf8] sm:$0xff]
        %v1418 = vld [vmem:[#allocation4] sm:$0x1]
        %v1419 = vlaneseq
        %v1420 = vshrl.u32 %v1419, 7
        %v1421 = vsub.s32 0, %v1420
        %v1422 = vrot.slane %v1418, %v1421
        %v1423 = vmul.f32 %v1386, %v1422
        %v1424 = vmul.f32 %v1387, %v1422
        %v1425 = vmul.f32 %v1388, %v1422
        %v1426 = vmul.f32 %v1389, %v1422
        %v1427 = vmul.f32 %v1390, %v1422
        %v1428 = vmul.f32 %v1391, %v1422
        %v1429 = vmul.f32 %v1392, %v1422
        %v1430 = vmul.f32 %v1393, %v1422
        %v1431 = vmul.f32 %v1394, %v1422
        %v1432 = vmul.f32 %v1395, %v1422
        %v1433 = vmul.f32 %v1396, %v1422
        %v1434 = vmul.f32 %v1397, %v1422
        %v1435 = vmul.f32 %v1398, %v1422
        %v1436 = vmul.f32 %v1399, %v1422
        %v1437 = vmul.f32 %v1400, %v1422
        %v1438 = vmul.f32 %v1401, %v1422
        %v1439 = vmul.f32 %v1402, %v1422
        %v1440 = vmul.f32 %v1403, %v1422
        %v1441 = vmul.f32 %v1404, %v1422
        %v1442 = vmul.f32 %v1405, %v1422
        %v1443 = vmul.f32 %v1406, %v1422
        %v1444 = vmul.f32 %v1407, %v1422
        %v1445 = vmul.f32 %v1408, %v1422
        %v1446 = vmul.f32 %v1409, %v1422
        %v1447 = vmul.f32 %v1410, %v1422
        %v1448 = vmul.f32 %v1411, %v1422
        %v1449 = vmul.f32 %v1412, %v1422
        %v1450 = vmul.f32 %v1413, %v1422
        %v1451 = vmul.f32 %v1414, %v1422
        %v1452 = vmul.f32 %v1415, %v1422
        %v1453 = vmul.f32 %v1416, %v1422
        %v1454 = vmul.f32 %v1417, %v1422
        %v1455 = vld [vmem:[#allocation4 + $0x1] sm:$0x1]
        %v1456 = vlaneseq
        %v1457 = vshrl.u32 %v1456, 7
        %v1458 = vsub.s32 0, %v1457
        %v1459 = vrot.slane %v1455, %v1458
        %v1460 = vadd.f32 %v1423, %v1459
        %v1461 = vadd.f32 %v1424, %v1459
        %v1462 = vadd.f32 %v1425, %v1459
        %v1463 = vadd.f32 %v1426, %v1459
        %v1464 = vadd.f32 %v1427, %v1459
        %v1465 = vadd.f32 %v1428, %v1459
        %v1466 = vadd.f32 %v1429, %v1459
        %v1467 = vadd.f32 %v1430, %v1459
        %v1468 = vadd.f32 %v1431, %v1459
        %v1469 = vadd.f32 %v1432, %v1459
        %v1470 = vadd.f32 %v1433, %v1459
        %v1471 = vadd.f32 %v1434, %v1459
        %v1472 = vadd.f32 %v1435, %v1459
        %v1473 = vadd.f32 %v1436, %v1459
        %v1474 = vadd.f32 %v1437, %v1459
        %v1475 = vadd.f32 %v1438, %v1459
        %v1476 = vadd.f32 %v1439, %v1459
        %v1477 = vadd.f32 %v1440, %v1459
        %v1478 = vadd.f32 %v1441, %v1459
        %v1479 = vadd.f32 %v1442, %v1459
        %v1480 = vadd.f32 %v1443, %v1459
        %v1481 = vadd.f32 %v1444, %v1459
        %v1482 = vadd.f32 %v1445, %v1459
        %v1483 = vadd.f32 %v1446, %v1459
        %v1484 = vadd.f32 %v1447, %v1459
        %v1485 = vadd.f32 %v1448, %v1459
        %v1486 = vadd.f32 %v1449, %v1459
        %v1487 = vadd.f32 %v1450, %v1459
        %v1488 = vadd.f32 %v1451, %v1459
        %v1489 = vadd.f32 %v1452, %v1459
        %v1490 = vadd.f32 %v1453, %v1459
        %v1491 = vadd.f32 %v1454, %v1459
        %v1492 = vmax.f32 %v1460, 0.0
        %v1493 = vmax.f32 %v1461, 0.0
        %v1494 = vmax.f32 %v1462, 0.0
        %v1495 = vmax.f32 %v1463, 0.0
        %v1496 = vmax.f32 %v1464, 0.0
        %v1497 = vmax.f32 %v1465, 0.0
        %v1498 = vmax.f32 %v1466, 0.0
        %v1499 = vmax.f32 %v1467, 0.0
        %v1500 = vmax.f32 %v1468, 0.0
        %v1501 = vmax.f32 %v1469, 0.0
        %v1502 = vmax.f32 %v1470, 0.0
        %v1503 = vmax.f32 %v1471, 0.0
        %v1504 = vmax.f32 %v1472, 0.0
        %v1505 = vmax.f32 %v1473, 0.0
        %v1506 = vmax.f32 %v1474, 0.0
        %v1507 = vmax.f32 %v1475, 0.0
        %v1508 = vmax.f32 %v1476, 0.0
        %v1509 = vmax.f32 %v1477, 0.0
        %v1510 = vmax.f32 %v1478, 0.0
        %v1511 = vmax.f32 %v1479, 0.0
        %v1512 = vmax.f32 %v1480, 0.0
        %v1513 = vmax.f32 %v1481, 0.0
        %v1514 = vmax.f32 %v1482, 0.0
        %v1515 = vmax.f32 %v1483, 0.0
        %v1516 = vmax.f32 %v1484, 0.0
        %v1517 = vmax.f32 %v1485, 0.0
        %v1518 = vmax.f32 %v1486, 0.0
        %v1519 = vmax.f32 %v1487, 0.0
        %v1520 = vmax.f32 %v1488, 0.0
        %v1521 = vmax.f32 %v1489, 0.0
        %v1522 = vmax.f32 %v1490, 0.0
        %v1523 = vmax.f32 %v1491, 0.0
        %v1524 = vpack.c.bf16 %v1493, %v1492
        %v1525 = vpack.c.bf16 %v1495, %v1494
        %v1526 = vpack.c.bf16 %v1497, %v1496
        %v1527 = vpack.c.bf16 %v1499, %v1498
        %v1528 = vpack.c.bf16 %v1501, %v1500
        %v1529 = vpack.c.bf16 %v1503, %v1502
        %v1530 = vpack.c.bf16 %v1505, %v1504
        %v1531 = vpack.c.bf16 %v1507, %v1506
        %v1532 = vpack.c.bf16 %v1509, %v1508
        %v1533 = vpack.c.bf16 %v1511, %v1510
        %v1534 = vpack.c.bf16 %v1513, %v1512
        %v1535 = vpack.c.bf16 %v1515, %v1514
        %v1536 = vpack.c.bf16 %v1517, %v1516
        %v1537 = vpack.c.bf16 %v1519, %v1518
        %v1538 = vpack.c.bf16 %v1521, %v1520
        %v1539 = vpack.c.bf16 %v1523, %v1522
        %v1556 = vunpack.c.l.b16 %v1524
        %v1557 = vunpack.c.h.b16 %v1524
        %v1558 = vunpack.c.l.b16 %v1525
        %v1559 = vunpack.c.h.b16 %v1525
        %v1560 = vunpack.c.l.b16 %v1526
        %v1561 = vunpack.c.h.b16 %v1526
        %v1562 = vunpack.c.l.b16 %v1527
        %v1563 = vunpack.c.h.b16 %v1527
        %v1564 = vunpack.c.l.b16 %v1528
        %v1565 = vunpack.c.h.b16 %v1528
        %v1566 = vunpack.c.l.b16 %v1529
        %v1567 = vunpack.c.h.b16 %v1529
        %v1568 = vunpack.c.l.b16 %v1530
        %v1569 = vunpack.c.h.b16 %v1530
        %v1570 = vunpack.c.l.b16 %v1531
        %v1571 = vunpack.c.h.b16 %v1531
        %v1572 = vunpack.c.l.b16 %v1532
        %v1573 = vunpack.c.h.b16 %v1532
        %v1574 = vunpack.c.l.b16 %v1533
        %v1575 = vunpack.c.h.b16 %v1533
        %v1576 = vunpack.c.l.b16 %v1534
        %v1577 = vunpack.c.h.b16 %v1534
        %v1578 = vunpack.c.l.b16 %v1535
        %v1579 = vunpack.c.h.b16 %v1535
        %v1580 = vunpack.c.l.b16 %v1536
        %v1581 = vunpack.c.h.b16 %v1536
        %v1582 = vunpack.c.l.b16 %v1537
        %v1583 = vunpack.c.h.b16 %v1537
        %v1584 = vunpack.c.l.b16 %v1538
        %v1585 = vunpack.c.h.b16 %v1538
        %v1586 = vunpack.c.l.b16 %v1539
        %v1587 = vunpack.c.h.b16 %v1539
        %v1588 = vpack.c.b16 %v1556, %v1556
        %v1589 = vpack.c.b16 %v1557, %v1557
        %v1590 = vpack.c.b16 %v1558, %v1558
        %v1591 = vpack.c.b16 %v1559, %v1559
        %v1592 = vpack.c.b16 %v1560, %v1560
        %v1593 = vpack.c.b16 %v1561, %v1561
        %v1594 = vpack.c.b16 %v1562, %v1562
        %v1595 = vpack.c.b16 %v1563, %v1563
        %v1596 = vpack.c.b16 %v1564, %v1564
        %v1597 = vpack.c.b16 %v1565, %v1565
        %v1598 = vpack.c.b16 %v1566, %v1566
        %v1599 = vpack.c.b16 %v1567, %v1567
        %v1600 = vpack.c.b16 %v1568, %v1568
        %v1601 = vpack.c.b16 %v1569, %v1569
        %v1602 = vpack.c.b16 %v1570, %v1570
        %v1603 = vpack.c.b16 %v1571, %v1571
        %v1604 = vpack.c.b16 %v1572, %v1572
        %v1605 = vpack.c.b16 %v1573, %v1573
        %v1606 = vpack.c.b16 %v1574, %v1574
        %v1607 = vpack.c.b16 %v1575, %v1575
        %v1608 = vpack.c.b16 %v1576, %v1576
        %v1609 = vpack.c.b16 %v1577, %v1577
        %v1610 = vpack.c.b16 %v1578, %v1578
        %v1611 = vpack.c.b16 %v1579, %v1579
        %v1612 = vpack.c.b16 %v1580, %v1580
        %v1613 = vpack.c.b16 %v1581, %v1581
        %v1614 = vpack.c.b16 %v1582, %v1582
        %v1615 = vpack.c.b16 %v1583, %v1583
        %v1616 = vpack.c.b16 %v1584, %v1584
        %v1617 = vpack.c.b16 %v1585, %v1585
        %v1618 = vpack.c.b16 %v1586, %v1586
        %v1619 = vpack.c.b16 %v1587, %v1587
        %1652 = vst [vmem:[%s239] sm:$0xf] %v1588
        %1653 = vst [vmem:[%s239 + $0x4] sm:$0xf] %v1589
        %1654 = vst [vmem:[%s239 + $0x8] sm:$0xf] %v1590
        %1655 = vst [vmem:[%s239 + $0xc] sm:$0xf] %v1591
        %1656 = vst [vmem:[%s239 + $0x10] sm:$0xf] %v1592
        %1657 = vst [vmem:[%s239 + $0x14] sm:$0xf] %v1593
        %1658 = vst [vmem:[%s239 + $0x18] sm:$0xf] %v1594
        %1659 = vst [vmem:[%s239 + $0x1c] sm:$0xf] %v1595
        %1660 = vst [vmem:[%s239 + $0x20] sm:$0xf] %v1596
        %1661 = vst [vmem:[%s239 + $0x24] sm:$0xf] %v1597
        %1662 = vst [vmem:[%s239 + $0x28] sm:$0xf] %v1598
        %1663 = vst [vmem:[%s239 + $0x2c] sm:$0xf] %v1599
        %1664 = vst [vmem:[%s239 + $0x30] sm:$0xf] %v1600
        %1665 = vst [vmem:[%s239 + $0x34] sm:$0xf] %v1601
        %1666 = vst [vmem:[%s239 + $0x38] sm:$0xf] %v1602
        %1667 = vst [vmem:[%s239 + $0x3c] sm:$0xf] %v1603
        %1668 = vst [vmem:[%s239 + $0x40] sm:$0xf] %v1604
        %1669 = vst [vmem:[%s239 + $0x44] sm:$0xf] %v1605
        %1670 = vst [vmem:[%s239 + $0x48] sm:$0xf] %v1606
        %1671 = vst [vmem:[%s239 + $0x4c] sm:$0xf] %v1607
        %1672 = vst [vmem:[%s239 + $0x50] sm:$0xf] %v1608
        %1673 = vst [vmem:[%s239 + $0x54] sm:$0xf] %v1609
        %1674 = vst [vmem:[%s239 + $0x58] sm:$0xf] %v1610
        %1675 = vst [vmem:[%s239 + $0x5c] sm:$0xf] %v1611
        %1676 = vst [vmem:[%s239 + $0x60] sm:$0xf] %v1612
        %1677 = vst [vmem:[%s239 + $0x64] sm:$0xf] %v1613
        %1678 = vst [vmem:[%s239 + $0x68] sm:$0xf] %v1614
        %1679 = vst [vmem:[%s239 + $0x6c] sm:$0xf] %v1615
        %1680 = vst [vmem:[%s239 + $0x70] sm:$0xf] %v1616
        %1681 = vst [vmem:[%s239 + $0x74] sm:$0xf] %v1617
        %1682 = vst [vmem:[%s239 + $0x78] sm:$0xf] %v1618
        %1683 = vst [vmem:[%s239 + $0x7c] sm:$0xf] %v1619
      $region48: #{csblock_forward.5} parent=35 // pred_fallthru
        _
      %s1684 = smul.u32 %s20, %s19
      %s1685 = smul.u32 32, %s1684
      %p1686 = scmp.lt.s32.totalorder %s1685, 63
      %s1687 = scalar_select %p1686, %s1685, 63
      %s1688 = smul.addr %s1687, 4
      %s1689 = scalar_lea.vmem %s4, %s1688
      // Predicated region
      $region53: #{csblock_forward.5} parent=35 // pred_check
        %p1690 = pneg %p142
      $region54: #{csblock_forward.5} parent=35 // pred_check_branch
        %1692 = sbr.rel (%p1690) target = $region56
      $region55: #{csblock_forward.5} parent=35 // pred_region
        %s1693 = smul.u32 %s20, %s19
        %s1694 = smul.u32 32, %s1693
      $region56: #{csblock_forward.5} parent=35 // pred_fallthru
        _
    $region36: #{csblock_forward.5} parent=5 // pred_fallthru
      _
    %p1695 = scmp.le.s32.totalorder 2, %s10
    // Predicated region
    $region57: #{csblock_forward.5} parent=5 // pred_check
      %p1696 = pneg %p1695
    $region58: #{csblock_forward.5} parent=5 // pred_check_branch
      %1698 = sbr.rel (%p1696) target = $region60
    $region59: #{csblock_forward.5} parent=5 // pred_region
      %s1699 = ssub.s32 %s10, 2
      // Predicated region
      $region61: #{csblock_forward.5} parent=59 // pred_check
        %p1700 = pneg %p148
      $region62: #{csblock_forward.5} parent=59 // pred_check_branch
        %1702 = sbr.rel (%p1700) target = $region64
      $region63: #{csblock_forward.5} parent=59 // pred_region
        %s1703 = smul.u32 %s22, %s21
        %s1704 = smul.u32 32, %s1703
        %p1705 = scmp.lt.s32.totalorder %s1704, 63
        %s1706 = scalar_select %p1705, %s1704, 63
        %s1707 = smul.addr %s1706, 4
        %s1708 = scalar_lea.vmem %s4, %s1707
      $region64: #{csblock_forward.5} parent=59 // pred_fallthru
        _
    $region60: #{csblock_forward.5} parent=5 // pred_fallthru
      _
  $region6: #{csblock_forward.5} parent=0 // loop_footer
    %s14 = sadd.s32 1, %s10
  $region7: #{csblock_forward.5} parent=0 // loop_footer_branch
    %9 = sbr.rel target = $region3
  $region8: #{csblock_forward.5} parent=0 // loop_exit
    _

// kernel: csblock_forward.6
$region0: #{csblock_forward.6}
  #allocation0 [shape = 'u32[]', space=smem, size = 0x4, offset = 0x4, fixed_abs, tag = 'smem constant byte address 0x4 - core index']
  #allocation1 [shape = 'u32[144,128]{1,0:T(1,128)}', space=vmem, size = 0x12000, scoped, tag = 'internal scratch']
  #allocation2 [shape = 'f32[2,64,128]{2,1,0:T(8,128)}', space=vmem, size = 0x10000, scoped, tag = 'scratch operand']
  #allocation3 [shape = 'f32[2,128]{1,0:T(2,128)}', space=vmem, size = 0x400, scoped, tag = 'scratch operand']
  #allocation4 [shape = 'f32[2,128]{1,0:T(2,128)}', space=vmem, size = 0x400, scoped, tag = 'scratch operand']
  %s0 = inlined_call_operand.vmem [shape: bf16[128,128], index: 0, kind: input, shape index: {}]
  %s1 = inlined_call_operand.vmem [shape: bf16[128,128], index: 1, kind: input, shape index: {}]
  %s2 = inlined_call_operand.vmem [shape: f32[1,128], index: 2, kind: input, shape index: {}]
  %s3 = inlined_call_operand.vmem [shape: f32[1,128], index: 3, kind: input, shape index: {}]
  %s4 = inlined_call_operand.vmem [shape: f32[128,128], index: 4, kind: output, shape index: {}]
  %s5 = sld [smem:[#allocation0]]
  $region65: #{csblock_forward.6} parent=0
    _
  %s7 = ssub.s32 1, %s5
  %s8 = scalar_select 0, %s7, %s5
  loop: start=0, step=1, limit=6
  $region2: #{csblock_forward.6} parent=0 // loop_pre_header
    _
  $region3: #{csblock_forward.6} parent=0 // loop_header
    %s10 = sphi 0, %s14
    %p11 = scmp.ge.s32.totalorder %s10, 6
    %s17 = sphi 0, %s29
    %s18 = sphi 0, %s25
    %s19 = sphi 0, %s17
    %s20 = sphi 0, %s18
    %s21 = sphi 0, %s19
    %s22 = sphi 0, %s20
    %s38 = sphi 0, %s40
    %s41 = sphi 0, %s38
    %s42 = sphi 0, %s41
    %s58 = sphi 0, %s42
    %s62 = sphi 0, %s62
    %s64 = sphi 0, %s62
    %s65 = sphi 0, %s64
    %s79 = sphi 0, %s65
    %s83 = sphi 0, %s83
    %s85 = sphi 0, %s83
    %s86 = sphi 0, %s85
    %s100 = sphi 0, %s86
    %s104 = sphi 0, %s104
    %s106 = sphi 0, %s104
    %s107 = sphi 0, %s106
    %s121 = sphi 0, %s107
    %s129 = sphi 0, %s131
    %s132 = sphi 0, %s129
    %s133 = sphi 0, %s132
    %s149 = sphi 0, %s133
  $region4: #{csblock_forward.6} parent=0 // loop_header_branch
    %13 = sbr.rel (%p11) target = $region8
  $region5: #{csblock_forward.6} parent=0 // loop_body
    %s15 = ssub.s32 %s10, 1
    %s16 = ssub.s32 %s10, 2
    %s23 = sadd.s32 1, %s18
    %p24 = scmp.ge.s32.totalorder %s23, 2
    %s25 = scalar_select %p24, 0, %s23
    %s26 = sadd.s32 1, %s17
    %s27 = scalar_select %p24, %s26, %s17
    %p28 = scmp.ge.s32.totalorder %s27, 2
    %s29 = scalar_select %p28, 0, %s27
    %s30 = ssub.s32 1, %s17
    %s31 = smul.u32 %s18, %s30
    %s32 = sadd.s32 %s31, %s17
    %s33 = ssub.s32 1, %s29
    %s34 = smul.u32 %s25, %s33
    %s35 = sadd.s32 %s34, %s29
    %s36 = ssub.s32 %s32, %s35
    %p37 = scmp.eq.s32.totalorder %s36, 0
    %s39 = sadd.s32 %s38, 1
    %s40 = scalar_select %p37, %s38, %s39
    %p43 = pneg %p37
    %p44 = scmp.eq.s32.totalorder %s10, 3
    %p45 = por %p43, %p44
    %p46 = scmp.ne.s32.totalorder %s38, %s41
    %p47 = scmp.eq.s32.totalorder %s10, 0
    %p48 = por %p46, %p47
    %p49 = scmp.ne.s32.totalorder %s38, %s41
    %p50 = scmp.eq.s32.totalorder %s15, 3
    %p51 = por %p49, %p50
    %p52 = scmp.ne.s32.totalorder %s41, %s42
    %p53 = scmp.eq.s32.totalorder %s15, 0
    %p54 = por %p52, %p53
    %p55 = scmp.ne.s32.totalorder %s41, %s42
    %p56 = scmp.eq.s32.totalorder %s16, 3
    %p57 = por %p55, %p56
    %p59 = scmp.ne.s32.totalorder %s42, %s58
    %p60 = scmp.eq.s32.totalorder %s16, 0
    %p61 = por %p59, %p60
    %s63 = sadd.s32 %s62, 1
    %p66 = scmp.eq.s32.totalorder %s10, 3
    %p67 = scmp.ne.s32.totalorder %s62, %s64
    %p68 = scmp.eq.s32.totalorder %s10, 0
    %p69 = por %p67, %p68
    %p70 = scmp.ne.s32.totalorder %s62, %s64
    %p71 = scmp.eq.s32.totalorder %s15, 3
    %p72 = por %p70, %p71
    %p73 = scmp.ne.s32.totalorder %s64, %s65
    %p74 = scmp.eq.s32.totalorder %s15, 0
    %p75 = por %p73, %p74
    %p76 = scmp.ne.s32.totalorder %s64, %s65
    %p77 = scmp.eq.s32.totalorder %s16, 3
    %p78 = por %p76, %p77
    %p80 = scmp.ne.s32.totalorder %s65, %s79
    %p81 = scmp.eq.s32.totalorder %s16, 0
    %p82 = por %p80, %p81
    %s84 = sadd.s32 %s83, 1
    %p87 = scmp.eq.s32.totalorder %s10, 3
    %p88 = scmp.ne.s32.totalorder %s83, %s85
    %p89 = scmp.eq.s32.totalorder %s10, 0
    %p90 = por %p88, %p89
    %p91 = scmp.ne.s32.totalorder %s83, %s85
    %p92 = scmp.eq.s32.totalorder %s15, 3
    %p93 = por %p91, %p92
    %p94 = scmp.ne.s32.totalorder %s85, %s86
    %p95 = scmp.eq.s32.totalorder %s15, 0
    %p96 = por %p94, %p95
    %p97 = scmp.ne.s32.totalorder %s85, %s86
    %p98 = scmp.eq.s32.totalorder %s16, 3
    %p99 = por %p97, %p98
    %p101 = scmp.ne.s32.totalorder %s86, %s100
    %p102 = scmp.eq.s32.totalorder %s16, 0
    %p103 = por %p101, %p102
    %s105 = sadd.s32 %s104, 1
    %p108 = scmp.eq.s32.totalorder %s10, 3
    %p109 = scmp.ne.s32.totalorder %s104, %s106
    %p110 = scmp.eq.s32.totalorder %s10, 0
    %p111 = por %p109, %p110
    %p112 = scmp.ne.s32.totalorder %s104, %s106
    %p113 = scmp.eq.s32.totalorder %s15, 3
    %p114 = por %p112, %p113
    %p115 = scmp.ne.s32.totalorder %s106, %s107
    %p116 = scmp.eq.s32.totalorder %s15, 0
    %p117 = por %p115, %p116
    %p118 = scmp.ne.s32.totalorder %s106, %s107
    %p119 = scmp.eq.s32.totalorder %s16, 3
    %p120 = por %p118, %p119
    %p122 = scmp.ne.s32.totalorder %s107, %s121
    %p123 = scmp.eq.s32.totalorder %s16, 0
    %p124 = por %p122, %p123
    %s125 = smul.u32 %s18, %s17
    %s126 = smul.u32 %s25, %s29
    %s127 = ssub.s32 %s125, %s126
    %p128 = scmp.eq.s32.totalorder %s127, 0
    %s130 = sadd.s32 %s129, 1
    %s131 = scalar_select %p128, %s129, %s130
    %p134 = pneg %p128
    %p135 = scmp.eq.s32.totalorder %s10, 3
    %p136 = por %p134, %p135
    %p137 = scmp.ne.s32.totalorder %s129, %s132
    %p138 = scmp.eq.s32.totalorder %s10, 0
    %p139 = por %p137, %p138
    %p140 = scmp.ne.s32.totalorder %s129, %s132
    %p141 = scmp.eq.s32.totalorder %s15, 3
    %p142 = por %p140, %p141
    %p143 = scmp.ne.s32.totalorder %s132, %s133
    %p144 = scmp.eq.s32.totalorder %s15, 0
    %p145 = por %p143, %p144
    %p146 = scmp.ne.s32.totalorder %s132, %s133
    %p147 = scmp.eq.s32.totalorder %s16, 3
    %p148 = por %p146, %p147
    %p150 = scmp.ne.s32.totalorder %s133, %s149
    %p151 = scmp.eq.s32.totalorder %s16, 0
    %p152 = por %p150, %p151
    %p153 = scmp.le.s32.totalorder 1, %s10
    %p154 = scmp.lt.s32.totalorder %s10, 5
    %p155 = pnand %p153, %p154
    %p156 = pneg %p155
    // Predicated region
    $region9: #{csblock_forward.6} parent=5 // pred_check
      _
    $region10: #{csblock_forward.6} parent=5 // pred_check_branch
      %158 = sbr.rel (%p155) target = $region12
    $region11: #{csblock_forward.6} parent=5 // pred_region
      %s159 = ssub.s32 %s10, 1
      // Predicated region
      $region13: #{csblock_forward.6} parent=11 // pred_check
        %p160 = pneg %p75
      $region14: #{csblock_forward.6} parent=11 // pred_check_branch
        %162 = sbr.rel (%p160) target = $region16
      $region15: #{csblock_forward.6} parent=11 // pred_region
        _
      $region16: #{csblock_forward.6} parent=11 // pred_fallthru
        _
      // Predicated region
      $region17: #{csblock_forward.6} parent=11 // pred_check
        %p163 = pneg %p96
      $region18: #{csblock_forward.6} parent=11 // pred_check_branch
        %165 = sbr.rel (%p163) target = $region20
      $region19: #{csblock_forward.6} parent=11 // pred_region
        _
      $region20: #{csblock_forward.6} parent=11 // pred_fallthru
        _
      // Predicated region
      $region21: #{csblock_forward.6} parent=11 // pred_check
        %p166 = pneg %p117
      $region22: #{csblock_forward.6} parent=11 // pred_check_branch
        %168 = sbr.rel (%p166) target = $region24
      $region23: #{csblock_forward.6} parent=11 // pred_region
        _
      $region24: #{csblock_forward.6} parent=11 // pred_fallthru
        _
    $region12: #{csblock_forward.6} parent=5 // pred_fallthru
      _
    %p169 = scmp.lt.s32.totalorder %s10, 4
    // Predicated region
    $region25: #{csblock_forward.6} parent=5 // pred_check
      %p170 = pneg %p169
    $region26: #{csblock_forward.6} parent=5 // pred_check_branch
      %172 = sbr.rel (%p170) target = $region28
    $region27: #{csblock_forward.6} parent=5 // pred_region
      // Predicated region
      $region29: #{csblock_forward.6} parent=27 // pred_check
        %p173 = pneg %p48
      $region30: #{csblock_forward.6} parent=27 // pred_check_branch
        %175 = sbr.rel (%p173) target = $region32
      $region31: #{csblock_forward.6} parent=27 // pred_region
        %s176 = ssub.s32 1, %s17
        %s177 = smul.u32 %s18, %s176
        %s178 = sadd.s32 %s177, %s17
        %s179 = smul.u32 8, %s178
        %p180 = scmp.lt.s32.totalorder %s179, 15
        %s181 = scalar_select %p180, %s179, 15
        %s182 = smul.addr %s181, 4
        %s183 = scalar_lea.vmem %s0, %s182
        %s184 = ssub.s32 1, %s17
        %s185 = smul.u32 %s18, %s184
        %s186 = sadd.s32 %s185, %s17
        %s187 = smul.u32 8, %s186
      $region32: #{csblock_forward.6} parent=27 // pred_fallthru
        _
    $region28: #{csblock_forward.6} parent=5 // pred_fallthru
      _
    %p188 = scmp.le.s32.totalorder 1, %s10
    %p189 = scmp.lt.s32.totalorder %s10, 5
    %p190 = pnand %p188, %p189
    %p191 = pneg %p190
    // Predicated region
    $region33: #{csblock_forward.6} parent=5 // pred_check
      _
    $region34: #{csblock_forward.6} parent=5 // pred_check_branch
      %193 = sbr.rel (%p190) target = $region36
    $region35: #{csblock_forward.6} parent=5 // pred_region
      %s194 = ssub.s32 %s10, 1
      %s195 = ssub.s32 1, %s19
      %s196 = smul.u32 %s20, %s195
      %s197 = sadd.s32 %s196, %s19
      %s198 = smul.u32 8, %s197
      %p199 = scmp.lt.s32.totalorder %s198, 15
      %s200 = scalar_select %p199, %s198, 15
      %s201 = smul.addr %s200, 4
      %s202 = scalar_lea.vmem %s0, %s201
      %p203 = pneg %p54
      %p204 = pneg %p51
      %p205 = pneg %p75
      %p206 = pneg %p72
      %p207 = pneg %p96
      %p208 = pneg %p93
      %p209 = pneg %p117
      %p210 = pneg %p114
      %p211 = pneg %p145
      %p212 = pneg %p142
      %s213 = smul.u32 %s20, %s19
      %s214 = smul.u32 8, %s213
      %p215 = scmp.lt.s32.totalorder %s214, 15
      %s216 = scalar_select %p215, %s214, 15
      %s217 = smul.addr %s216, 8
      %s218 = scalar_lea.vmem %s4, %s217
      %s219 = ssub.s32 1, %s19
      %s220 = smul.u32 %s20, %s219
      %s221 = sadd.s32 %s220, %s19
      %s222 = smul.u32 8, %s221
      %p223 = scmp.lt.s32.totalorder %s222, 15
      %s224 = scalar_select %p223, %s222, 15
      %s225 = smul.addr %s224, 4
      %s226 = scalar_lea.vmem %s0, %s225
      %s227 = ssub.s32 1, %s19
      %s228 = smul.u32 %s20, %s227
      %s229 = sadd.s32 %s228, %s19
      %s230 = smul.u32 8, %s229
      %s231 = smul.u32 %s20, %s19
      %s232 = smul.u32 8, %s231
      %p233 = scmp.lt.s32.totalorder %s232, 15
      %s234 = scalar_select %p233, %s232, 15
      %s235 = smul.addr %s234, 8
      %s236 = scalar_lea.vmem %s4, %s235
      %s237 = smul.u32 %s20, %s19
      %s238 = smul.u32 8, %s237
      %p240 = scmp.eq.s32.totalorder %s19, 0
      // Predicated region
      $region37: #{csblock_forward.6} parent=35 // pred_check
        %p241 = pneg %p240
      $region38: #{csblock_forward.6} parent=35 // pred_check_branch
        %243 = sbr.rel (%p241) target = $region40
      $region39: #{csblock_forward.6} parent=35 // pred_region
        %v244 = vld [vmem:[%s226] sm:$0xf]
        %v245 = vld [vmem:[%s226 + $0x4] sm:$0xf]
        %v246 = vld [vmem:[%s226 + $0x8] sm:$0xf]
        %v247 = vld [vmem:[%s226 + $0xc] sm:$0xf]
        %v248 = vld [vmem:[%s226 + $0x10] sm:$0xf]
        %v249 = vld [vmem:[%s226 + $0x14] sm:$0xf]
        %v250 = vld [vmem:[%s226 + $0x18] sm:$0xf]
        %v251 = vld [vmem:[%s226 + $0x1c] sm:$0xf]
        %v252 = vld [vmem:[%s1] sm:$0xf]
        %v253 = vld [vmem:[%s1 + $0x4] sm:$0xf]
        %v254 = vld [vmem:[%s1 + $0x8] sm:$0xf]
        %v255 = vld [vmem:[%s1 + $0xc] sm:$0xf]
        %v256 = vld [vmem:[%s1 + $0x10] sm:$0xf]
        %v257 = vld [vmem:[%s1 + $0x14] sm:$0xf]
        %v258 = vld [vmem:[%s1 + $0x18] sm:$0xf]
        %v259 = vld [vmem:[%s1 + $0x1c] sm:$0xf]
        %v260 = vld [vmem:[%s1 + $0x20] sm:$0xf]
        %v261 = vld [vmem:[%s1 + $0x24] sm:$0xf]
        %v262 = vld [vmem:[%s1 + $0x28] sm:$0xf]
        %v263 = vld [vmem:[%s1 + $0x2c] sm:$0xf]
        %v264 = vld [vmem:[%s1 + $0x30] sm:$0xf]
        %v265 = vld [vmem:[%s1 + $0x34] sm:$0xf]
        %v266 = vld [vmem:[%s1 + $0x38] sm:$0xf]
        %v267 = vld [vmem:[%s1 + $0x3c] sm:$0xf]
        %v276 = vunpack.c.l.b16 %v244
        %v277 = vunpack.c.l.b16 %v245
        %v278 = vunpack.c.l.b16 %v246
        %v279 = vunpack.c.l.b16 %v247
        %v280 = vunpack.c.l.b16 %v248
        %v281 = vunpack.c.l.b16 %v249
        %v282 = vunpack.c.l.b16 %v250
        %v283 = vunpack.c.l.b16 %v251
        %v284 = vpack.c.b16 %v277, %v276
        %v285 = vpack.c.b16 %v279, %v278
        %v286 = vpack.c.b16 %v281, %v280
        %v287 = vpack.c.b16 %v283, %v282
        %v308 = vunpack.c.l.b16 %v252
        %v309 = vunpack.c.l.b16 %v253
        %v310 = vunpack.c.l.b16 %v254
        %v311 = vunpack.c.l.b16 %v255
        %v312 = vunpack.c.l.b16 %v256
        %v313 = vunpack.c.l.b16 %v257
        %v314 = vunpack.c.l.b16 %v258
        %v315 = vunpack.c.l.b16 %v259
        %v316 = vunpack.c.l.b16 %v260
        %v317 = vunpack.c.l.b16 %v261
        %v318 = vunpack.c.l.b16 %v262
        %v319 = vunpack.c.l.b16 %v263
        %v320 = vunpack.c.l.b16 %v264
        %v321 = vunpack.c.l.b16 %v265
        %v322 = vunpack.c.l.b16 %v266
        %v323 = vunpack.c.l.b16 %v267
        %v324 = vpack.c.b16 %v309, %v308
        %v325 = vpack.c.b16 %v311, %v310
        %v326 = vpack.c.b16 %v313, %v312
        %v327 = vpack.c.b16 %v315, %v314
        %v328 = vpack.c.b16 %v317, %v316
        %v329 = vpack.c.b16 %v319, %v318
        %v330 = vpack.c.b16 %v321, %v320
        %v331 = vpack.c.b16 %v323, %v322
        %340 = vmatprep.subr.bf16.mxu0 0
        %341 = vmatpush1.bf16.msra.mxu0 %v324
        %342 = vmatprep.subr.bf16.mxu0 0
        %343 = vmatpush1.bf16.msra.mxu0 %v325
        %344 = vmatprep.subr.bf16.mxu0 0
        %345 = vmatpush1.bf16.msra.mxu0 %v326
        %346 = vmatprep.subr.bf16.mxu0 0
        %347 = vmatpush1.bf16.msra.mxu0 %v327
        %348 = vmatprep.subr.bf16.mxu0 0
        %349 = vmatpush1.bf16.msra.mxu0 %v328
        %350 = vmatprep.subr.bf16.mxu0 0
        %351 = vmatpush1.bf16.msra.mxu0 %v329
        %352 = vmatprep.subr.bf16.mxu0 0
        %353 = vmatpush1.bf16.msra.mxu0 %v330
        %354 = vmatprep.subr.bf16.mxu0 0
        %355 = vmatpush1.bf16.msra.mxu0 %v331
        %356 = vmatprep.subr.bf16.mxu0 0
        %357 = vmatpush1.bf16.msra.mxu0 0
        %358 = vmatprep.subr.bf16.mxu0 0
        %359 = vmatpush1.bf16.msra.mxu0 0
        %360 = vmatprep.subr.bf16.mxu0 0
        %361 = vmatpush1.bf16.msra.mxu0 0
        %362 = vmatprep.subr.bf16.mxu0 0
        %363 = vmatpush1.bf16.msra.mxu0 0
        %364 = vmatprep.subr.bf16.mxu0 0
        %365 = vmatpush1.bf16.msra.mxu0 0
        %366 = vmatprep.subr.bf16.mxu0 0
        %367 = vmatpush1.bf16.msra.mxu0 0
        %368 = vmatprep.subr.bf16.mxu0 0
        %369 = vmatpush1.bf16.msra.mxu0 0
        %370 = vmatprep.subr.bf16.mxu0 0
        %371 = vmatpush1.bf16.msra.mxu0 0
        %372 = vmatprep.mubr.bf16.mxu0 0
        %373 = vmatmul.mubr.bf16.gmra.mrb[0].mxu0 %v284
        %v374 = vpop.f32.mrb[0].mxu0
        %v375 = vadd.f32 0.0, %v374
        %v376 = vpop.f32.mrb[0].mxu0
        %v377 = vpop.f32.mrb[0].mxu0
        %v378 = vadd.f32 0.0, %v377
        %v379 = vpop.f32.mrb[0].mxu0
        %380 = vmatprep.mubr.bf16.mxu0 0
        %381 = vmatmul.mubr.bf16.gmra.mrb[0].mxu0 %v285
        %v382 = vpop.f32.mrb[0].mxu0
        %v383 = vadd.f32 0.0, %v382
        %v384 = vpop.f32.mrb[0].mxu0
        %v385 = vpop.f32.mrb[0].mxu0
        %v386 = vadd.f32 0.0, %v385
        %v387 = vpop.f32.mrb[0].mxu0
        %388 = vmatprep.mubr.bf16.mxu0 0
        %389 = vmatmul.mubr.bf16.gmra.mrb[0].mxu0 %v286
        %v390 = vpop.f32.mrb[0].mxu0
        %v391 = vadd.f32 0.0, %v390
        %v392 = vpop.f32.mrb[0].mxu0
        %v393 = vpop.f32.mrb[0].mxu0
        %v394 = vadd.f32 0.0, %v393
        %v395 = vpop.f32.mrb[0].mxu0
        %396 = vmatprep.mubr.bf16.mxu0 0
        %397 = vmatmul.mubr.bf16.gmra.mrb[0].mxu0 %v287
        %v398 = vpop.f32.mrb[0].mxu0
        %v399 = vadd.f32 0.0, %v398
        %v400 = vpop.f32.mrb[0].mxu0
        %v401 = vpop.f32.mrb[0].mxu0
        %v402 = vadd.f32 0.0, %v401
        %v403 = vpop.f32.mrb[0].mxu0
        %404 = vdwg.mxu0
        %s405 = smul.u32 %s20, 64
        %s406 = scalar_lea.vmem [#allocation2], %s405
        %407 = vst [vmem:[%s406] sm:$0xff] %v375
        %408 = vst [vmem:[%s406 + $0x8] sm:$0xff] %v378
        %409 = vst [vmem:[%s406 + $0x10] sm:$0xff] %v383
        %410 = vst [vmem:[%s406 + $0x18] sm:$0xff] %v386
        %411 = vst [vmem:[%s406 + $0x20] sm:$0xff] %v391
        %412 = vst [vmem:[%s406 + $0x28] sm:$0xff] %v394
        %413 = vst [vmem:[%s406 + $0x30] sm:$0xff] %v399
        %414 = vst [vmem:[%s406 + $0x38] sm:$0xff] %v402
        %p415 = scmp.eq.s32.totalorder %s20, 0
        // Predicated region
        $region41: #{csblock_forward.6} parent=39 // pred_check
          %p416 = pneg %p415
        $region42: #{csblock_forward.6} parent=39 // pred_check_branch
          %418 = sbr.rel (%p416) target = $region44
        $region43: #{csblock_forward.6} parent=39 // pred_region
          %419 = vst [vmem:[#allocation3] sm:$0x3] 0.0
        $region44: #{csblock_forward.6} parent=39 // pred_fallthru
          _
        %v420 = vld [vmem:[#allocation3] sm:$0x1]
        %v421 = vadd.f32 %v375, %v378
        %v422 = vadd.f32 %v421, %v383
        %v423 = vadd.f32 %v422, %v386
        %v424 = vadd.f32 %v423, %v391
        %v425 = vadd.f32 %v424, %v394
        %v426 = vadd.f32 %v425, %v399
        %v427 = vadd.f32 %v426, %v402
        %v428 = vrot.slane %v427, 4
        %v429 = vadd.f32 %v427, %v428
        %v430 = vrot.slane %v429, 2
        %v431 = vadd.f32 %v429, %v430
        %v432 = vrot.slane %v431, 1
        %v433 = vadd.f32 %v431, %v432
        %v434 = vadd.f32 %v420, %v433
        %435 = vst [vmem:[#allocation3] sm:$0x1] %v434
        %v436 = vld [vmem:[#allocation3 + $0x1] sm:$0x1]
        %v437 = vmul.f32 %v375, %v375
        %v438 = vmul.f32 %v378, %v378
        %v439 = vmul.f32 %v383, %v383
        %v440 = vmul.f32 %v386, %v386
        %v441 = vmul.f32 %v391, %v391
        %v442 = vmul.f32 %v394, %v394
        %v443 = vmul.f32 %v399, %v399
        %v444 = vmul.f32 %v402, %v402
        %v445 = vadd.f32 %v437, %v438
        %v446 = vadd.f32 %v445, %v439
        %v447 = vadd.f32 %v446, %v440
        %v448 = vadd.f32 %v447, %v441
        %v449 = vadd.f32 %v448, %v442
        %v450 = vadd.f32 %v449, %v443
        %v451 = vadd.f32 %v450, %v444
        %v452 = vrot.slane %v451, 4
        %v453 = vadd.f32 %v451, %v452
        %v454 = vrot.slane %v453, 2
        %v455 = vadd.f32 %v453, %v454
        %v456 = vrot.slane %v455, 1
        %v457 = vadd.f32 %v455, %v456
        %v458 = vadd.f32 %v436, %v457
        %459 = vst [vmem:[#allocation3 + $0x1] sm:$0x1] %v458
      $region40: #{csblock_forward.6} parent=35 // pred_fallthru
        _
      %p460 = scmp.eq.s32.totalorder %s19, 1
      // Predicated region
      $region45: #{csblock_forward.6} parent=35 // pred_check
        %p461 = pneg %p460
      $region46: #{csblock_forward.6} parent=35 // pred_check_branch
        %463 = sbr.rel (%p461) target = $region48
      $region47: #{csblock_forward.6} parent=35 // pred_region
        %p464 = scmp.eq.s32.totalorder %s20, 0
        // Predicated region
        $region49: #{csblock_forward.6} parent=47 // pred_check
          %p465 = pneg %p464
        $region50: #{csblock_forward.6} parent=47 // pred_check_branch
          %467 = sbr.rel (%p465) target = $region52
        $region51: #{csblock_forward.6} parent=47 // pred_region
          %v468 = vld [vmem:[#allocation3] sm:$0x1]
          %v469 = vmul.f32 %v468, 0.0078125
          %v470 = vld [vmem:[#allocation3 + $0x1] sm:$0x1]
          %v471 = vmul.f32 %v470, 0.0078125
          %v472 = vmul.f32 %v469, %v469
          %v473 = vsub.f32 %v471, %v472
          %v474 = vmax.f32 %v473, 0.0
          %v475 = vadd.f32 %v474, 1e-05
          %v476 = vrsqrt.pop %v475
          %v477 = vld [vmem:[%s2] sm:$0x1]
          %v478 = vmul.f32 %v476, %v477
          %479 = vst [vmem:[#allocation4] sm:$0x1] %v478
          %v480 = vld [vmem:[%s3] sm:$0x1]
          %v481 = vmul.f32 %v469, %v478
          %v482 = vsub.f32 %v480, %v481
          %483 = vst [vmem:[#allocation4 + $0x1] sm:$0x1] %v482
        $region52: #{csblock_forward.6} parent=47 // pred_fallthru
          _
        %s484 = smul.u32 %s20, 64
        %s485 = scalar_lea.vmem [#allocation2], %s484
        %v486 = vld [vmem:[%s485] sm:$0xff]
        %v487 = vld [vmem:[%s485 + $0x8] sm:$0xff]
        %v488 = vld [vmem:[%s485 + $0x10] sm:$0xff]
        %v489 = vld [vmem:[%s485 + $0x18] sm:$0xff]
        %v490 = vld [vmem:[%s485 + $0x20] sm:$0xff]
        %v491 = vld [vmem:[%s485 + $0x28] sm:$0xff]
        %v492 = vld [vmem:[%s485 + $0x30] sm:$0xff]
        %v493 = vld [vmem:[%s485 + $0x38] sm:$0xff]
        %v494 = vld [vmem:[#allocation4] sm:$0x1]
        %v495 = vlaneseq
        %v496 = vshrl.u32 %v495, 7
        %v497 = vsub.s32 0, %v496
        %v498 = vrot.slane %v494, %v497
        %v499 = vmul.f32 %v486, %v498
        %v500 = vmul.f32 %v487, %v498
        %v501 = vmul.f32 %v488, %v498
        %v502 = vmul.f32 %v489, %v498
        %v503 = vmul.f32 %v490, %v498
        %v504 = vmul.f32 %v491, %v498
        %v505 = vmul.f32 %v492, %v498
        %v506 = vmul.f32 %v493, %v498
        %v507 = vld [vmem:[#allocation4 + $0x1] sm:$0x1]
        %v508 = vlaneseq
        %v509 = vshrl.u32 %v508, 7
        %v510 = vsub.s32 0, %v509
        %v511 = vrot.slane %v507, %v510
        %v512 = vadd.f32 %v499, %v511
        %v513 = vadd.f32 %v500, %v511
        %v514 = vadd.f32 %v501, %v511
        %v515 = vadd.f32 %v502, %v511
        %v516 = vadd.f32 %v503, %v511
        %v517 = vadd.f32 %v504, %v511
        %v518 = vadd.f32 %v505, %v511
        %v519 = vadd.f32 %v506, %v511
        %v520 = vmax.f32 %v512, 0.0
        %v521 = vmax.f32 %v513, 0.0
        %v522 = vmax.f32 %v514, 0.0
        %v523 = vmax.f32 %v515, 0.0
        %v524 = vmax.f32 %v516, 0.0
        %v525 = vmax.f32 %v517, 0.0
        %v526 = vmax.f32 %v518, 0.0
        %v527 = vmax.f32 %v519, 0.0
        %528 = vst [vmem:[%s236] sm:$0xff] %v520
        %529 = vst [vmem:[%s236 + $0x8] sm:$0xff] %v521
        %530 = vst [vmem:[%s236 + $0x10] sm:$0xff] %v522
        %531 = vst [vmem:[%s236 + $0x18] sm:$0xff] %v523
        %532 = vst [vmem:[%s236 + $0x20] sm:$0xff] %v524
        %533 = vst [vmem:[%s236 + $0x28] sm:$0xff] %v525
        %534 = vst [vmem:[%s236 + $0x30] sm:$0xff] %v526
        %535 = vst [vmem:[%s236 + $0x38] sm:$0xff] %v527
      $region48: #{csblock_forward.6} parent=35 // pred_fallthru
        _
      %s536 = smul.u32 %s20, %s19
      %s537 = smul.u32 8, %s536
      %p538 = scmp.lt.s32.totalorder %s537, 15
      %s539 = scalar_select %p538, %s537, 15
      %s540 = smul.addr %s539, 8
      %s541 = scalar_lea.vmem %s4, %s540
      // Predicated region
      $region53: #{csblock_forward.6} parent=35 // pred_check
        %p542 = pneg %p142
      $region54: #{csblock_forward.6} parent=35 // pred_check_branch
        %544 = sbr.rel (%p542) target = $region56
      $region55: #{csblock_forward.6} parent=35 // pred_region
        %s545 = smul.u32 %s20, %s19
        %s546 = smul.u32 8, %s545
      $region56: #{csblock_forward.6} parent=35 // pred_fallthru
        _
    $region36: #{csblock_forward.6} parent=5 // pred_fallthru
      _
    %p547 = scmp.le.s32.totalorder 2, %s10
    // Predicated region
    $region57: #{csblock_forward.6} parent=5 // pred_check
      %p548 = pneg %p547
    $region58: #{csblock_forward.6} parent=5 // pred_check_branch
      %550 = sbr.rel (%p548) target = $region60
    $region59: #{csblock_forward.6} parent=5 // pred_region
      %s551 = ssub.s32 %s10, 2
      // Predicated region
      $region61: #{csblock_forward.6} parent=59 // pred_check
        %p552 = pneg %p148
      $region62: #{csblock_forward.6} parent=59 // pred_check_branch
        %554 = sbr.rel (%p552) target = $region64
      $region63: #{csblock_forward.6} parent=59 // pred_region
        %s555 = smul.u32 %s22, %s21
        %s556 = smul.u32 8, %s555
        %p557 = scmp.lt.s32.totalorder %s556, 15
        %s558 = scalar_select %p557, %s556, 15
        %s559 = smul.addr %s558, 8
        %s560 = scalar_lea.vmem %s4, %s559
      $region64: #{csblock_forward.6} parent=59 // pred_fallthru
        _
    $region60: #{csblock_forward.6} parent=5 // pred_fallthru
      _
  $region6: #{csblock_forward.6} parent=0 // loop_footer
    %s14 = sadd.s32 1, %s10
  $region7: #{csblock_forward.6} parent=0 // loop_footer_branch
    %9 = sbr.rel target = $region3
  $region8: #{csblock_forward.6} parent=0 // loop_exit
    _

// kernel: csblock_forward.8
$region0: #{csblock_forward.8}
  #allocation0 [shape = 'u32[]', space=smem, size = 0x4, offset = 0x4, fixed_abs, tag = 'smem constant byte address 0x4 - core index']
  #allocation1 [shape = 'u32[144,128]{1,0:T(1,128)}', space=vmem, size = 0x12000, scoped, tag = 'internal scratch']
  #allocation2 [shape = 'f32[2,16,128]{2,1,0:T(8,128)}', space=vmem, size = 0x4000, scoped, tag = 'scratch operand']
  #allocation3 [shape = 'f32[2,128]{1,0:T(2,128)}', space=vmem, size = 0x400, scoped, tag = 'scratch operand']
  #allocation4 [shape = 'f32[2,128]{1,0:T(2,128)}', space=vmem, size = 0x400, scoped, tag = 'scratch operand']
  %s0 = inlined_call_operand.vmem [shape: bf16[32,128], index: 0, kind: input, shape index: {}]
  %s1 = inlined_call_operand.vmem [shape: bf16[128,128], index: 1, kind: input, shape index: {}]
  %s2 = inlined_call_operand.vmem [shape: f32[1,128], index: 2, kind: input, shape index: {}]
  %s3 = inlined_call_operand.vmem [shape: f32[1,128], index: 3, kind: input, shape index: {}]
  %s4 = inlined_call_operand.vmem [shape: bf16[32,128], index: 4, kind: output, shape index: {}]
  %s5 = sld [smem:[#allocation0]]
  $region65: #{csblock_forward.8} parent=0
    _
  %s7 = ssub.s32 1, %s5
  %s8 = scalar_select 0, %s7, %s5
  loop: start=0, step=1, limit=6
  $region2: #{csblock_forward.8} parent=0 // loop_pre_header
    _
  $region3: #{csblock_forward.8} parent=0 // loop_header
    %s10 = sphi 0, %s14
    %p11 = scmp.ge.s32.totalorder %s10, 6
    %s17 = sphi 0, %s29
    %s18 = sphi 0, %s25
    %s19 = sphi 0, %s17
    %s20 = sphi 0, %s18
    %s21 = sphi 0, %s19
    %s22 = sphi 0, %s20
    %s38 = sphi 0, %s40
    %s41 = sphi 0, %s38
    %s42 = sphi 0, %s41
    %s58 = sphi 0, %s42
    %s62 = sphi 0, %s62
    %s64 = sphi 0, %s62
    %s65 = sphi 0, %s64
    %s79 = sphi 0, %s65
    %s83 = sphi 0, %s83
    %s85 = sphi 0, %s83
    %s86 = sphi 0, %s85
    %s100 = sphi 0, %s86
    %s104 = sphi 0, %s104
    %s106 = sphi 0, %s104
    %s107 = sphi 0, %s106
    %s121 = sphi 0, %s107
    %s129 = sphi 0, %s131
    %s132 = sphi 0, %s129
    %s133 = sphi 0, %s132
    %s149 = sphi 0, %s133
  $region4: #{csblock_forward.8} parent=0 // loop_header_branch
    %13 = sbr.rel (%p11) target = $region8
  $region5: #{csblock_forward.8} parent=0 // loop_body
    %s15 = ssub.s32 %s10, 1
    %s16 = ssub.s32 %s10, 2
    %s23 = sadd.s32 1, %s18
    %p24 = scmp.ge.s32.totalorder %s23, 2
    %s25 = scalar_select %p24, 0, %s23
    %s26 = sadd.s32 1, %s17
    %s27 = scalar_select %p24, %s26, %s17
    %p28 = scmp.ge.s32.totalorder %s27, 2
    %s29 = scalar_select %p28, 0, %s27
    %s30 = ssub.s32 1, %s17
    %s31 = smul.u32 %s18, %s30
    %s32 = sadd.s32 %s31, %s17
    %s33 = ssub.s32 1, %s29
    %s34 = smul.u32 %s25, %s33
    %s35 = sadd.s32 %s34, %s29
    %s36 = ssub.s32 %s32, %s35
    %p37 = scmp.eq.s32.totalorder %s36, 0
    %s39 = sadd.s32 %s38, 1
    %s40 = scalar_select %p37, %s38, %s39
    %p43 = pneg %p37
    %p44 = scmp.eq.s32.totalorder %s10, 3
    %p45 = por %p43, %p44
    %p46 = scmp.ne.s32.totalorder %s38, %s41
    %p47 = scmp.eq.s32.totalorder %s10, 0
    %p48 = por %p46, %p47
    %p49 = scmp.ne.s32.totalorder %s38, %s41
    %p50 = scmp.eq.s32.totalorder %s15, 3
    %p51 = por %p49, %p50
    %p52 = scmp.ne.s32.totalorder %s41, %s42
    %p53 = scmp.eq.s32.totalorder %s15, 0
    %p54 = por %p52, %p53
    %p55 = scmp.ne.s32.totalorder %s41, %s42
    %p56 = scmp.eq.s32.totalorder %s16, 3
    %p57 = por %p55, %p56
    %p59 = scmp.ne.s32.totalorder %s42, %s58
    %p60 = scmp.eq.s32.totalorder %s16, 0
    %p61 = por %p59, %p60
    %s63 = sadd.s32 %s62, 1
    %p66 = scmp.eq.s32.totalorder %s10, 3
    %p67 = scmp.ne.s32.totalorder %s62, %s64
    %p68 = scmp.eq.s32.totalorder %s10, 0
    %p69 = por %p67, %p68
    %p70 = scmp.ne.s32.totalorder %s62, %s64
    %p71 = scmp.eq.s32.totalorder %s15, 3
    %p72 = por %p70, %p71
    %p73 = scmp.ne.s32.totalorder %s64, %s65
    %p74 = scmp.eq.s32.totalorder %s15, 0
    %p75 = por %p73, %p74
    %p76 = scmp.ne.s32.totalorder %s64, %s65
    %p77 = scmp.eq.s32.totalorder %s16, 3
    %p78 = por %p76, %p77
    %p80 = scmp.ne.s32.totalorder %s65, %s79
    %p81 = scmp.eq.s32.totalorder %s16, 0
    %p82 = por %p80, %p81
    %s84 = sadd.s32 %s83, 1
    %p87 = scmp.eq.s32.totalorder %s10, 3
    %p88 = scmp.ne.s32.totalorder %s83, %s85
    %p89 = scmp.eq.s32.totalorder %s10, 0
    %p90 = por %p88, %p89
    %p91 = scmp.ne.s32.totalorder %s83, %s85
    %p92 = scmp.eq.s32.totalorder %s15, 3
    %p93 = por %p91, %p92
    %p94 = scmp.ne.s32.totalorder %s85, %s86
    %p95 = scmp.eq.s32.totalorder %s15, 0
    %p96 = por %p94, %p95
    %p97 = scmp.ne.s32.totalorder %s85, %s86
    %p98 = scmp.eq.s32.totalorder %s16, 3
    %p99 = por %p97, %p98
    %p101 = scmp.ne.s32.totalorder %s86, %s100
    %p102 = scmp.eq.s32.totalorder %s16, 0
    %p103 = por %p101, %p102
    %s105 = sadd.s32 %s104, 1
    %p108 = scmp.eq.s32.totalorder %s10, 3
    %p109 = scmp.ne.s32.totalorder %s104, %s106
    %p110 = scmp.eq.s32.totalorder %s10, 0
    %p111 = por %p109, %p110
    %p112 = scmp.ne.s32.totalorder %s104, %s106
    %p113 = scmp.eq.s32.totalorder %s15, 3
    %p114 = por %p112, %p113
    %p115 = scmp.ne.s32.totalorder %s106, %s107
    %p116 = scmp.eq.s32.totalorder %s15, 0
    %p117 = por %p115, %p116
    %p118 = scmp.ne.s32.totalorder %s106, %s107
    %p119 = scmp.eq.s32.totalorder %s16, 3
    %p120 = por %p118, %p119
    %p122 = scmp.ne.s32.totalorder %s107, %s121
    %p123 = scmp.eq.s32.totalorder %s16, 0
    %p124 = por %p122, %p123
    %s125 = smul.u32 %s18, %s17
    %s126 = smul.u32 %s25, %s29
    %s127 = ssub.s32 %s125, %s126
    %p128 = scmp.eq.s32.totalorder %s127, 0
    %s130 = sadd.s32 %s129, 1
    %s131 = scalar_select %p128, %s129, %s130
    %p134 = pneg %p128
    %p135 = scmp.eq.s32.totalorder %s10, 3
    %p136 = por %p134, %p135
    %p137 = scmp.ne.s32.totalorder %s129, %s132
    %p138 = scmp.eq.s32.totalorder %s10, 0
    %p139 = por %p137, %p138
    %p140 = scmp.ne.s32.totalorder %s129, %s132
    %p141 = scmp.eq.s32.totalorder %s15, 3
    %p142 = por %p140, %p141
    %p143 = scmp.ne.s32.totalorder %s132, %s133
    %p144 = scmp.eq.s32.totalorder %s15, 0
    %p145 = por %p143, %p144
    %p146 = scmp.ne.s32.totalorder %s132, %s133
    %p147 = scmp.eq.s32.totalorder %s16, 3
    %p148 = por %p146, %p147
    %p150 = scmp.ne.s32.totalorder %s133, %s149
    %p151 = scmp.eq.s32.totalorder %s16, 0
    %p152 = por %p150, %p151
    %p153 = scmp.le.s32.totalorder 1, %s10
    %p154 = scmp.lt.s32.totalorder %s10, 5
    %p155 = pnand %p153, %p154
    %p156 = pneg %p155
    // Predicated region
    $region9: #{csblock_forward.8} parent=5 // pred_check
      _
    $region10: #{csblock_forward.8} parent=5 // pred_check_branch
      %158 = sbr.rel (%p155) target = $region12
    $region11: #{csblock_forward.8} parent=5 // pred_region
      %s159 = ssub.s32 %s10, 1
      // Predicated region
      $region13: #{csblock_forward.8} parent=11 // pred_check
        %p160 = pneg %p75
      $region14: #{csblock_forward.8} parent=11 // pred_check_branch
        %162 = sbr.rel (%p160) target = $region16
      $region15: #{csblock_forward.8} parent=11 // pred_region
        _
      $region16: #{csblock_forward.8} parent=11 // pred_fallthru
        _
      // Predicated region
      $region17: #{csblock_forward.8} parent=11 // pred_check
        %p163 = pneg %p96
      $region18: #{csblock_forward.8} parent=11 // pred_check_branch
        %165 = sbr.rel (%p163) target = $region20
      $region19: #{csblock_forward.8} parent=11 // pred_region
        _
      $region20: #{csblock_forward.8} parent=11 // pred_fallthru
        _
      // Predicated region
      $region21: #{csblock_forward.8} parent=11 // pred_check
        %p166 = pneg %p117
      $region22: #{csblock_forward.8} parent=11 // pred_check_branch
        %168 = sbr.rel (%p166) target = $region24
      $region23: #{csblock_forward.8} parent=11 // pred_region
        _
      $region24: #{csblock_forward.8} parent=11 // pred_fallthru
        _
    $region12: #{csblock_forward.8} parent=5 // pred_fallthru
      _
    %p169 = scmp.lt.s32.totalorder %s10, 4
    // Predicated region
    $region25: #{csblock_forward.8} parent=5 // pred_check
      %p170 = pneg %p169
    $region26: #{csblock_forward.8} parent=5 // pred_check_branch
      %172 = sbr.rel (%p170) target = $region28
    $region27: #{csblock_forward.8} parent=5 // pred_region
      // Predicated region
      $region29: #{csblock_forward.8} parent=27 // pred_check
        %p173 = pneg %p48
      $region30: #{csblock_forward.8} parent=27 // pred_check_branch
        %175 = sbr.rel (%p173) target = $region32
      $region31: #{csblock_forward.8} parent=27 // pred_region
        %s176 = ssub.s32 1, %s17
        %s177 = smul.u32 %s18, %s176
        %s178 = sadd.s32 %s177, %s17
        %s179 = smul.u32 2, %s178
        %p180 = scmp.lt.s32.totalorder %s179, 3
        %s181 = scalar_select %p180, %s179, 3
        %s182 = smul.addr %s181, 4
        %s183 = scalar_lea.vmem %s0, %s182
        %s184 = ssub.s32 1, %s17
        %s185 = smul.u32 %s18, %s184
        %s186 = sadd.s32 %s185, %s17
        %s187 = smul.u32 2, %s186
      $region32: #{csblock_forward.8} parent=27 // pred_fallthru
        _
    $region28: #{csblock_forward.8} parent=5 // pred_fallthru
      _
    %p188 = scmp.le.s32.totalorder 1, %s10
    %p189 = scmp.lt.s32.totalorder %s10, 5
    %p190 = pnand %p188, %p189
    %p191 = pneg %p190
    // Predicated region
    $region33: #{csblock_forward.8} parent=5 // pred_check
      _
    $region34: #{csblock_forward.8} parent=5 // pred_check_branch
      %193 = sbr.rel (%p190) target = $region36
    $region35: #{csblock_forward.8} parent=5 // pred_region
      %s194 = ssub.s32 %s10, 1
      %s195 = ssub.s32 1, %s19
      %s196 = smul.u32 %s20, %s195
      %s197 = sadd.s32 %s196, %s19
      %s198 = smul.u32 2, %s197
      %p199 = scmp.lt.s32.totalorder %s198, 3
      %s200 = scalar_select %p199, %s198, 3
      %s201 = smul.addr %s200, 4
      %s202 = scalar_lea.vmem %s0, %s201
      %p203 = pneg %p54
      %p204 = pneg %p51
      %p205 = pneg %p75
      %p206 = pneg %p72
      %p207 = pneg %p96
      %p208 = pneg %p93
      %p209 = pneg %p117
      %p210 = pneg %p114
      %p211 = pneg %p145
      %p212 = pneg %p142
      %s213 = smul.u32 %s20, %s19
      %s214 = smul.u32 2, %s213
      %p215 = scmp.lt.s32.totalorder %s214, 3
      %s216 = scalar_select %p215, %s214, 3
      %s217 = smul.addr %s216, 4
      %s218 = scalar_lea.vmem %s4, %s217
      %s219 = ssub.s32 1, %s19
      %s220 = smul.u32 %s20, %s219
      %s221 = sadd.s32 %s220, %s19
      %s222 = smul.u32 2, %s221
      %p223 = scmp.lt.s32.totalorder %s222, 3
      %s224 = scalar_select %p223, %s222, 3
      %s225 = smul.addr %s224, 4
      %s226 = scalar_lea.vmem %s0, %s225
      %s227 = ssub.s32 1, %s19
      %s228 = smul.u32 %s20, %s227
      %s229 = sadd.s32 %s228, %s19
      %s230 = smul.u32 2, %s229
      %s231 = smul.u32 %s20, %s19
      %s232 = smul.u32 2, %s231
      %p233 = scmp.lt.s32.totalorder %s232, 3
      %s234 = scalar_select %p233, %s232, 3
      %s235 = smul.addr %s234, 4
      %s236 = scalar_lea.vmem %s4, %s235
      %s237 = smul.u32 %s20, %s19
      %s238 = smul.u32 2, %s237
      %p240 = scmp.eq.s32.totalorder %s19, 0
      // Predicated region
      $region37: #{csblock_forward.8} parent=35 // pred_check
        %p241 = pneg %p240
      $region38: #{csblock_forward.8} parent=35 // pred_check_branch
        %243 = sbr.rel (%p241) target = $region40
      $region39: #{csblock_forward.8} parent=35 // pred_region
        %v244 = vld [vmem:[%s226] sm:$0xf]
        %v245 = vld [vmem:[%s226 + $0x4] sm:$0xf]
        %v246 = vld [vmem:[%s1] sm:$0xf]
        %v247 = vld [vmem:[%s1 + $0x4] sm:$0xf]
        %v248 = vld [vmem:[%s1 + $0x8] sm:$0xf]
        %v249 = vld [vmem:[%s1 + $0xc] sm:$0xf]
        %v250 = vld [vmem:[%s1 + $0x10] sm:$0xf]
        %v251 = vld [vmem:[%s1 + $0x14] sm:$0xf]
        %v252 = vld [vmem:[%s1 + $0x18] sm:$0xf]
        %v253 = vld [vmem:[%s1 + $0x1c] sm:$0xf]
        %v254 = vld [vmem:[%s1 + $0x20] sm:$0xf]
        %v255 = vld [vmem:[%s1 + $0x24] sm:$0xf]
        %v256 = vld [vmem:[%s1 + $0x28] sm:$0xf]
        %v257 = vld [vmem:[%s1 + $0x2c] sm:$0xf]
        %v258 = vld [vmem:[%s1 + $0x30] sm:$0xf]
        %v259 = vld [vmem:[%s1 + $0x34] sm:$0xf]
        %v260 = vld [vmem:[%s1 + $0x38] sm:$0xf]
        %v261 = vld [vmem:[%s1 + $0x3c] sm:$0xf]
        %v264 = vunpack.c.l.b16 %v244
        %v265 = vunpack.c.l.b16 %v245
        %v266 = vpack.c.b16 %v265, %v264
        %v284 = vunpack.c.l.b16 %v246
        %v285 = vunpack.c.l.b16 %v247
        %v286 = vunpack.c.l.b16 %v248
        %v287 = vunpack.c.l.b16 %v249
        %v288 = vunpack.c.l.b16 %v250
        %v289 = vunpack.c.l.b16 %v251
        %v290 = vunpack.c.l.b16 %v252
        %v291 = vunpack.c.l.b16 %v253
        %v292 = vunpack.c.l.b16 %v254
        %v293 = vunpack.c.l.b16 %v255
        %v294 = vunpack.c.l.b16 %v256
        %v295 = vunpack.c.l.b16 %v257
        %v296 = vunpack.c.l.b16 %v258
        %v297 = vunpack.c.l.b16 %v259
        %v298 = vunpack.c.l.b16 %v260
        %v299 = vunpack.c.l.b16 %v261
        %v300 = vpack.c.b16 %v285, %v284
        %v301 = vpack.c.b16 %v287, %v286
        %v302 = vpack.c.b16 %v289, %v288
        %v303 = vpack.c.b16 %v291, %v290
        %v304 = vpack.c.b16 %v293, %v292
        %v305 = vpack.c.b16 %v295, %v294
        %v306 = vpack.c.b16 %v297, %v296
        %v307 = vpack.c.b16 %v299, %v298
        %316 = vmatprep.subr.bf16.mxu0 0
        %317 = vmatpush1.bf16.msra.mxu0 %v300
        %318 = vmatprep.subr.bf16.mxu0 0
        %319 = vmatpush1.bf16.msra.mxu0 %v301
        %320 = vmatprep.subr.bf16.mxu0 0
        %321 = vmatpush1.bf16.msra.mxu0 %v302
        %322 = vmatprep.subr.bf16.mxu0 0
        %323 = vmatpush1.bf16.msra.mxu0 %v303
        %324 = vmatprep.subr.bf16.mxu0 0
        %325 = vmatpush1.bf16.msra.mxu0 %v304
        %326 = vmatprep.subr.bf16.mxu0 0
        %327 = vmatpush1.bf16.msra.mxu0 %v305
        %328 = vmatprep.subr.bf16.mxu0 0
        %329 = vmatpush1.bf16.msra.mxu0 %v306
        %330 = vmatprep.subr.bf16.mxu0 0
        %331 = vmatpush1.bf16.msra.mxu0 %v307
        %332 = vmatprep.subr.bf16.mxu0 0
        %333 = vmatpush1.bf16.msra.mxu0 0
        %334 = vmatprep.subr.bf16.mxu0 0
        %335 = vmatpush1.bf16.msra.mxu0 0
        %336 = vmatprep.subr.bf16.mxu0 0
        %337 = vmatpush1.bf16.msra.mxu0 0
        %338 = vmatprep.subr.bf16.mxu0 0
        %339 = vmatpush1.bf16.msra.mxu0 0
        %340 = vmatprep.subr.bf16.mxu0 0
        %341 = vmatpush1.bf16.msra.mxu0 0
        %342 = vmatprep.subr.bf16.mxu0 0
        %343 = vmatpush1.bf16.msra.mxu0 0
        %344 = vmatprep.subr.bf16.mxu0 0
        %345 = vmatpush1.bf16.msra.mxu0 0
        %346 = vmatprep.subr.bf16.mxu0 0
        %347 = vmatpush1.bf16.msra.mxu0 0
        %348 = vmatprep.mubr.bf16.mxu0 0
        %349 = vmatmul.mubr.bf16.gmra.mrb[0].mxu0 %v266
        %v350 = vpop.f32.mrb[0].mxu0
        %v351 = vadd.f32 0.0, %v350
        %v352 = vpop.f32.mrb[0].mxu0
        %v353 = vpop.f32.mrb[0].mxu0
        %v354 = vadd.f32 0.0, %v353
        %v355 = vpop.f32.mrb[0].mxu0
        %356 = vdwg.mxu0
        %s357 = smul.u32 %s20, 16
        %s358 = scalar_lea.vmem [#allocation2], %s357
        %359 = vst [vmem:[%s358] sm:$0xff] %v351
        %360 = vst [vmem:[%s358 + $0x8] sm:$0xff] %v354
        %p361 = scmp.eq.s32.totalorder %s20, 0
        // Predicated region
        $region41: #{csblock_forward.8} parent=39 // pred_check
          %p362 = pneg %p361
        $region42: #{csblock_forward.8} parent=39 // pred_check_branch
          %364 = sbr.rel (%p362) target = $region44
        $region43: #{csblock_forward.8} parent=39 // pred_region
          %365 = vst [vmem:[#allocation3] sm:$0x3] 0.0
        $region44: #{csblock_forward.8} parent=39 // pred_fallthru
          _
        %v366 = vld [vmem:[#allocation3] sm:$0x1]
        %v367 = vadd.f32 %v351, %v354
        %v368 = vrot.slane %v367, 4
        %v369 = vadd.f32 %v367, %v368
        %v370 = vrot.slane %v369, 2
        %v371 = vadd.f32 %v369, %v370
        %v372 = vrot.slane %v371, 1
        %v373 = vadd.f32 %v371, %v372
        %v374 = vadd.f32 %v366, %v373
        %375 = vst [vmem:[#allocation3] sm:$0x1] %v374
        %v376 = vld [vmem:[#allocation3 + $0x1] sm:$0x1]
        %v377 = vmul.f32 %v351, %v351
        %v378 = vmul.f32 %v354, %v354
        %v379 = vadd.f32 %v377, %v378
        %v380 = vrot.slane %v379, 4
        %v381 = vadd.f32 %v379, %v380
        %v382 = vrot.slane %v381, 2
        %v383 = vadd.f32 %v381, %v382
        %v384 = vrot.slane %v383, 1
        %v385 = vadd.f32 %v383, %v384
        %v386 = vadd.f32 %v376, %v385
        %387 = vst [vmem:[#allocation3 + $0x1] sm:$0x1] %v386
      $region40: #{csblock_forward.8} parent=35 // pred_fallthru
        _
      %p388 = scmp.eq.s32.totalorder %s19, 1
      // Predicated region
      $region45: #{csblock_forward.8} parent=35 // pred_check
        %p389 = pneg %p388
      $region46: #{csblock_forward.8} parent=35 // pred_check_branch
        %391 = sbr.rel (%p389) target = $region48
      $region47: #{csblock_forward.8} parent=35 // pred_region
        %p392 = scmp.eq.s32.totalorder %s20, 0
        // Predicated region
        $region49: #{csblock_forward.8} parent=47 // pred_check
          %p393 = pneg %p392
        $region50: #{csblock_forward.8} parent=47 // pred_check_branch
          %395 = sbr.rel (%p393) target = $region52
        $region51: #{csblock_forward.8} parent=47 // pred_region
          %v396 = vld [vmem:[#allocation3] sm:$0x1]
          %v397 = vmul.f32 %v396, 0.03125
          %v398 = vld [vmem:[#allocation3 + $0x1] sm:$0x1]
          %v399 = vmul.f32 %v398, 0.03125
          %v400 = vmul.f32 %v397, %v397
          %v401 = vsub.f32 %v399, %v400
          %v402 = vmax.f32 %v401, 0.0
          %v403 = vadd.f32 %v402, 1e-05
          %v404 = vrsqrt.pop %v403
          %v405 = vld [vmem:[%s2] sm:$0x1]
          %v406 = vmul.f32 %v404, %v405
          %407 = vst [vmem:[#allocation4] sm:$0x1] %v406
          %v408 = vld [vmem:[%s3] sm:$0x1]
          %v409 = vmul.f32 %v397, %v406
          %v410 = vsub.f32 %v408, %v409
          %411 = vst [vmem:[#allocation4 + $0x1] sm:$0x1] %v410
        $region52: #{csblock_forward.8} parent=47 // pred_fallthru
          _
        %s412 = smul.u32 %s20, 16
        %s413 = scalar_lea.vmem [#allocation2], %s412
        %v414 = vld [vmem:[%s413] sm:$0xff]
        %v415 = vld [vmem:[%s413 + $0x8] sm:$0xff]
        %v416 = vld [vmem:[#allocation4] sm:$0x1]
        %v417 = vlaneseq
        %v418 = vshrl.u32 %v417, 7
        %v419 = vsub.s32 0, %v418
        %v420 = vrot.slane %v416, %v419
        %v421 = vmul.f32 %v414, %v420
        %v422 = vmul.f32 %v415, %v420
        %v423 = vld [vmem:[#allocation4 + $0x1] sm:$0x1]
        %v424 = vlaneseq
        %v425 = vshrl.u32 %v424, 7
        %v426 = vsub.s32 0, %v425
        %v427 = vrot.slane %v423, %v426
        %v428 = vadd.f32 %v421, %v427
        %v429 = vadd.f32 %v422, %v427
        %v430 = vmax.f32 %v428, 0.0
        %v431 = vmax.f32 %v429, 0.0
        %v432 = vpack.c.bf16 %v431, %v430
        %v434 = vunpack.c.l.b16 %v432
        %v435 = vunpack.c.h.b16 %v432
        %v436 = vpack.c.b16 %v434, %v434
        %v437 = vpack.c.b16 %v435, %v435
        %440 = vst [vmem:[%s236] sm:$0xf] %v436
        %441 = vst [vmem:[%s236 + $0x4] sm:$0xf] %v437
      $region48: #{csblock_forward.8} parent=35 // pred_fallthru
        _
      %s442 = smul.u32 %s20, %s19
      %s443 = smul.u32 2, %s442
      %p444 = scmp.lt.s32.totalorder %s443, 3
      %s445 = scalar_select %p444, %s443, 3
      %s446 = smul.addr %s445, 4
      %s447 = scalar_lea.vmem %s4, %s446
      // Predicated region
      $region53: #{csblock_forward.8} parent=35 // pred_check
        %p448 = pneg %p142
      $region54: #{csblock_forward.8} parent=35 // pred_check_branch
        %450 = sbr.rel (%p448) target = $region56
      $region55: #{csblock_forward.8} parent=35 // pred_region
        %s451 = smul.u32 %s20, %s19
        %s452 = smul.u32 2, %s451
      $region56: #{csblock_forward.8} parent=35 // pred_fallthru
        _
    $region36: #{csblock_forward.8} parent=5 // pred_fallthru
      _
    %p453 = scmp.le.s32.totalorder 2, %s10
    // Predicated region
    $region57: #{csblock_forward.8} parent=5 // pred_check
      %p454 = pneg %p453
    $region58: #{csblock_forward.8} parent=5 // pred_check_branch
      %456 = sbr.rel (%p454) target = $region60
    $region59: #{csblock_forward.8} parent=5 // pred_region
      %s457 = ssub.s32 %s10, 2
      // Predicated region
      $region61: #{csblock_forward.8} parent=59 // pred_check
        %p458 = pneg %p148
      $region62: #{csblock_forward.8} parent=59 // pred_check_branch
        %460 = sbr.rel (%p458) target = $region64
      $region63: #{csblock_forward.8} parent=59 // pred_region
        %s461 = smul.u32 %s22, %s21
        %s462 = smul.u32 2, %s461
        %p463 = scmp.lt.s32.totalorder %s462, 3
        %s464 = scalar_select %p463, %s462, 3
        %s465 = smul.addr %s464, 4
        %s466 = scalar_lea.vmem %s4, %s465
      $region64: #{csblock_forward.8} parent=59 // pred_fallthru
        _
    $region60: #{csblock_forward.8} parent=5 // pred_fallthru
      _
  $region6: #{csblock_forward.8} parent=0 // loop_footer
    %s14 = sadd.s32 1, %s10
  $region7: #{csblock_forward.8} parent=0 // loop_footer_branch
    %9 = sbr.rel target = $region3
  $region8: #{csblock_forward.8} parent=0 // loop_exit
    _

// kernel: csblock_forward.9
$region0: #{csblock_forward.9}
  #allocation0 [shape = 'u32[]', space=smem, size = 0x4, offset = 0x4, fixed_abs, tag = 'smem constant byte address 0x4 - core index']
  #allocation1 [shape = 'u32[144,128]{1,0:T(1,128)}', space=vmem, size = 0x12000, scoped, tag = 'internal scratch']
  #allocation2 [shape = 'f32[2,16,128]{2,1,0:T(8,128)}', space=vmem, size = 0x4000, scoped, tag = 'scratch operand']
  #allocation3 [shape = 'f32[2,128]{1,0:T(2,128)}', space=vmem, size = 0x400, scoped, tag = 'scratch operand']
  #allocation4 [shape = 'f32[2,128]{1,0:T(2,128)}', space=vmem, size = 0x400, scoped, tag = 'scratch operand']
  %s0 = inlined_call_operand.vmem [shape: bf16[32,256], index: 0, kind: input, shape index: {}]
  %s1 = inlined_call_operand.vmem [shape: bf16[256,128], index: 1, kind: input, shape index: {}]
  %s2 = inlined_call_operand.vmem [shape: f32[1,128], index: 2, kind: input, shape index: {}]
  %s3 = inlined_call_operand.vmem [shape: f32[1,128], index: 3, kind: input, shape index: {}]
  %s4 = inlined_call_operand.hbm [shape: f32[32,128], index: 4, kind: output, shape index: {}]
  %s5 = sld [smem:[#allocation0]]
  $region65: #{csblock_forward.9} parent=0
    _
  %s7 = ssub.s32 1, %s5
  %s8 = scalar_select 0, %s7, %s5
  $region1: #{csblock_forward.9} parent=0
    #allocation5 [shape = 'u8[16384]{0}', space=vmem, size = 0x4000, scoped, tag = 'output window, operand 0']
    #allocation6 [shape = 's32[2]{0}', space=sflag, size = 0x8, scoped, tag = 'scoped memory for csblock_forward.9']
    %9 = vsyncpa [#allocation6], 0
    %s10 = scalar_lea.sflag [#allocation6], 1
    %11 = vsyncpa %s10, 0
    loop: start=0, step=1, limit=6
    $region2: #{csblock_forward.9} parent=1 // loop_pre_header
      _
    $region3: #{csblock_forward.9} parent=1 // loop_header
      %s13 = sphi 0, %s17
      %p14 = scmp.ge.s32.totalorder %s13, 6
      %s20 = sphi 0, %s32
      %s21 = sphi 0, %s28
      %s22 = sphi 0, %s20
      %s23 = sphi 0, %s21
      %s24 = sphi 0, %s22
      %s25 = sphi 0, %s23
      %s41 = sphi 0, %s43
      %s44 = sphi 0, %s41
      %s45 = sphi 0, %s44
      %s61 = sphi 0, %s45
      %s65 = sphi 0, %s65
      %s67 = sphi 0, %s65
      %s68 = sphi 0, %s67
      %s82 = sphi 0, %s68
      %s86 = sphi 0, %s86
      %s88 = sphi 0, %s86
      %s89 = sphi 0, %s88
      %s103 = sphi 0, %s89
      %s107 = sphi 0, %s107
      %s109 = sphi 0, %s107
      %s110 = sphi 0, %s109
      %s124 = sphi 0, %s110
      %s132 = sphi 0, %s134
      %s135 = sphi 0, %s132
      %s136 = sphi 0, %s135
      %s152 = sphi 0, %s136
    $region4: #{csblock_forward.9} parent=1 // loop_header_branch
      %16 = sbr.rel (%p14) target = $region8
    $region5: #{csblock_forward.9} parent=1 // loop_body
      %s18 = ssub.s32 %s13, 1
      %s19 = ssub.s32 %s13, 2
      %s26 = sadd.s32 1, %s21
      %p27 = scmp.ge.s32.totalorder %s26, 2
      %s28 = scalar_select %p27, 0, %s26
      %s29 = sadd.s32 1, %s20
      %s30 = scalar_select %p27, %s29, %s20
      %p31 = scmp.ge.s32.totalorder %s30, 2
      %s32 = scalar_select %p31, 0, %s30
      %s33 = ssub.s32 1, %s20
      %s34 = smul.u32 %s21, %s33
      %s35 = sadd.s32 %s34, %s20
      %s36 = ssub.s32 1, %s32
      %s37 = smul.u32 %s28, %s36
      %s38 = sadd.s32 %s37, %s32
      %s39 = ssub.s32 %s35, %s38
      %p40 = scmp.eq.s32.totalorder %s39, 0
      %s42 = sadd.s32 %s41, 1
      %s43 = scalar_select %p40, %s41, %s42
      %p46 = pneg %p40
      %p47 = scmp.eq.s32.totalorder %s13, 3
      %p48 = por %p46, %p47
      %p49 = scmp.ne.s32.totalorder %s41, %s44
      %p50 = scmp.eq.s32.totalorder %s13, 0
      %p51 = por %p49, %p50
      %p52 = scmp.ne.s32.totalorder %s41, %s44
      %p53 = scmp.eq.s32.totalorder %s18, 3
      %p54 = por %p52, %p53
      %p55 = scmp.ne.s32.totalorder %s44, %s45
      %p56 = scmp.eq.s32.totalorder %s18, 0
      %p57 = por %p55, %p56
      %p58 = scmp.ne.s32.totalorder %s44, %s45
      %p59 = scmp.eq.s32.totalorder %s19, 3
      %p60 = por %p58, %p59
      %p62 = scmp.ne.s32.totalorder %s45, %s61
      %p63 = scmp.eq.s32.totalorder %s19, 0
      %p64 = por %p62, %p63
      %s66 = sadd.s32 %s65, 1
      %p69 = scmp.eq.s32.totalorder %s13, 3
      %p70 = scmp.ne.s32.totalorder %s65, %s67
      %p71 = scmp.eq.s32.totalorder %s13, 0
      %p72 = por %p70, %p71
      %p73 = scmp.ne.s32.totalorder %s65, %s67
      %p74 = scmp.eq.s32.totalorder %s18, 3
      %p75 = por %p73, %p74
      %p76 = scmp.ne.s32.totalorder %s67, %s68
      %p77 = scmp.eq.s32.totalorder %s18, 0
      %p78 = por %p76, %p77
      %p79 = scmp.ne.s32.totalorder %s67, %s68
      %p80 = scmp.eq.s32.totalorder %s19, 3
      %p81 = por %p79, %p80
      %p83 = scmp.ne.s32.totalorder %s68, %s82
      %p84 = scmp.eq.s32.totalorder %s19, 0
      %p85 = por %p83, %p84
      %s87 = sadd.s32 %s86, 1
      %p90 = scmp.eq.s32.totalorder %s13, 3
      %p91 = scmp.ne.s32.totalorder %s86, %s88
      %p92 = scmp.eq.s32.totalorder %s13, 0
      %p93 = por %p91, %p92
      %p94 = scmp.ne.s32.totalorder %s86, %s88
      %p95 = scmp.eq.s32.totalorder %s18, 3
      %p96 = por %p94, %p95
      %p97 = scmp.ne.s32.totalorder %s88, %s89
      %p98 = scmp.eq.s32.totalorder %s18, 0
      %p99 = por %p97, %p98
      %p100 = scmp.ne.s32.totalorder %s88, %s89
      %p101 = scmp.eq.s32.totalorder %s19, 3
      %p102 = por %p100, %p101
      %p104 = scmp.ne.s32.totalorder %s89, %s103
      %p105 = scmp.eq.s32.totalorder %s19, 0
      %p106 = por %p104, %p105
      %s108 = sadd.s32 %s107, 1
      %p111 = scmp.eq.s32.totalorder %s13, 3
      %p112 = scmp.ne.s32.totalorder %s107, %s109
      %p113 = scmp.eq.s32.totalorder %s13, 0
      %p114 = por %p112, %p113
      %p115 = scmp.ne.s32.totalorder %s107, %s109
      %p116 = scmp.eq.s32.totalorder %s18, 3
      %p117 = por %p115, %p116
      %p118 = scmp.ne.s32.totalorder %s109, %s110
      %p119 = scmp.eq.s32.totalorder %s18, 0
      %p120 = por %p118, %p119
      %p121 = scmp.ne.s32.totalorder %s109, %s110
      %p122 = scmp.eq.s32.totalorder %s19, 3
      %p123 = por %p121, %p122
      %p125 = scmp.ne.s32.totalorder %s110, %s124
      %p126 = scmp.eq.s32.totalorder %s19, 0
      %p127 = por %p125, %p126
      %s128 = smul.u32 %s21, %s20
      %s129 = smul.u32 %s28, %s32
      %s130 = ssub.s32 %s128, %s129
      %p131 = scmp.eq.s32.totalorder %s130, 0
      %s133 = sadd.s32 %s132, 1
      %s134 = scalar_select %p131, %s132, %s133
      %p137 = pneg %p131
      %p138 = scmp.eq.s32.totalorder %s13, 3
      %p139 = por %p137, %p138
      %p140 = scmp.ne.s32.totalorder %s132, %s135
      %p141 = scmp.eq.s32.totalorder %s13, 0
      %p142 = por %p140, %p141
      %p143 = scmp.ne.s32.totalorder %s132, %s135
      %p144 = scmp.eq.s32.totalorder %s18, 3
      %p145 = por %p143, %p144
      %p146 = scmp.ne.s32.totalorder %s135, %s136
      %p147 = scmp.eq.s32.totalorder %s18, 0
      %p148 = por %p146, %p147
      %p149 = scmp.ne.s32.totalorder %s135, %s136
      %p150 = scmp.eq.s32.totalorder %s19, 3
      %p151 = por %p149, %p150
      %p153 = scmp.ne.s32.totalorder %s136, %s152
      %p154 = scmp.eq.s32.totalorder %s19, 0
      %p155 = por %p153, %p154
      %p156 = scmp.le.s32.totalorder 1, %s13
      %p157 = scmp.lt.s32.totalorder %s13, 5
      %p158 = pnand %p156, %p157
      %p159 = pneg %p158
      // Predicated region
      $region9: #{csblock_forward.9} parent=5 // pred_check
        _
      $region10: #{csblock_forward.9} parent=5 // pred_check_branch
        %161 = sbr.rel (%p158) target = $region12
      $region11: #{csblock_forward.9} parent=5 // pred_region
        %s162 = ssub.s32 %s13, 1
        // Predicated region
        $region13: #{csblock_forward.9} parent=11 // pred_check
          %p163 = pneg %p78
        $region14: #{csblock_forward.9} parent=11 // pred_check_branch
          %165 = sbr.rel (%p163) target = $region16
        $region15: #{csblock_forward.9} parent=11 // pred_region
          _
        $region16: #{csblock_forward.9} parent=11 // pred_fallthru
          _
        // Predicated region
        $region17: #{csblock_forward.9} parent=11 // pred_check
          %p166 = pneg %p99
        $region18: #{csblock_forward.9} parent=11 // pred_check_branch
          %168 = sbr.rel (%p166) target = $region20
        $region19: #{csblock_forward.9} parent=11 // pred_region
          _
        $region20: #{csblock_forward.9} parent=11 // pred_fallthru
          _
        // Predicated region
        $region21: #{csblock_forward.9} parent=11 // pred_check
          %p169 = pneg %p120
        $region22: #{csblock_forward.9} parent=11 // pred_check_branch
          %171 = sbr.rel (%p169) target = $region24
        $region23: #{csblock_forward.9} parent=11 // pred_region
          _
        $region24: #{csblock_forward.9} parent=11 // pred_fallthru
          _
      $region12: #{csblock_forward.9} parent=5 // pred_fallthru
        _
      %p172 = scmp.lt.s32.totalorder %s13, 4
      // Predicated region
      $region25: #{csblock_forward.9} parent=5 // pred_check
        %p173 = pneg %p172
      $region26: #{csblock_forward.9} parent=5 // pred_check_branch
        %175 = sbr.rel (%p173) target = $region28
      $region27: #{csblock_forward.9} parent=5 // pred_region
        // Predicated region
        $region29: #{csblock_forward.9} parent=27 // pred_check
          %p176 = pneg %p51
        $region30: #{csblock_forward.9} parent=27 // pred_check_branch
          %178 = sbr.rel (%p176) target = $region32
        $region31: #{csblock_forward.9} parent=27 // pred_region
          %s179 = ssub.s32 1, %s20
          %s180 = smul.u32 %s21, %s179
          %s181 = sadd.s32 %s180, %s20
          %s182 = smul.u32 2, %s181
          %p183 = scmp.lt.s32.totalorder %s182, 3
          %s184 = scalar_select %p183, %s182, 3
          %s185 = smul.addr %s184, 2
          %s186 = smul.addr %s185, 4
          %s187 = scalar_lea.vmem %s0, %s186
          %s188 = ssub.s32 1, %s20
          %s189 = smul.u32 %s21, %s188
          %s190 = sadd.s32 %s189, %s20
          %s191 = smul.u32 2, %s190
        $region32: #{csblock_forward.9} parent=27 // pred_fallthru
          _
      $region28: #{csblock_forward.9} parent=5 // pred_fallthru
        _
      %p192 = scmp.le.s32.totalorder 1, %s13
      %p193 = scmp.lt.s32.totalorder %s13, 5
      %p194 = pnand %p192, %p193
      %p195 = pneg %p194
      // Predicated region
      $region33: #{csblock_forward.9} parent=5 // pred_check
        _
      $region34: #{csblock_forward.9} parent=5 // pred_check_branch
        %197 = sbr.rel (%p194) target = $region36
      $region35: #{csblock_forward.9} parent=5 // pred_region
        %s198 = ssub.s32 %s13, 1
        %s199 = ssub.s32 1, %s22
        %s200 = smul.u32 %s23, %s199
        %s201 = sadd.s32 %s200, %s22
        %s202 = smul.u32 2, %s201
        %p203 = scmp.lt.s32.totalorder %s202, 3
        %s204 = scalar_select %p203, %s202, 3
        %s205 = smul.addr %s204, 2
        %s206 = smul.addr %s205, 4
        %s207 = scalar_lea.vmem %s0, %s206
        %p208 = pneg %p57
        %p209 = pneg %p54
        %p210 = pneg %p78
        %p211 = pneg %p75
        %p212 = pneg %p99
        %p213 = pneg %p96
        %p214 = pneg %p120
        %p215 = pneg %p117
        %p216 = pneg %p148
        %p217 = pneg %p145
        %s218 = sand.u32 %s135, 1
        %s219 = scalar_lea.sflag [#allocation6], %s218
        %s220 = sand.u32 %s135, 1
        %s221 = smul.addr %s220, 16
        %s222 = scalar_lea.vmem [#allocation5], %s221
        %s223 = ssub.s32 1, %s22
        %s224 = smul.u32 %s23, %s223
        %s225 = sadd.s32 %s224, %s22
        %s226 = smul.u32 2, %s225
        %p227 = scmp.lt.s32.totalorder %s226, 3
        %s228 = scalar_select %p227, %s226, 3
        %s229 = smul.addr %s228, 2
        %s230 = smul.addr %s229, 4
        %s231 = scalar_lea.vmem %s0, %s230
        %s232 = ssub.s32 1, %s22
        %s233 = smul.u32 %s23, %s232
        %s234 = sadd.s32 %s233, %s22
        %s235 = smul.u32 2, %s234
        %s236 = smul.u32 %s23, %s22
        %s237 = smul.u32 2, %s236
        %p239 = scmp.eq.s32.totalorder %s22, 0
        // Predicated region
        $region37: #{csblock_forward.9} parent=35 // pred_check
          %p240 = pneg %p239
        $region38: #{csblock_forward.9} parent=35 // pred_check_branch
          %242 = sbr.rel (%p240) target = $region40
        $region39: #{csblock_forward.9} parent=35 // pred_region
          %v243 = vld [vmem:[%s231] sm:$0xff]
          %v244 = vld [vmem:[%s231 + $0x8] sm:$0xff]
          %v245 = vld [vmem:[%s1] sm:$0xf]
          %v246 = vld [vmem:[%s1 + $0x4] sm:$0xf]
          %v247 = vld [vmem:[%s1 + $0x8] sm:$0xf]
          %v248 = vld [vmem:[%s1 + $0xc] sm:$0xf]
          %v249 = vld [vmem:[%s1 + $0x10] sm:$0xf]
          %v250 = vld [vmem:[%s1 + $0x14] sm:$0xf]
          %v251 = vld [vmem:[%s1 + $0x18] sm:$0xf]
          %v252 = vld [vmem:[%s1 + $0x1c] sm:$0xf]
          %v253 = vld [vmem:[%s1 + $0x20] sm:$0xf]
          %v254 = vld [vmem:[%s1 + $0x24] sm:$0xf]
          %v255 = vld [vmem:[%s1 + $0x28] sm:$0xf]
          %v256 = vld [vmem:[%s1 + $0x2c] sm:$0xf]
          %v257 = vld [vmem:[%s1 + $0x30] sm:$0xf]
          %v258 = vld [vmem:[%s1 + $0x34] sm:$0xf]
          %v259 = vld [vmem:[%s1 + $0x38] sm:$0xf]
          %v260 = vld [vmem:[%s1 + $0x3c] sm:$0xf]
          %v261 = vld [vmem:[%s1 + $0x40] sm:$0xf]
          %v262 = vld [vmem:[%s1 + $0x44] sm:$0xf]
          %v263 = vld [vmem:[%s1 + $0x48] sm:$0xf]
          %v264 = vld [vmem:[%s1 + $0x4c] sm:$0xf]
          %v265 = vld [vmem:[%s1 + $0x50] sm:$0xf]
          %v266 = vld [vmem:[%s1 + $0x54] sm:$0xf]
          %v267 = vld [vmem:[%s1 + $0x58] sm:$0xf]
          %v268 = vld [vmem:[%s1 + $0x5c] sm:$0xf]
          %v269 = vld [vmem:[%s1 + $0x60] sm:$0xf]
          %v270 = vld [vmem:[%s1 + $0x64] sm:$0xf]
          %v271 = vld [vmem:[%s1 + $0x68] sm:$0xf]
          %v272 = vld [vmem:[%s1 + $0x6c] sm:$0xf]
          %v273 = vld [vmem:[%s1 + $0x70] sm:$0xf]
          %v274 = vld [vmem:[%s1 + $0x74] sm:$0xf]
          %v275 = vld [vmem:[%s1 + $0x78] sm:$0xf]
          %v276 = vld [vmem:[%s1 + $0x7c] sm:$0xf]
          %v279 = vunpack.c.l.b16 %v243
          %v280 = vunpack.c.h.b16 %v243
          %v281 = vunpack.c.l.b16 %v244
          %v282 = vunpack.c.h.b16 %v244
          %v283 = vpack.c.b16 %v281, %v279
          %v284 = vpack.c.b16 %v282, %v280
          %v319 = vunpack.c.l.b16 %v245
          %v320 = vunpack.c.l.b16 %v246
          %v321 = vunpack.c.l.b16 %v247
          %v322 = vunpack.c.l.b16 %v248
          %v323 = vunpack.c.l.b16 %v249
          %v324 = vunpack.c.l.b16 %v250
          %v325 = vunpack.c.l.b16 %v251
          %v326 = vunpack.c.l.b16 %v252
          %v327 = vunpack.c.l.b16 %v253
          %v328 = vunpack.c.l.b16 %v254
          %v329 = vunpack.c.l.b16 %v255
          %v330 = vunpack.c.l.b16 %v256
          %v331 = vunpack.c.l.b16 %v257
          %v332 = vunpack.c.l.b16 %v258
          %v333 = vunpack.c.l.b16 %v259
          %v334 = vunpack.c.l.b16 %v260
          %v335 = vunpack.c.l.b16 %v261
          %v336 = vunpack.c.l.b16 %v262
          %v337 = vunpack.c.l.b16 %v263
          %v338 = vunpack.c.l.b16 %v264
          %v339 = vunpack.c.l.b16 %v265
          %v340 = vunpack.c.l.b16 %v266
          %v341 = vunpack.c.l.b16 %v267
          %v342 = vunpack.c.l.b16 %v268
          %v343 = vunpack.c.l.b16 %v269
          %v344 = vunpack.c.l.b16 %v270
          %v345 = vunpack.c.l.b16 %v271
          %v346 = vunpack.c.l.b16 %v272
          %v347 = vunpack.c.l.b16 %v273
          %v348 = vunpack.c.l.b16 %v274
          %v349 = vunpack.c.l.b16 %v275
          %v350 = vunpack.c.l.b16 %v276
          %v351 = vpack.c.b16 %v320, %v319
          %v352 = vpack.c.b16 %v322, %v321
          %v353 = vpack.c.b16 %v324, %v323
          %v354 = vpack.c.b16 %v326, %v325
          %v355 = vpack.c.b16 %v328, %v327
          %v356 = vpack.c.b16 %v330, %v329
          %v357 = vpack.c.b16 %v332, %v331
          %v358 = vpack.c.b16 %v334, %v333
          %v359 = vpack.c.b16 %v336, %v335
          %v360 = vpack.c.b16 %v338, %v337
          %v361 = vpack.c.b16 %v340, %v339
          %v362 = vpack.c.b16 %v342, %v341
          %v363 = vpack.c.b16 %v344, %v343
          %v364 = vpack.c.b16 %v346, %v345
          %v365 = vpack.c.b16 %v348, %v347
          %v366 = vpack.c.b16 %v350, %v349
          %383 = vmatprep.subr.bf16.mxu0 0
          %384 = vmatpush1.bf16.msra.mxu0 %v351
          %385 = vmatprep.subr.bf16.mxu0 0
          %386 = vmatpush1.bf16.msra.mxu0 %v352
          %387 = vmatprep.subr.bf16.mxu0 0
          %388 = vmatpush1.bf16.msra.mxu0 %v353
          %389 = vmatprep.subr.bf16.mxu0 0
          %390 = vmatpush1.bf16.msra.mxu0 %v354
          %391 = vmatprep.subr.bf16.mxu0 0
          %392 = vmatpush1.bf16.msra.mxu0 %v355
          %393 = vmatprep.subr.bf16.mxu0 0
          %394 = vmatpush1.bf16.msra.mxu0 %v356
          %395 = vmatprep.subr.bf16.mxu0 0
          %396 = vmatpush1.bf16.msra.mxu0 %v357
          %397 = vmatprep.subr.bf16.mxu0 0
          %398 = vmatpush1.bf16.msra.mxu0 %v358
          %399 = vmatprep.subr.bf16.mxu0 0
          %400 = vmatpush1.bf16.msra.mxu0 %v359
          %401 = vmatprep.subr.bf16.mxu0 0
          %402 = vmatpush1.bf16.msra.mxu0 %v360
          %403 = vmatprep.subr.bf16.mxu0 0
          %404 = vmatpush1.bf16.msra.mxu0 %v361
          %405 = vmatprep.subr.bf16.mxu0 0
          %406 = vmatpush1.bf16.msra.mxu0 %v362
          %407 = vmatprep.subr.bf16.mxu0 0
          %408 = vmatpush1.bf16.msra.mxu0 %v363
          %409 = vmatprep.subr.bf16.mxu0 0
          %410 = vmatpush1.bf16.msra.mxu0 %v364
          %411 = vmatprep.subr.bf16.mxu0 0
          %412 = vmatpush1.bf16.msra.mxu0 %v365
          %413 = vmatprep.subr.bf16.mxu0 0
          %414 = vmatpush1.bf16.msra.mxu0 %v366
          %415 = vmatprep.mubr.bf16.mxu0 %v284
          %416 = vmatmul.mubr.bf16.gmra.mrb[0].mxu0 %v283
          %v417 = vpop.f32.mrb[0].mxu0
          %v418 = vadd.f32 0.0, %v417
          %v419 = vpop.f32.mrb[0].mxu0
          %v420 = vpop.f32.mrb[0].mxu0
          %v421 = vadd.f32 0.0, %v420
          %v422 = vpop.f32.mrb[0].mxu0
          %423 = vdwg.mxu0
          %s424 = smul.u32 %s23, 16
          %s425 = scalar_lea.vmem [#allocation2], %s424
          %426 = vst [vmem:[%s425] sm:$0xff] %v418
          %427 = vst [vmem:[%s425 + $0x8] sm:$0xff] %v421
          %p428 = scmp.eq.s32.totalorder %s23, 0
          // Predicated region
          $region41: #{csblock_forward.9} parent=39 // pred_check
            %p429 = pneg %p428
          $region42: #{csblock_forward.9} parent=39 // pred_check_branch
            %431 = sbr.rel (%p429) target = $region44
          $region43: #{csblock_forward.9} parent=39 // pred_region
            %432 = vst [vmem:[#allocation3] sm:$0x3] 0.0
          $region44: #{csblock_forward.9} parent=39 // pred_fallthru
            _
          %v433 = vld [vmem:[#allocation3] sm:$0x1]
          %v434 = vadd.f32 %v418, %v421
          %v435 = vrot.slane %v434, 4
          %v436 = vadd.f32 %v434, %v435
          %v437 = vrot.slane %v436, 2
          %v438 = vadd.f32 %v436, %v437
          %v439 = vrot.slane %v438, 1
          %v440 = vadd.f32 %v438, %v439
          %v441 = vadd.f32 %v433, %v440
          %442 = vst [vmem:[#allocation3] sm:$0x1] %v441
          %v443 = vld [vmem:[#allocation3 + $0x1] sm:$0x1]
          %v444 = vmul.f32 %v418, %v418
          %v445 = vmul.f32 %v421, %v421
          %v446 = vadd.f32 %v444, %v445
          %v447 = vrot.slane %v446, 4
          %v448 = vadd.f32 %v446, %v447
          %v449 = vrot.slane %v448, 2
          %v450 = vadd.f32 %v448, %v449
          %v451 = vrot.slane %v450, 1
          %v452 = vadd.f32 %v450, %v451
          %v453 = vadd.f32 %v443, %v452
          %454 = vst [vmem:[#allocation3 + $0x1] sm:$0x1] %v453
        $region40: #{csblock_forward.9} parent=35 // pred_fallthru
          _
        %p455 = scmp.eq.s32.totalorder %s22, 1
        // Predicated region
        $region45: #{csblock_forward.9} parent=35 // pred_check
          %p456 = pneg %p455
        $region46: #{csblock_forward.9} parent=35 // pred_check_branch
          %458 = sbr.rel (%p456) target = $region48
        $region47: #{csblock_forward.9} parent=35 // pred_region
          %p459 = scmp.eq.s32.totalorder %s23, 0
          // Predicated region
          $region49: #{csblock_forward.9} parent=47 // pred_check
            %p460 = pneg %p459
          $region50: #{csblock_forward.9} parent=47 // pred_check_branch
            %462 = sbr.rel (%p460) target = $region52
          $region51: #{csblock_forward.9} parent=47 // pred_region
            %v463 = vld [vmem:[#allocation3] sm:$0x1]
            %v464 = vmul.f32 %v463, 0.03125
            %v465 = vld [vmem:[#allocation3 + $0x1] sm:$0x1]
            %v466 = vmul.f32 %v465, 0.03125
            %v467 = vmul.f32 %v464, %v464
            %v468 = vsub.f32 %v466, %v467
            %v469 = vmax.f32 %v468, 0.0
            %v470 = vadd.f32 %v469, 1e-05
            %v471 = vrsqrt.pop %v470
            %v472 = vld [vmem:[%s2] sm:$0x1]
            %v473 = vmul.f32 %v471, %v472
            %474 = vst [vmem:[#allocation4] sm:$0x1] %v473
            %v475 = vld [vmem:[%s3] sm:$0x1]
            %v476 = vmul.f32 %v464, %v473
            %v477 = vsub.f32 %v475, %v476
            %478 = vst [vmem:[#allocation4 + $0x1] sm:$0x1] %v477
          $region52: #{csblock_forward.9} parent=47 // pred_fallthru
            _
          %s479 = smul.u32 %s23, 16
          %s480 = scalar_lea.vmem [#allocation2], %s479
          %v481 = vld [vmem:[%s480] sm:$0xff]
          %v482 = vld [vmem:[%s480 + $0x8] sm:$0xff]
          %v483 = vld [vmem:[#allocation4] sm:$0x1]
          %v484 = vlaneseq
          %v485 = vshrl.u32 %v484, 7
          %v486 = vsub.s32 0, %v485
          %v487 = vrot.slane %v483, %v486
          %v488 = vmul.f32 %v481, %v487
          %v489 = vmul.f32 %v482, %v487
          %v490 = vld [vmem:[#allocation4 + $0x1] sm:$0x1]
          %v491 = vlaneseq
          %v492 = vshrl.u32 %v491, 7
          %v493 = vsub.s32 0, %v492
          %v494 = vrot.slane %v490, %v493
          %v495 = vadd.f32 %v488, %v494
          %v496 = vadd.f32 %v489, %v494
          %v497 = vmax.f32 %v495, 0.0
          %v498 = vmax.f32 %v496, 0.0
          %499 = vst [vmem:[%s222] sm:$0xff] %v497
          %500 = vst [vmem:[%s222 + $0x8] sm:$0xff] %v498
        $region48: #{csblock_forward.9} parent=35 // pred_fallthru
          _
        %s501 = sand.u32 %s135, 1
        %s502 = scalar_lea.sflag [#allocation6], %s501
        %s503 = sand.u32 %s135, 1
        %s504 = smul.addr %s503, 16
        %s505 = scalar_lea.vmem [#allocation5], %s504
        // Predicated region
        $region53: #{csblock_forward.9} parent=35 // pred_check
          %p506 = pneg %p145
        $region54: #{csblock_forward.9} parent=35 // pred_check_branch
          %508 = sbr.rel (%p506) target = $region56
        $region55: #{csblock_forward.9} parent=35 // pred_region
          %s509 = smul.u32 %s23, %s22
          %s510 = smul.u32 2, %s509
          %s512 = ssub.s32 256, 256
          %513 = vsyncadd %s502, %s512
          %s514 = smul.addr %s510, 128
          %s515 = scalar_lea.hbm %s4, %s514
          %s516 = sshll.u32 %s505, 4
          %s517 = int_to_ptr.vmem [resolvable:$true] %s516
          %522 = dma.vmem_to_hbm [thread:$0]  %s517, 256, %s515, %s502, 128, 128, 8
        $region56: #{csblock_forward.9} parent=35 // pred_fallthru
          _
      $region36: #{csblock_forward.9} parent=5 // pred_fallthru
        _
      %p523 = scmp.le.s32.totalorder 2, %s13
      // Predicated region
      $region57: #{csblock_forward.9} parent=5 // pred_check
        %p524 = pneg %p523
      $region58: #{csblock_forward.9} parent=5 // pred_check_branch
        %526 = sbr.rel (%p524) target = $region60
      $region59: #{csblock_forward.9} parent=5 // pred_region
        %s527 = ssub.s32 %s13, 2
        // Predicated region
        $region61: #{csblock_forward.9} parent=59 // pred_check
          %p528 = pneg %p151
        $region62: #{csblock_forward.9} parent=59 // pred_check_branch
          %530 = sbr.rel (%p528) target = $region64
        $region63: #{csblock_forward.9} parent=59 // pred_region
          %s531 = sand.u32 %s136, 1
          %s532 = scalar_lea.sflag [#allocation6], %s531
          %s533 = sand.u32 %s136, 1
          %s534 = smul.addr %s533, 16
          %s535 = scalar_lea.vmem [#allocation5], %s534
          %536 = dma.done %s532, 256
        $region64: #{csblock_forward.9} parent=59 // pred_fallthru
          _
      $region60: #{csblock_forward.9} parent=5 // pred_fallthru
        _
    $region6: #{csblock_forward.9} parent=1 // loop_footer
      %s17 = sadd.s32 1, %s13
    $region7: #{csblock_forward.9} parent=1 // loop_footer_branch
      %12 = sbr.rel target = $region3
    $region8: #{csblock_forward.9} parent=1 // loop_exit
      _
    %537 = vsyncpa [#allocation6], 1
    %s538 = scalar_lea.sflag [#allocation6], 1
    %539 = vsyncpa %s538, 1

// kernel: csblock_forward.7
$region0: #{csblock_forward.7}
  #allocation0 [shape = 'u32[]', space=smem, size = 0x4, offset = 0x4, fixed_abs, tag = 'smem constant byte address 0x4 - core index']
  #allocation1 [shape = 'u32[144,128]{1,0:T(1,128)}', space=vmem, size = 0x12000, scoped, tag = 'internal scratch']
  #allocation2 [shape = 'f32[2,16,128]{2,1,0:T(8,128)}', space=vmem, size = 0x4000, scoped, tag = 'scratch operand']
  #allocation3 [shape = 'f32[2,128]{1,0:T(2,128)}', space=vmem, size = 0x400, scoped, tag = 'scratch operand']
  #allocation4 [shape = 'f32[2,128]{1,0:T(2,128)}', space=vmem, size = 0x400, scoped, tag = 'scratch operand']
  %s0 = inlined_call_operand.vmem [shape: bf16[32,896], index: 0, kind: input, shape index: {}]
  %s1 = inlined_call_operand.vmem [shape: bf16[896,128], index: 1, kind: input, shape index: {}]
  %s2 = inlined_call_operand.vmem [shape: f32[1,128], index: 2, kind: input, shape index: {}]
  %s3 = inlined_call_operand.vmem [shape: f32[1,128], index: 3, kind: input, shape index: {}]
  %s4 = inlined_call_operand.vmem [shape: bf16[32,128], index: 4, kind: output, shape index: {}]
  %s5 = sld [smem:[#allocation0]]
  $region65: #{csblock_forward.7} parent=0
    _
  %s7 = ssub.s32 1, %s5
  %s8 = scalar_select 0, %s7, %s5
  loop: start=0, step=1, limit=6
  $region2: #{csblock_forward.7} parent=0 // loop_pre_header
    _
  $region3: #{csblock_forward.7} parent=0 // loop_header
    %s10 = sphi 0, %s14
    %p11 = scmp.ge.s32.totalorder %s10, 6
    %s17 = sphi 0, %s29
    %s18 = sphi 0, %s25
    %s19 = sphi 0, %s17
    %s20 = sphi 0, %s18
    %s21 = sphi 0, %s19
    %s22 = sphi 0, %s20
    %s38 = sphi 0, %s40
    %s41 = sphi 0, %s38
    %s42 = sphi 0, %s41
    %s58 = sphi 0, %s42
    %s62 = sphi 0, %s62
    %s64 = sphi 0, %s62
    %s65 = sphi 0, %s64
    %s79 = sphi 0, %s65
    %s83 = sphi 0, %s83
    %s85 = sphi 0, %s83
    %s86 = sphi 0, %s85
    %s100 = sphi 0, %s86
    %s104 = sphi 0, %s104
    %s106 = sphi 0, %s104
    %s107 = sphi 0, %s106
    %s121 = sphi 0, %s107
    %s129 = sphi 0, %s131
    %s132 = sphi 0, %s129
    %s133 = sphi 0, %s132
    %s149 = sphi 0, %s133
  $region4: #{csblock_forward.7} parent=0 // loop_header_branch
    %13 = sbr.rel (%p11) target = $region8
  $region5: #{csblock_forward.7} parent=0 // loop_body
    %s15 = ssub.s32 %s10, 1
    %s16 = ssub.s32 %s10, 2
    %s23 = sadd.s32 1, %s18
    %p24 = scmp.ge.s32.totalorder %s23, 2
    %s25 = scalar_select %p24, 0, %s23
    %s26 = sadd.s32 1, %s17
    %s27 = scalar_select %p24, %s26, %s17
    %p28 = scmp.ge.s32.totalorder %s27, 2
    %s29 = scalar_select %p28, 0, %s27
    %s30 = ssub.s32 1, %s17
    %s31 = smul.u32 %s18, %s30
    %s32 = sadd.s32 %s31, %s17
    %s33 = ssub.s32 1, %s29
    %s34 = smul.u32 %s25, %s33
    %s35 = sadd.s32 %s34, %s29
    %s36 = ssub.s32 %s32, %s35
    %p37 = scmp.eq.s32.totalorder %s36, 0
    %s39 = sadd.s32 %s38, 1
    %s40 = scalar_select %p37, %s38, %s39
    %p43 = pneg %p37
    %p44 = scmp.eq.s32.totalorder %s10, 3
    %p45 = por %p43, %p44
    %p46 = scmp.ne.s32.totalorder %s38, %s41
    %p47 = scmp.eq.s32.totalorder %s10, 0
    %p48 = por %p46, %p47
    %p49 = scmp.ne.s32.totalorder %s38, %s41
    %p50 = scmp.eq.s32.totalorder %s15, 3
    %p51 = por %p49, %p50
    %p52 = scmp.ne.s32.totalorder %s41, %s42
    %p53 = scmp.eq.s32.totalorder %s15, 0
    %p54 = por %p52, %p53
    %p55 = scmp.ne.s32.totalorder %s41, %s42
    %p56 = scmp.eq.s32.totalorder %s16, 3
    %p57 = por %p55, %p56
    %p59 = scmp.ne.s32.totalorder %s42, %s58
    %p60 = scmp.eq.s32.totalorder %s16, 0
    %p61 = por %p59, %p60
    %s63 = sadd.s32 %s62, 1
    %p66 = scmp.eq.s32.totalorder %s10, 3
    %p67 = scmp.ne.s32.totalorder %s62, %s64
    %p68 = scmp.eq.s32.totalorder %s10, 0
    %p69 = por %p67, %p68
    %p70 = scmp.ne.s32.totalorder %s62, %s64
    %p71 = scmp.eq.s32.totalorder %s15, 3
    %p72 = por %p70, %p71
    %p73 = scmp.ne.s32.totalorder %s64, %s65
    %p74 = scmp.eq.s32.totalorder %s15, 0
    %p75 = por %p73, %p74
    %p76 = scmp.ne.s32.totalorder %s64, %s65
    %p77 = scmp.eq.s32.totalorder %s16, 3
    %p78 = por %p76, %p77
    %p80 = scmp.ne.s32.totalorder %s65, %s79
    %p81 = scmp.eq.s32.totalorder %s16, 0
    %p82 = por %p80, %p81
    %s84 = sadd.s32 %s83, 1
    %p87 = scmp.eq.s32.totalorder %s10, 3
    %p88 = scmp.ne.s32.totalorder %s83, %s85
    %p89 = scmp.eq.s32.totalorder %s10, 0
    %p90 = por %p88, %p89
    %p91 = scmp.ne.s32.totalorder %s83, %s85
    %p92 = scmp.eq.s32.totalorder %s15, 3
    %p93 = por %p91, %p92
    %p94 = scmp.ne.s32.totalorder %s85, %s86
    %p95 = scmp.eq.s32.totalorder %s15, 0
    %p96 = por %p94, %p95
    %p97 = scmp.ne.s32.totalorder %s85, %s86
    %p98 = scmp.eq.s32.totalorder %s16, 3
    %p99 = por %p97, %p98
    %p101 = scmp.ne.s32.totalorder %s86, %s100
    %p102 = scmp.eq.s32.totalorder %s16, 0
    %p103 = por %p101, %p102
    %s105 = sadd.s32 %s104, 1
    %p108 = scmp.eq.s32.totalorder %s10, 3
    %p109 = scmp.ne.s32.totalorder %s104, %s106
    %p110 = scmp.eq.s32.totalorder %s10, 0
    %p111 = por %p109, %p110
    %p112 = scmp.ne.s32.totalorder %s104, %s106
    %p113 = scmp.eq.s32.totalorder %s15, 3
    %p114 = por %p112, %p113
    %p115 = scmp.ne.s32.totalorder %s106, %s107
    %p116 = scmp.eq.s32.totalorder %s15, 0
    %p117 = por %p115, %p116
    %p118 = scmp.ne.s32.totalorder %s106, %s107
    %p119 = scmp.eq.s32.totalorder %s16, 3
    %p120 = por %p118, %p119
    %p122 = scmp.ne.s32.totalorder %s107, %s121
    %p123 = scmp.eq.s32.totalorder %s16, 0
    %p124 = por %p122, %p123
    %s125 = smul.u32 %s18, %s17
    %s126 = smul.u32 %s25, %s29
    %s127 = ssub.s32 %s125, %s126
    %p128 = scmp.eq.s32.totalorder %s127, 0
    %s130 = sadd.s32 %s129, 1
    %s131 = scalar_select %p128, %s129, %s130
    %p134 = pneg %p128
    %p135 = scmp.eq.s32.totalorder %s10, 3
    %p136 = por %p134, %p135
    %p137 = scmp.ne.s32.totalorder %s129, %s132
    %p138 = scmp.eq.s32.totalorder %s10, 0
    %p139 = por %p137, %p138
    %p140 = scmp.ne.s32.totalorder %s129, %s132
    %p141 = scmp.eq.s32.totalorder %s15, 3
    %p142 = por %p140, %p141
    %p143 = scmp.ne.s32.totalorder %s132, %s133
    %p144 = scmp.eq.s32.totalorder %s15, 0
    %p145 = por %p143, %p144
    %p146 = scmp.ne.s32.totalorder %s132, %s133
    %p147 = scmp.eq.s32.totalorder %s16, 3
    %p148 = por %p146, %p147
    %p150 = scmp.ne.s32.totalorder %s133, %s149
    %p151 = scmp.eq.s32.totalorder %s16, 0
    %p152 = por %p150, %p151
    %p153 = scmp.le.s32.totalorder 1, %s10
    %p154 = scmp.lt.s32.totalorder %s10, 5
    %p155 = pnand %p153, %p154
    %p156 = pneg %p155
    // Predicated region
    $region9: #{csblock_forward.7} parent=5 // pred_check
      _
    $region10: #{csblock_forward.7} parent=5 // pred_check_branch
      %158 = sbr.rel (%p155) target = $region12
    $region11: #{csblock_forward.7} parent=5 // pred_region
      %s159 = ssub.s32 %s10, 1
      // Predicated region
      $region13: #{csblock_forward.7} parent=11 // pred_check
        %p160 = pneg %p75
      $region14: #{csblock_forward.7} parent=11 // pred_check_branch
        %162 = sbr.rel (%p160) target = $region16
      $region15: #{csblock_forward.7} parent=11 // pred_region
        _
      $region16: #{csblock_forward.7} parent=11 // pred_fallthru
        _
      // Predicated region
      $region17: #{csblock_forward.7} parent=11 // pred_check
        %p163 = pneg %p96
      $region18: #{csblock_forward.7} parent=11 // pred_check_branch
        %165 = sbr.rel (%p163) target = $region20
      $region19: #{csblock_forward.7} parent=11 // pred_region
        _
      $region20: #{csblock_forward.7} parent=11 // pred_fallthru
        _
      // Predicated region
      $region21: #{csblock_forward.7} parent=11 // pred_check
        %p166 = pneg %p117
      $region22: #{csblock_forward.7} parent=11 // pred_check_branch
        %168 = sbr.rel (%p166) target = $region24
      $region23: #{csblock_forward.7} parent=11 // pred_region
        _
      $region24: #{csblock_forward.7} parent=11 // pred_fallthru
        _
    $region12: #{csblock_forward.7} parent=5 // pred_fallthru
      _
    %p169 = scmp.lt.s32.totalorder %s10, 4
    // Predicated region
    $region25: #{csblock_forward.7} parent=5 // pred_check
      %p170 = pneg %p169
    $region26: #{csblock_forward.7} parent=5 // pred_check_branch
      %172 = sbr.rel (%p170) target = $region28
    $region27: #{csblock_forward.7} parent=5 // pred_region
      // Predicated region
      $region29: #{csblock_forward.7} parent=27 // pred_check
        %p173 = pneg %p48
      $region30: #{csblock_forward.7} parent=27 // pred_check_branch
        %175 = sbr.rel (%p173) target = $region32
      $region31: #{csblock_forward.7} parent=27 // pred_region
        %s176 = ssub.s32 1, %s17
        %s177 = smul.u32 %s18, %s176
        %s178 = sadd.s32 %s177, %s17
        %s179 = smul.u32 2, %s178
        %p180 = scmp.lt.s32.totalorder %s179, 3
        %s181 = scalar_select %p180, %s179, 3
        %s182 = smul.addr %s181, 7
        %s183 = smul.addr %s182, 4
        %s184 = scalar_lea.vmem %s0, %s183
        %s185 = ssub.s32 1, %s17
        %s186 = smul.u32 %s18, %s185
        %s187 = sadd.s32 %s186, %s17
        %s188 = smul.u32 2, %s187
      $region32: #{csblock_forward.7} parent=27 // pred_fallthru
        _
    $region28: #{csblock_forward.7} parent=5 // pred_fallthru
      _
    %p189 = scmp.le.s32.totalorder 1, %s10
    %p190 = scmp.lt.s32.totalorder %s10, 5
    %p191 = pnand %p189, %p190
    %p192 = pneg %p191
    // Predicated region
    $region33: #{csblock_forward.7} parent=5 // pred_check
      _
    $region34: #{csblock_forward.7} parent=5 // pred_check_branch
      %194 = sbr.rel (%p191) target = $region36
    $region35: #{csblock_forward.7} parent=5 // pred_region
      %s195 = ssub.s32 %s10, 1
      %s196 = ssub.s32 1, %s19
      %s197 = smul.u32 %s20, %s196
      %s198 = sadd.s32 %s197, %s19
      %s199 = smul.u32 2, %s198
      %p200 = scmp.lt.s32.totalorder %s199, 3
      %s201 = scalar_select %p200, %s199, 3
      %s202 = smul.addr %s201, 7
      %s203 = smul.addr %s202, 4
      %s204 = scalar_lea.vmem %s0, %s203
      %p205 = pneg %p54
      %p206 = pneg %p51
      %p207 = pneg %p75
      %p208 = pneg %p72
      %p209 = pneg %p96
      %p210 = pneg %p93
      %p211 = pneg %p117
      %p212 = pneg %p114
      %p213 = pneg %p145
      %p214 = pneg %p142
      %s215 = smul.u32 %s20, %s19
      %s216 = smul.u32 2, %s215
      %p217 = scmp.lt.s32.totalorder %s216, 3
      %s218 = scalar_select %p217, %s216, 3
      %s219 = smul.addr %s218, 4
      %s220 = scalar_lea.vmem %s4, %s219
      %s221 = ssub.s32 1, %s19
      %s222 = smul.u32 %s20, %s221
      %s223 = sadd.s32 %s222, %s19
      %s224 = smul.u32 2, %s223
      %p225 = scmp.lt.s32.totalorder %s224, 3
      %s226 = scalar_select %p225, %s224, 3
      %s227 = smul.addr %s226, 7
      %s228 = smul.addr %s227, 4
      %s229 = scalar_lea.vmem %s0, %s228
      %s230 = ssub.s32 1, %s19
      %s231 = smul.u32 %s20, %s230
      %s232 = sadd.s32 %s231, %s19
      %s233 = smul.u32 2, %s232
      %s234 = smul.u32 %s20, %s19
      %s235 = smul.u32 2, %s234
      %p236 = scmp.lt.s32.totalorder %s235, 3
      %s237 = scalar_select %p236, %s235, 3
      %s238 = smul.addr %s237, 4
      %s239 = scalar_lea.vmem %s4, %s238
      %s240 = smul.u32 %s20, %s19
      %s241 = smul.u32 2, %s240
      %p243 = scmp.eq.s32.totalorder %s19, 0
      // Predicated region
      $region37: #{csblock_forward.7} parent=35 // pred_check
        %p244 = pneg %p243
      $region38: #{csblock_forward.7} parent=35 // pred_check_branch
        %246 = sbr.rel (%p244) target = $region40
      $region39: #{csblock_forward.7} parent=35 // pred_region
        %v247 = vld [vmem:[%s229] sm:$0xff]
        %v248 = vld [vmem:[%s229 + $0x8] sm:$0xff]
        %v249 = vld [vmem:[%s229 + $0x10] sm:$0xff]
        %v250 = vld [vmem:[%s229 + $0x18] sm:$0xf]
        %v251 = vld [vmem:[%s229 + $0x1c] sm:$0xff]
        %v252 = vld [vmem:[%s229 + $0x24] sm:$0xff]
        %v253 = vld [vmem:[%s229 + $0x2c] sm:$0xff]
        %v254 = vld [vmem:[%s229 + $0x34] sm:$0xf]
        %v255 = vld [vmem:[%s1] sm:$0xf]
        %v256 = vld [vmem:[%s1 + $0x4] sm:$0xf]
        %v257 = vld [vmem:[%s1 + $0x8] sm:$0xf]
        %v258 = vld [vmem:[%s1 + $0xc] sm:$0xf]
        %v259 = vld [vmem:[%s1 + $0x10] sm:$0xf]
        %v260 = vld [vmem:[%s1 + $0x14] sm:$0xf]
        %v261 = vld [vmem:[%s1 + $0x18] sm:$0xf]
        %v262 = vld [vmem:[%s1 + $0x1c] sm:$0xf]
        %v263 = vld [vmem:[%s1 + $0x20] sm:$0xf]
        %v264 = vld [vmem:[%s1 + $0x24] sm:$0xf]
        %v265 = vld [vmem:[%s1 + $0x28] sm:$0xf]
        %v266 = vld [vmem:[%s1 + $0x2c] sm:$0xf]
        %v267 = vld [vmem:[%s1 + $0x30] sm:$0xf]
        %v268 = vld [vmem:[%s1 + $0x34] sm:$0xf]
        %v269 = vld [vmem:[%s1 + $0x38] sm:$0xf]
        %v270 = vld [vmem:[%s1 + $0x3c] sm:$0xf]
        %v271 = vld [vmem:[%s1 + $0x40] sm:$0xf]
        %v272 = vld [vmem:[%s1 + $0x44] sm:$0xf]
        %v273 = vld [vmem:[%s1 + $0x48] sm:$0xf]
        %v274 = vld [vmem:[%s1 + $0x4c] sm:$0xf]
        %v275 = vld [vmem:[%s1 + $0x50] sm:$0xf]
        %v276 = vld [vmem:[%s1 + $0x54] sm:$0xf]
        %v277 = vld [vmem:[%s1 + $0x58] sm:$0xf]
        %v278 = vld [vmem:[%s1 + $0x5c] sm:$0xf]
        %v279 = vld [vmem:[%s1 + $0x60] sm:$0xf]
        %v280 = vld [vmem:[%s1 + $0x64] sm:$0xf]
        %v281 = vld [vmem:[%s1 + $0x68] sm:$0xf]
        %v282 = vld [vmem:[%s1 + $0x6c] sm:$0xf]
        %v283 = vld [vmem:[%s1 + $0x70] sm:$0xf]
        %v284 = vld [vmem:[%s1 + $0x74] sm:$0xf]
        %v285 = vld [vmem:[%s1 + $0x78] sm:$0xf]
        %v286 = vld [vmem:[%s1 + $0x7c] sm:$0xf]
        %v287 = vld [vmem:[%s1 + $0x80] sm:$0xf]
        %v288 = vld [vmem:[%s1 + $0x84] sm:$0xf]
        %v289 = vld [vmem:[%s1 + $0x88] sm:$0xf]
        %v290 = vld [vmem:[%s1 + $0x8c] sm:$0xf]
        %v291 = vld [vmem:[%s1 + $0x90] sm:$0xf]
        %v292 = vld [vmem:[%s1 + $0x94] sm:$0xf]
        %v293 = vld [vmem:[%s1 + $0x98] sm:$0xf]
        %v294 = vld [vmem:[%s1 + $0x9c] sm:$0xf]
        %v295 = vld [vmem:[%s1 + $0xa0] sm:$0xf]
        %v296 = vld [vmem:[%s1 + $0xa4] sm:$0xf]
        %v297 = vld [vmem:[%s1 + $0xa8] sm:$0xf]
        %v298 = vld [vmem:[%s1 + $0xac] sm:$0xf]
        %v299 = vld [vmem:[%s1 + $0xb0] sm:$0xf]
        %v300 = vld [vmem:[%s1 + $0xb4] sm:$0xf]
        %v301 = vld [vmem:[%s1 + $0xb8] sm:$0xf]
        %v302 = vld [vmem:[%s1 + $0xbc] sm:$0xf]
        %v303 = vld [vmem:[%s1 + $0xc0] sm:$0xf]
        %v304 = vld [vmem:[%s1 + $0xc4] sm:$0xf]
        %v305 = vld [vmem:[%s1 + $0xc8] sm:$0xf]
        %v306 = vld [vmem:[%s1 + $0xcc] sm:$0xf]
        %v307 = vld [vmem:[%s1 + $0xd0] sm:$0xf]
        %v308 = vld [vmem:[%s1 + $0xd4] sm:$0xf]
        %v309 = vld [vmem:[%s1 + $0xd8] sm:$0xf]
        %v310 = vld [vmem:[%s1 + $0xdc] sm:$0xf]
        %v311 = vld [vmem:[%s1 + $0xe0] sm:$0xf]
        %v312 = vld [vmem:[%s1 + $0xe4] sm:$0xf]
        %v313 = vld [vmem:[%s1 + $0xe8] sm:$0xf]
        %v314 = vld [vmem:[%s1 + $0xec] sm:$0xf]
        %v315 = vld [vmem:[%s1 + $0xf0] sm:$0xf]
        %v316 = vld [vmem:[%s1 + $0xf4] sm:$0xf]
        %v317 = vld [vmem:[%s1 + $0xf8] sm:$0xf]
        %v318 = vld [vmem:[%s1 + $0xfc] sm:$0xf]
        %v319 = vld [vmem:[%s1 + $0x100] sm:$0xf]
        %v320 = vld [vmem:[%s1 + $0x104] sm:$0xf]
        %v321 = vld [vmem:[%s1 + $0x108] sm:$0xf]
        %v322 = vld [vmem:[%s1 + $0x10c] sm:$0xf]
        %v323 = vld [vmem:[%s1 + $0x110] sm:$0xf]
        %v324 = vld [vmem:[%s1 + $0x114] sm:$0xf]
        %v325 = vld [vmem:[%s1 + $0x118] sm:$0xf]
        %v326 = vld [vmem:[%s1 + $0x11c] sm:$0xf]
        %v327 = vld [vmem:[%s1 + $0x120] sm:$0xf]
        %v328 = vld [vmem:[%s1 + $0x124] sm:$0xf]
        %v329 = vld [vmem:[%s1 + $0x128] sm:$0xf]
        %v330 = vld [vmem:[%s1 + $0x12c] sm:$0xf]
        %v331 = vld [vmem:[%s1 + $0x130] sm:$0xf]
        %v332 = vld [vmem:[%s1 + $0x134] sm:$0xf]
        %v333 = vld [vmem:[%s1 + $0x138] sm:$0xf]
        %v334 = vld [vmem:[%s1 + $0x13c] sm:$0xf]
        %v335 = vld [vmem:[%s1 + $0x140] sm:$0xf]
        %v336 = vld [vmem:[%s1 + $0x144] sm:$0xf]
        %v337 = vld [vmem:[%s1 + $0x148] sm:$0xf]
        %v338 = vld [vmem:[%s1 + $0x14c] sm:$0xf]
        %v339 = vld [vmem:[%s1 + $0x150] sm:$0xf]
        %v340 = vld [vmem:[%s1 + $0x154] sm:$0xf]
        %v341 = vld [vmem:[%s1 + $0x158] sm:$0xf]
        %v342 = vld [vmem:[%s1 + $0x15c] sm:$0xf]
        %v343 = vld [vmem:[%s1 + $0x160] sm:$0xf]
        %v344 = vld [vmem:[%s1 + $0x164] sm:$0xf]
        %v345 = vld [vmem:[%s1 + $0x168] sm:$0xf]
        %v346 = vld [vmem:[%s1 + $0x16c] sm:$0xf]
        %v347 = vld [vmem:[%s1 + $0x170] sm:$0xf]
        %v348 = vld [vmem:[%s1 + $0x174] sm:$0xf]
        %v349 = vld [vmem:[%s1 + $0x178] sm:$0xf]
        %v350 = vld [vmem:[%s1 + $0x17c] sm:$0xf]
        %v351 = vld [vmem:[%s1 + $0x180] sm:$0xf]
        %v352 = vld [vmem:[%s1 + $0x184] sm:$0xf]
        %v353 = vld [vmem:[%s1 + $0x188] sm:$0xf]
        %v354 = vld [vmem:[%s1 + $0x18c] sm:$0xf]
        %v355 = vld [vmem:[%s1 + $0x190] sm:$0xf]
        %v356 = vld [vmem:[%s1 + $0x194] sm:$0xf]
        %v357 = vld [vmem:[%s1 + $0x198] sm:$0xf]
        %v358 = vld [vmem:[%s1 + $0x19c] sm:$0xf]
        %v359 = vld [vmem:[%s1 + $0x1a0] sm:$0xf]
        %v360 = vld [vmem:[%s1 + $0x1a4] sm:$0xf]
        %v361 = vld [vmem:[%s1 + $0x1a8] sm:$0xf]
        %v362 = vld [vmem:[%s1 + $0x1ac] sm:$0xf]
        %v363 = vld [vmem:[%s1 + $0x1b0] sm:$0xf]
        %v364 = vld [vmem:[%s1 + $0x1b4] sm:$0xf]
        %v365 = vld [vmem:[%s1 + $0x1b8] sm:$0xf]
        %v366 = vld [vmem:[%s1 + $0x1bc] sm:$0xf]
        %v375 = vunpack.c.l.b16 %v247
        %v376 = vunpack.c.h.b16 %v247
        %v377 = vunpack.c.l.b16 %v248
        %v378 = vunpack.c.h.b16 %v248
        %v379 = vunpack.c.l.b16 %v249
        %v380 = vunpack.c.h.b16 %v249
        %v381 = vunpack.c.l.b16 %v250
        %v382 = vunpack.c.l.b16 %v251
        %v383 = vunpack.c.h.b16 %v251
        %v384 = vunpack.c.l.b16 %v252
        %v385 = vunpack.c.h.b16 %v252
        %v386 = vunpack.c.l.b16 %v253
        %v387 = vunpack.c.h.b16 %v253
        %v388 = vunpack.c.l.b16 %v254
        %v389 = vpack.c.b16 %v382, %v375
        %v390 = vpack.c.b16 %v383, %v376
        %v391 = vpack.c.b16 %v384, %v377
        %v392 = vpack.c.b16 %v385, %v378
        %v393 = vpack.c.b16 %v386, %v379
        %v394 = vpack.c.b16 %v387, %v380
        %v395 = vpack.c.b16 %v388, %v381
        %v515 = vunpack.c.l.b16 %v255
        %v516 = vunpack.c.l.b16 %v256
        %v517 = vunpack.c.l.b16 %v257
        %v518 = vunpack.c.l.b16 %v258
        %v519 = vunpack.c.l.b16 %v259
        %v520 = vunpack.c.l.b16 %v260
        %v521 = vunpack.c.l.b16 %v261
        %v522 = vunpack.c.l.b16 %v262
        %v523 = vunpack.c.l.b16 %v263
        %v524 = vunpack.c.l.b16 %v264
        %v525 = vunpack.c.l.b16 %v265
        %v526 = vunpack.c.l.b16 %v266
        %v527 = vunpack.c.l.b16 %v267
        %v528 = vunpack.c.l.b16 %v268
        %v529 = vunpack.c.l.b16 %v269
        %v530 = vunpack.c.l.b16 %v270
        %v531 = vunpack.c.l.b16 %v271
        %v532 = vunpack.c.l.b16 %v272
        %v533 = vunpack.c.l.b16 %v273
        %v534 = vunpack.c.l.b16 %v274
        %v535 = vunpack.c.l.b16 %v275
        %v536 = vunpack.c.l.b16 %v276
        %v537 = vunpack.c.l.b16 %v277
        %v538 = vunpack.c.l.b16 %v278
        %v539 = vunpack.c.l.b16 %v279
        %v540 = vunpack.c.l.b16 %v280
        %v541 = vunpack.c.l.b16 %v281
        %v542 = vunpack.c.l.b16 %v282
        %v543 = vunpack.c.l.b16 %v283
        %v544 = vunpack.c.l.b16 %v284
        %v545 = vunpack.c.l.b16 %v285
        %v546 = vunpack.c.l.b16 %v286
        %v547 = vunpack.c.l.b16 %v287
        %v548 = vunpack.c.l.b16 %v288
        %v549 = vunpack.c.l.b16 %v289
        %v550 = vunpack.c.l.b16 %v290
        %v551 = vunpack.c.l.b16 %v291
        %v552 = vunpack.c.l.b16 %v292
        %v553 = vunpack.c.l.b16 %v293
        %v554 = vunpack.c.l.b16 %v294
        %v555 = vunpack.c.l.b16 %v295
        %v556 = vunpack.c.l.b16 %v296
        %v557 = vunpack.c.l.b16 %v297
        %v558 = vunpack.c.l.b16 %v298
        %v559 = vunpack.c.l.b16 %v299
        %v560 = vunpack.c.l.b16 %v300
        %v561 = vunpack.c.l.b16 %v301
        %v562 = vunpack.c.l.b16 %v302
        %v563 = vunpack.c.l.b16 %v303
        %v564 = vunpack.c.l.b16 %v304
        %v565 = vunpack.c.l.b16 %v305
        %v566 = vunpack.c.l.b16 %v306
        %v567 = vunpack.c.l.b16 %v307
        %v568 = vunpack.c.l.b16 %v308
        %v569 = vunpack.c.l.b16 %v309
        %v570 = vunpack.c.l.b16 %v310
        %v571 = vunpack.c.l.b16 %v311
        %v572 = vunpack.c.l.b16 %v312
        %v573 = vunpack.c.l.b16 %v313
        %v574 = vunpack.c.l.b16 %v314
        %v575 = vunpack.c.l.b16 %v315
        %v576 = vunpack.c.l.b16 %v316
        %v577 = vunpack.c.l.b16 %v317
        %v578 = vunpack.c.l.b16 %v318
        %v579 = vunpack.c.l.b16 %v319
        %v580 = vunpack.c.l.b16 %v320
        %v581 = vunpack.c.l.b16 %v321
        %v582 = vunpack.c.l.b16 %v322
        %v583 = vunpack.c.l.b16 %v323
        %v584 = vunpack.c.l.b16 %v324
        %v585 = vunpack.c.l.b16 %v325
        %v586 = vunpack.c.l.b16 %v326
        %v587 = vunpack.c.l.b16 %v327
        %v588 = vunpack.c.l.b16 %v328
        %v589 = vunpack.c.l.b16 %v329
        %v590 = vunpack.c.l.b16 %v330
        %v591 = vunpack.c.l.b16 %v331
        %v592 = vunpack.c.l.b16 %v332
        %v593 = vunpack.c.l.b16 %v333
        %v594 = vunpack.c.l.b16 %v334
        %v595 = vunpack.c.l.b16 %v335
        %v596 = vunpack.c.l.b16 %v336
        %v597 = vunpack.c.l.b16 %v337
        %v598 = vunpack.c.l.b16 %v338
        %v599 = vunpack.c.l.b16 %v339
        %v600 = vunpack.c.l.b16 %v340
        %v601 = vunpack.c.l.b16 %v341
        %v602 = vunpack.c.l.b16 %v342
        %v603 = vunpack.c.l.b16 %v343
        %v604 = vunpack.c.l.b16 %v344
        %v605 = vunpack.c.l.b16 %v345
        %v606 = vunpack.c.l.b16 %v346
        %v607 = vunpack.c.l.b16 %v347
        %v608 = vunpack.c.l.b16 %v348
        %v609 = vunpack.c.l.b16 %v349
        %v610 = vunpack.c.l.b16 %v350
        %v611 = vunpack.c.l.b16 %v351
        %v612 = vunpack.c.l.b16 %v352
        %v613 = vunpack.c.l.b16 %v353
        %v614 = vunpack.c.l.b16 %v354
        %v615 = vunpack.c.l.b16 %v355
        %v616 = vunpack.c.l.b16 %v356
        %v617 = vunpack.c.l.b16 %v357
        %v618 = vunpack.c.l.b16 %v358
        %v619 = vunpack.c.l.b16 %v359
        %v620 = vunpack.c.l.b16 %v360
        %v621 = vunpack.c.l.b16 %v361
        %v622 = vunpack.c.l.b16 %v362
        %v623 = vunpack.c.l.b16 %v363
        %v624 = vunpack.c.l.b16 %v364
        %v625 = vunpack.c.l.b16 %v365
        %v626 = vunpack.c.l.b16 %v366
        %v627 = vpack.c.b16 %v516, %v515
        %v628 = vpack.c.b16 %v518, %v517
        %v629 = vpack.c.b16 %v520, %v519
        %v630 = vpack.c.b16 %v522, %v521
        %v631 = vpack.c.b16 %v524, %v523
        %v632 = vpack.c.b16 %v526, %v525
        %v633 = vpack.c.b16 %v528, %v527
        %v634 = vpack.c.b16 %v530, %v529
        %v635 = vpack.c.b16 %v532, %v531
        %v636 = vpack.c.b16 %v534, %v533
        %v637 = vpack.c.b16 %v536, %v535
        %v638 = vpack.c.b16 %v538, %v537
        %v639 = vpack.c.b16 %v540, %v539
        %v640 = vpack.c.b16 %v542, %v541
        %v641 = vpack.c.b16 %v544, %v543
        %v642 = vpack.c.b16 %v546, %v545
        %v643 = vpack.c.b16 %v548, %v547
        %v644 = vpack.c.b16 %v550, %v549
        %v645 = vpack.c.b16 %v552, %v551
        %v646 = vpack.c.b16 %v554, %v553
        %v647 = vpack.c.b16 %v556, %v555
        %v648 = vpack.c.b16 %v558, %v557
        %v649 = vpack.c.b16 %v560, %v559
        %v650 = vpack.c.b16 %v562, %v561
        %v651 = vpack.c.b16 %v564, %v563
        %v652 = vpack.c.b16 %v566, %v565
        %v653 = vpack.c.b16 %v568, %v567
        %v654 = vpack.c.b16 %v570, %v569
        %v655 = vpack.c.b16 %v572, %v571
        %v656 = vpack.c.b16 %v574, %v573
        %v657 = vpack.c.b16 %v576, %v575
        %v658 = vpack.c.b16 %v578, %v577
        %v659 = vpack.c.b16 %v580, %v579
        %v660 = vpack.c.b16 %v582, %v581
        %v661 = vpack.c.b16 %v584, %v583
        %v662 = vpack.c.b16 %v586, %v585
        %v663 = vpack.c.b16 %v588, %v587
        %v664 = vpack.c.b16 %v590, %v589
        %v665 = vpack.c.b16 %v592, %v591
        %v666 = vpack.c.b16 %v594, %v593
        %v667 = vpack.c.b16 %v596, %v595
        %v668 = vpack.c.b16 %v598, %v597
        %v669 = vpack.c.b16 %v600, %v599
        %v670 = vpack.c.b16 %v602, %v601
        %v671 = vpack.c.b16 %v604, %v603
        %v672 = vpack.c.b16 %v606, %v605
        %v673 = vpack.c.b16 %v608, %v607
        %v674 = vpack.c.b16 %v610, %v609
        %v675 = vpack.c.b16 %v612, %v611
        %v676 = vpack.c.b16 %v614, %v613
        %v677 = vpack.c.b16 %v616, %v615
        %v678 = vpack.c.b16 %v618, %v617
        %v679 = vpack.c.b16 %v620, %v619
        %v680 = vpack.c.b16 %v622, %v621
        %v681 = vpack.c.b16 %v624, %v623
        %v682 = vpack.c.b16 %v626, %v625
        %739 = vmatprep.subr.bf16.mxu0 0
        %740 = vmatpush1.bf16.msra.mxu0 %v627
        %741 = vmatprep.subr.bf16.mxu0 0
        %742 = vmatpush1.bf16.msra.mxu0 %v628
        %743 = vmatprep.subr.bf16.mxu0 0
        %744 = vmatpush1.bf16.msra.mxu0 %v629
        %745 = vmatprep.subr.bf16.mxu0 0
        %746 = vmatpush1.bf16.msra.mxu0 %v630
        %747 = vmatprep.subr.bf16.mxu0 0
        %748 = vmatpush1.bf16.msra.mxu0 %v631
        %749 = vmatprep.subr.bf16.mxu0 0
        %750 = vmatpush1.bf16.msra.mxu0 %v632
        %751 = vmatprep.subr.bf16.mxu0 0
        %752 = vmatpush1.bf16.msra.mxu0 %v633
        %753 = vmatprep.subr.bf16.mxu0 0
        %754 = vmatpush1.bf16.msra.mxu0 %v634
        %755 = vmatprep.subr.bf16.mxu0 0
        %756 = vmatpush1.bf16.msra.mxu0 %v635
        %757 = vmatprep.subr.bf16.mxu0 0
        %758 = vmatpush1.bf16.msra.mxu0 %v636
        %759 = vmatprep.subr.bf16.mxu0 0
        %760 = vmatpush1.bf16.msra.mxu0 %v637
        %761 = vmatprep.subr.bf16.mxu0 0
        %762 = vmatpush1.bf16.msra.mxu0 %v638
        %763 = vmatprep.subr.bf16.mxu0 0
        %764 = vmatpush1.bf16.msra.mxu0 %v639
        %765 = vmatprep.subr.bf16.mxu0 0
        %766 = vmatpush1.bf16.msra.mxu0 %v640
        %767 = vmatprep.subr.bf16.mxu0 0
        %768 = vmatpush1.bf16.msra.mxu0 %v641
        %769 = vmatprep.subr.bf16.mxu0 0
        %770 = vmatpush1.bf16.msra.mxu0 %v642
        %771 = vmatprep.mubr.bf16.mxu0 %v390
        %772 = vmatmul.mubr.bf16.gmra.mrb[0].mxu0 %v389
        %v773 = vpop.f32.mrb[0].mxu0
        %v774 = vadd.f32 0.0, %v773
        %v775 = vpop.f32.mrb[0].mxu0
        %v776 = vpop.f32.mrb[0].mxu0
        %v777 = vadd.f32 0.0, %v776
        %v778 = vpop.f32.mrb[0].mxu0
        %779 = vdwg.mxu0
        %780 = vmatprep.subr.bf16.mxu0 0
        %781 = vmatpush1.bf16.msra.mxu0 %v643
        %782 = vmatprep.subr.bf16.mxu0 0
        %783 = vmatpush1.bf16.msra.mxu0 %v644
        %784 = vmatprep.subr.bf16.mxu0 0
        %785 = vmatpush1.bf16.msra.mxu0 %v645
        %786 = vmatprep.subr.bf16.mxu0 0
        %787 = vmatpush1.bf16.msra.mxu0 %v646
        %788 = vmatprep.subr.bf16.mxu0 0
        %789 = vmatpush1.bf16.msra.mxu0 %v647
        %790 = vmatprep.subr.bf16.mxu0 0
        %791 = vmatpush1.bf16.msra.mxu0 %v648
        %792 = vmatprep.subr.bf16.mxu0 0
        %793 = vmatpush1.bf16.msra.mxu0 %v649
        %794 = vmatprep.subr.bf16.mxu0 0
        %795 = vmatpush1.bf16.msra.mxu0 %v650
        %796 = vmatprep.subr.bf16.mxu0 0
        %797 = vmatpush1.bf16.msra.mxu0 %v651
        %798 = vmatprep.subr.bf16.mxu0 0
        %799 = vmatpush1.bf16.msra.mxu0 %v652
        %800 = vmatprep.subr.bf16.mxu0 0
        %801 = vmatpush1.bf16.msra.mxu0 %v653
        %802 = vmatprep.subr.bf16.mxu0 0
        %803 = vmatpush1.bf16.msra.mxu0 %v654
        %804 = vmatprep.subr.bf16.mxu0 0
        %805 = vmatpush1.bf16.msra.mxu0 %v655
        %806 = vmatprep.subr.bf16.mxu0 0
        %807 = vmatpush1.bf16.msra.mxu0 %v656
        %808 = vmatprep.subr.bf16.mxu0 0
        %809 = vmatpush1.bf16.msra.mxu0 %v657
        %810 = vmatprep.subr.bf16.mxu0 0
        %811 = vmatpush1.bf16.msra.mxu0 %v658
        %812 = vmatprep.mubr.bf16.mxu0 %v392
        %813 = vmatmul.mubr.bf16.gmra.mrb[0].mxu0 %v391
        %v814 = vpop.f32.mrb[0].mxu0
        %v815 = vadd.f32 %v774, %v814
        %v816 = vpop.f32.mrb[0].mxu0
        %v817 = vpop.f32.mrb[0].mxu0
        %v818 = vadd.f32 %v777, %v817
        %v819 = vpop.f32.mrb[0].mxu0
        %820 = vdwg.mxu0
        %821 = vmatprep.subr.bf16.mxu0 0
        %822 = vmatpush1.bf16.msra.mxu0 %v659
        %823 = vmatprep.subr.bf16.mxu0 0
        %824 = vmatpush1.bf16.msra.mxu0 %v660
        %825 = vmatprep.subr.bf16.mxu0 0
        %826 = vmatpush1.bf16.msra.mxu0 %v661
        %827 = vmatprep.subr.bf16.mxu0 0
        %828 = vmatpush1.bf16.msra.mxu0 %v662
        %829 = vmatprep.subr.bf16.mxu0 0
        %830 = vmatpush1.bf16.msra.mxu0 %v663
        %831 = vmatprep.subr.bf16.mxu0 0
        %832 = vmatpush1.bf16.msra.mxu0 %v664
        %833 = vmatprep.subr.bf16.mxu0 0
        %834 = vmatpush1.bf16.msra.mxu0 %v665
        %835 = vmatprep.subr.bf16.mxu0 0
        %836 = vmatpush1.bf16.msra.mxu0 %v666
        %837 = vmatprep.subr.bf16.mxu0 0
        %838 = vmatpush1.bf16.msra.mxu0 %v667
        %839 = vmatprep.subr.bf16.mxu0 0
        %840 = vmatpush1.bf16.msra.mxu0 %v668
        %841 = vmatprep.subr.bf16.mxu0 0
        %842 = vmatpush1.bf16.msra.mxu0 %v669
        %843 = vmatprep.subr.bf16.mxu0 0
        %844 = vmatpush1.bf16.msra.mxu0 %v670
        %845 = vmatprep.subr.bf16.mxu0 0
        %846 = vmatpush1.bf16.msra.mxu0 %v671
        %847 = vmatprep.subr.bf16.mxu0 0
        %848 = vmatpush1.bf16.msra.mxu0 %v672
        %849 = vmatprep.subr.bf16.mxu0 0
        %850 = vmatpush1.bf16.msra.mxu0 %v673
        %851 = vmatprep.subr.bf16.mxu0 0
        %852 = vmatpush1.bf16.msra.mxu0 %v674
        %853 = vmatprep.mubr.bf16.mxu0 %v394
        %854 = vmatmul.mubr.bf16.gmra.mrb[0].mxu0 %v393
        %v855 = vpop.f32.mrb[0].mxu0
        %v856 = vadd.f32 %v815, %v855
        %v857 = vpop.f32.mrb[0].mxu0
        %v858 = vpop.f32.mrb[0].mxu0
        %v859 = vadd.f32 %v818, %v858
        %v860 = vpop.f32.mrb[0].mxu0
        %861 = vdwg.mxu0
        %862 = vmatprep.subr.bf16.mxu0 0
        %863 = vmatpush1.bf16.msra.mxu0 %v675
        %864 = vmatprep.subr.bf16.mxu0 0
        %865 = vmatpush1.bf16.msra.mxu0 %v676
        %866 = vmatprep.subr.bf16.mxu0 0
        %867 = vmatpush1.bf16.msra.mxu0 %v677
        %868 = vmatprep.subr.bf16.mxu0 0
        %869 = vmatpush1.bf16.msra.mxu0 %v678
        %870 = vmatprep.subr.bf16.mxu0 0
        %871 = vmatpush1.bf16.msra.mxu0 %v679
        %872 = vmatprep.subr.bf16.mxu0 0
        %873 = vmatpush1.bf16.msra.mxu0 %v680
        %874 = vmatprep.subr.bf16.mxu0 0
        %875 = vmatpush1.bf16.msra.mxu0 %v681
        %876 = vmatprep.subr.bf16.mxu0 0
        %877 = vmatpush1.bf16.msra.mxu0 %v682
        %878 = vmatprep.subr.bf16.mxu0 0
        %879 = vmatpush1.bf16.msra.mxu0 0
        %880 = vmatprep.subr.bf16.mxu0 0
        %881 = vmatpush1.bf16.msra.mxu0 0
        %882 = vmatprep.subr.bf16.mxu0 0
        %883 = vmatpush1.bf16.msra.mxu0 0
        %884 = vmatprep.subr.bf16.mxu0 0
        %885 = vmatpush1.bf16.msra.mxu0 0
        %886 = vmatprep.subr.bf16.mxu0 0
        %887 = vmatpush1.bf16.msra.mxu0 0
        %888 = vmatprep.subr.bf16.mxu0 0
        %889 = vmatpush1.bf16.msra.mxu0 0
        %890 = vmatprep.subr.bf16.mxu0 0
        %891 = vmatpush1.bf16.msra.mxu0 0
        %892 = vmatprep.subr.bf16.mxu0 0
        %893 = vmatpush1.bf16.msra.mxu0 0
        %894 = vmatprep.mubr.bf16.mxu0 0
        %895 = vmatmul.mubr.bf16.gmra.mrb[0].mxu0 %v395
        %v896 = vpop.f32.mrb[0].mxu0
        %v897 = vadd.f32 %v856, %v896
        %v898 = vpop.f32.mrb[0].mxu0
        %v899 = vpop.f32.mrb[0].mxu0
        %v900 = vadd.f32 %v859, %v899
        %v901 = vpop.f32.mrb[0].mxu0
        %902 = vdwg.mxu0
        %s903 = smul.u32 %s20, 16
        %s904 = scalar_lea.vmem [#allocation2], %s903
        %905 = vst [vmem:[%s904] sm:$0xff] %v897
        %906 = vst [vmem:[%s904 + $0x8] sm:$0xff] %v900
        %p907 = scmp.eq.s32.totalorder %s20, 0
        // Predicated region
        $region41: #{csblock_forward.7} parent=39 // pred_check
          %p908 = pneg %p907
        $region42: #{csblock_forward.7} parent=39 // pred_check_branch
          %910 = sbr.rel (%p908) target = $region44
        $region43: #{csblock_forward.7} parent=39 // pred_region
          %911 = vst [vmem:[#allocation3] sm:$0x3] 0.0
        $region44: #{csblock_forward.7} parent=39 // pred_fallthru
          _
        %v912 = vld [vmem:[#allocation3] sm:$0x1]
        %v913 = vadd.f32 %v897, %v900
        %v914 = vrot.slane %v913, 4
        %v915 = vadd.f32 %v913, %v914
        %v916 = vrot.slane %v915, 2
        %v917 = vadd.f32 %v915, %v916
        %v918 = vrot.slane %v917, 1
        %v919 = vadd.f32 %v917, %v918
        %v920 = vadd.f32 %v912, %v919
        %921 = vst [vmem:[#allocation3] sm:$0x1] %v920
        %v922 = vld [vmem:[#allocation3 + $0x1] sm:$0x1]
        %v923 = vmul.f32 %v897, %v897
        %v924 = vmul.f32 %v900, %v900
        %v925 = vadd.f32 %v923, %v924
        %v926 = vrot.slane %v925, 4
        %v927 = vadd.f32 %v925, %v926
        %v928 = vrot.slane %v927, 2
        %v929 = vadd.f32 %v927, %v928
        %v930 = vrot.slane %v929, 1
        %v931 = vadd.f32 %v929, %v930
        %v932 = vadd.f32 %v922, %v931
        %933 = vst [vmem:[#allocation3 + $0x1] sm:$0x1] %v932
      $region40: #{csblock_forward.7} parent=35 // pred_fallthru
        _
      %p934 = scmp.eq.s32.totalorder %s19, 1
      // Predicated region
      $region45: #{csblock_forward.7} parent=35 // pred_check
        %p935 = pneg %p934
      $region46: #{csblock_forward.7} parent=35 // pred_check_branch
        %937 = sbr.rel (%p935) target = $region48
      $region47: #{csblock_forward.7} parent=35 // pred_region
        %p938 = scmp.eq.s32.totalorder %s20, 0
        // Predicated region
        $region49: #{csblock_forward.7} parent=47 // pred_check
          %p939 = pneg %p938
        $region50: #{csblock_forward.7} parent=47 // pred_check_branch
          %941 = sbr.rel (%p939) target = $region52
        $region51: #{csblock_forward.7} parent=47 // pred_region
          %v942 = vld [vmem:[#allocation3] sm:$0x1]
          %v943 = vmul.f32 %v942, 0.03125
          %v944 = vld [vmem:[#allocation3 + $0x1] sm:$0x1]
          %v945 = vmul.f32 %v944, 0.03125
          %v946 = vmul.f32 %v943, %v943
          %v947 = vsub.f32 %v945, %v946
          %v948 = vmax.f32 %v947, 0.0
          %v949 = vadd.f32 %v948, 1e-05
          %v950 = vrsqrt.pop %v949
          %v951 = vld [vmem:[%s2] sm:$0x1]
          %v952 = vmul.f32 %v950, %v951
          %953 = vst [vmem:[#allocation4] sm:$0x1] %v952
          %v954 = vld [vmem:[%s3] sm:$0x1]
          %v955 = vmul.f32 %v943, %v952
          %v956 = vsub.f32 %v954, %v955
          %957 = vst [vmem:[#allocation4 + $0x1] sm:$0x1] %v956
        $region52: #{csblock_forward.7} parent=47 // pred_fallthru
          _
        %s958 = smul.u32 %s20, 16
        %s959 = scalar_lea.vmem [#allocation2], %s958
        %v960 = vld [vmem:[%s959] sm:$0xff]
        %v961 = vld [vmem:[%s959 + $0x8] sm:$0xff]
        %v962 = vld [vmem:[#allocation4] sm:$0x1]
        %v963 = vlaneseq
        %v964 = vshrl.u32 %v963, 7
        %v965 = vsub.s32 0, %v964
        %v966 = vrot.slane %v962, %v965
        %v967 = vmul.f32 %v960, %v966
        %v968 = vmul.f32 %v961, %v966
        %v969 = vld [vmem:[#allocation4 + $0x1] sm:$0x1]
        %v970 = vlaneseq
        %v971 = vshrl.u32 %v970, 7
        %v972 = vsub.s32 0, %v971
        %v973 = vrot.slane %v969, %v972
        %v974 = vadd.f32 %v967, %v973
        %v975 = vadd.f32 %v968, %v973
        %v976 = vmax.f32 %v974, 0.0
        %v977 = vmax.f32 %v975, 0.0
        %v978 = vpack.c.bf16 %v977, %v976
        %v980 = vunpack.c.l.b16 %v978
        %v981 = vunpack.c.h.b16 %v978
        %v982 = vpack.c.b16 %v980, %v980
        %v983 = vpack.c.b16 %v981, %v981
        %986 = vst [vmem:[%s239] sm:$0xf] %v982
        %987 = vst [vmem:[%s239 + $0x4] sm:$0xf] %v983
      $region48: #{csblock_forward.7} parent=35 // pred_fallthru
        _
      %s988 = smul.u32 %s20, %s19
      %s989 = smul.u32 2, %s988
      %p990 = scmp.lt.s32.totalorder %s989, 3
      %s991 = scalar_select %p990, %s989, 3
      %s992 = smul.addr %s991, 4
      %s993 = scalar_lea.vmem %s4, %s992
      // Predicated region
      $region53: #{csblock_forward.7} parent=35 // pred_check
        %p994 = pneg %p142
      $region54: #{csblock_forward.7} parent=35 // pred_check_branch
        %996 = sbr.rel (%p994) target = $region56
      $region55: #{csblock_forward.7} parent=35 // pred_region
        %s997 = smul.u32 %s20, %s19
        %s998 = smul.u32 2, %s997
      $region56: #{csblock_forward.7} parent=35 // pred_fallthru
        _
    $region36: #{csblock_forward.7} parent=5 // pred_fallthru
      _
    %p999 = scmp.le.s32.totalorder 2, %s10
    // Predicated region
    $region57: #{csblock_forward.7} parent=5 // pred_check
      %p1000 = pneg %p999
    $region58: #{csblock_forward.7} parent=5 // pred_check_branch
      %1002 = sbr.rel (%p1000) target = $region60
    $region59: #{csblock_forward.7} parent=5 // pred_region
      %s1003 = ssub.s32 %s10, 2
      // Predicated region
      $region61: #{csblock_forward.7} parent=59 // pred_check
        %p1004 = pneg %p148
      $region62: #{csblock_forward.7} parent=59 // pred_check_branch
        %1006 = sbr.rel (%p1004) target = $region64
      $region63: #{csblock_forward.7} parent=59 // pred_region
        %s1007 = smul.u32 %s22, %s21
        %s1008 = smul.u32 2, %s1007
        %p1009 = scmp.lt.s32.totalorder %s1008, 3
        %s1010 = scalar_select %p1009, %s1008, 3
        %s1011 = smul.addr %s1010, 4
        %s1012 = scalar_lea.vmem %s4, %s1011
      $region64: #{csblock_forward.7} parent=59 // pred_fallthru
        _
    $region60: #{csblock_forward.7} parent=5 // pred_fallthru
      _
  $region6: #{csblock_forward.7} parent=0 // loop_footer
    %s14 = sadd.s32 1, %s10
  $region7: #{csblock_forward.7} parent=0 // loop_footer_branch
    %9 = sbr.rel target = $region3
  $region8: #{csblock_forward.7} parent=0 // loop_exit
    _

</llo_original>
